<compile_context>
chip_gen: v6e
topology: v6e:2x2x1
jax: 0.10.0
libtpu: 0.0.40
codegen_flags: <defaults>
</compile_context>

<pallas_src>
import jax
import jax.numpy as jnp
from jax.experimental import pallas as pl
from jax.experimental.pallas import tpu as pltpu


# ----------------------------------------------------------------------------
# In-kernel building blocks (pure value computation, all data stays in VMEM/vregs)
# ----------------------------------------------------------------------------
def _conv3x3_same_bn_relu(x3d, w_flat, shift_row):
    """3x3 stride-1 'same' conv + folded-BN shift + ReLU as ONE MXU matmul.

    x3d:       (H, W, Cin) activation value.
    w_flat:    (9*Cin, Cout) weights, tap-major (ky, kx, ci) rows, BN scale folded in.
    shift_row: (1, Cout) folded conv-bias/BN shift (float32).
    Returns (H, W, Cout) float32.
    """
    H, W, Cin = x3d.shape
    Cout = w_flat.shape[1]
    # Zero-pad spatially in-register (no HBM pad op, no scratch buffer).
    zr = jnp.zeros((1, W, Cin), x3d.dtype)
    zc = jnp.zeros((H + 2, 1, Cin), x3d.dtype)
    xp = jnp.concatenate([zr, x3d, zr], axis=0)        # (H+2, W,   Cin)
    xp = jnp.concatenate([zc, xp, zc], axis=1)         # (H+2, W+2, Cin)
    # 9-tap im2col built in-register; one fat-K contraction on the MXU.
    taps = [xp[ky:ky + H, kx:kx + W, :] for ky in range(3) for kx in range(3)]
    patch = jnp.concatenate(taps, axis=-1).reshape(H * W, 9 * Cin)
    y = jnp.dot(patch.astype(w_flat.dtype), w_flat,
                preferred_element_type=jnp.float32)
    y = jnp.maximum(y + shift_row, 0.0)
    return y.reshape(H, W, Cout)


def _deconv3x3_s2_bn_relu(h3d, w_poly, shift_row):
    """ConvTranspose2d(k=3, stride=2, pad=1, output_padding=1) + BN + ReLU as a
    4-phase (polyphase) direct conv: one matmul against a (4*Cin, 4*Cout) weight
    whose column blocks are the output parity phases
    [(2a,2b), (2a,2b+1), (2a+1,2b), (2a+1,2b+1)].

    h3d: (H, W, Cin). Returns (H, W, 4*Cout) float32.
    """
    H, W, Cin = h3d.shape
    # Only a one-pixel zero border on the bottom/right is needed (h[a+1], h[b+1] taps).
    zr = jnp.zeros((1, W, Cin), h3d.dtype)
    zc = jnp.zeros((H + 1, 1, Cin), h3d.dtype)
    hp = jnp.concatenate([h3d, zr], axis=0)            # (H+1, W,   Cin)
    hp = jnp.concatenate([hp, zc], axis=1)             # (H+1, W+1, Cin)
    # 2x2 neighborhood [h[a,b], h[a,b+1], h[a+1,b], h[a+1,b+1]]  -> (H*W, 4*Cin)
    taps = [hp[dy:dy + H, dx:dx + W, :] for dy in range(2) for dx in range(2)]
    patch = jnp.concatenate(taps, axis=-1).reshape(H * W, 4 * Cin)
    y = jnp.dot(patch.astype(w_poly.dtype), w_poly,
                preferred_element_type=jnp.float32)
    y = jnp.maximum(y + shift_row, 0.0)
    return y.reshape(H, W, w_poly.shape[1])


def _upsample_layer_kernel(x_ref, skip_ref, w1_ref, b1_ref, w2_ref, b2_ref,
                           wd_ref, bd_ref, o_ref):
    """Fused: conv1 -> conv2 -> polyphase deconv -> channel concat with skip."""
    _, H, W, _ = x_ref.shape
    C = wd_ref.shape[1] // 4                           # out_ch
    H2 = 2 * H

    x = x_ref[0]                                       # (H, W, in_ch)

    # ---- Conv_BN_ReLU_2 (BN scale folded into weights, shift+ReLU epilogue) ----
    h1 = _conv3x3_same_bn_relu(x, w1_ref[...], b1_ref[...])                 # (H, W, mid)
    h2 = _conv3x3_same_bn_relu(h1.astype(x.dtype), w2_ref[...], b2_ref[...])

    # ---- upsample: ConvTranspose2d(stride=2) as 4 parity phases per pixel ----
    up4 = _deconv3x3_s2_bn_relu(h2.astype(x.dtype), wd_ref[...], bd_ref[...])
    up4 = up4.astype(o_ref.dtype)                      # (H, W, 4C): [ee | eo | oe | oo]

    # Re-order phases into output "pixel-pair" rows:
    #   up4[a, b, 0:2C]  -> output row 2a,   pixels (2b, 2b+1)
    #   up4[a, b, 2C:4C] -> output row 2a+1, pixels (2b, 2b+1)
    even = up4[:, :, :2 * C][:, None]                  # (H, 1, W, 2C)
    odd = up4[:, :, 2 * C:][:, None]                   # (H, 1, W, 2C)
    up_pair = jnp.concatenate([even, odd], axis=1).reshape(H2, W, 2 * C)

    # ---- torch.cat((x_up, skip), dim=1): weave skip channels in per pixel ----
    # skip_ref already arrives in pixel-pair layout (2H, W, 2C) (free XLA reshape).
    skip_pair = skip_ref[0]
    out_pair = jnp.concatenate(
        [up_pair[:, :, :C], skip_pair[:, :, :C],
         up_pair[:, :, C:], skip_pair[:, :, C:]], axis=-1)      # (2H, W, 4C)

    o_ref[...] = out_pair[None].astype(o_ref.dtype)


# ----------------------------------------------------------------------------
# Host-side wrapper
# ----------------------------------------------------------------------------
def upsample_layer_forward(params, x, skip):
    """x: (N, H, W, in_ch) NHWC; skip: (N, 2H, 2W, out_ch) NHWC.
    Returns (N, 2H, 2W, 2*out_ch) NHWC with channels [upsampled | skip]."""
    N, H, W, Cin = x.shape
    mid = params["w1"].shape[1]
    C = params["wd"].shape[1] // 4
    H2, W2 = 2 * H, 2 * W
    assert skip.shape == (N, H2, W2, C), skip.shape
    assert params["w1"].shape[0] == 9 * Cin

    # Free, contiguous re-views (no data movement): the kernel consumes skip and
    # produces the output in a "pixel-pair" packed layout so the last (lane)
    # dimension is 2x / 4x the raw channel count.
    skip_pair = skip.reshape(N, H2, W, 2 * C)

    b1 = params["b1"].reshape(1, mid).astype(jnp.float32)
    b2 = params["b2"].reshape(1, mid).astype(jnp.float32)
    bd = params["bd"].reshape(1, 4 * C).astype(jnp.float32)

    out_pair = pl.pallas_call(
        _upsample_layer_kernel,
        out_shape=jax.ShapeDtypeStruct((N, H2, W, 4 * C), x.dtype),
        grid=(N,),
        in_specs=[
            pl.BlockSpec((1, H, W, Cin), lambda i: (i, 0, 0, 0)),
            pl.BlockSpec((1, H2, W, 2 * C), lambda i: (i, 0, 0, 0)),
            pl.BlockSpec(params["w1"].shape, lambda i: (0, 0)),
            pl.BlockSpec((1, mid), lambda i: (0, 0)),
            pl.BlockSpec(params["w2"].shape, lambda i: (0, 0)),
            pl.BlockSpec((1, mid), lambda i: (0, 0)),
            pl.BlockSpec(params["wd"].shape, lambda i: (0, 0)),
            pl.BlockSpec((1, 4 * C), lambda i: (0, 0)),
        ],
        out_specs=pl.BlockSpec((1, H2, W, 4 * C), lambda i: (i, 0, 0, 0)),
        compiler_params=pltpu.CompilerParams(
            dimension_semantics=("parallel",)),   # batch across v7x TensorCores
    )(x, skip_pair, params["w1"], b1, params["w2"], b2, params["wd"], bd)

    return out_pair.reshape(N, H2, W2, 2 * C)


# ----------------------------------------------------------------------------
# Parameter construction (PyTorch layouts) + repacking for the fused kernel
# ----------------------------------------------------------------------------
def init_params(key, in_ch, out_ch):
    """Synthetic parameters in PyTorch layouts: Conv2d weight OIHW,
    ConvTranspose2d weight IOHW, BatchNorm2d (gamma, beta, mean, var)."""
    mid = out_ch * 2

    def block(k, w_shape, cout):
        kw, kb, kg, kbe, km, kv = jax.random.split(k, 6)
        w = 0.1 * jax.random.normal(kw, w_shape, jnp.float32)
        b = 0.1 * jax.random.normal(kb, (cout,), jnp.float32)
        gamma = 1.0 + 0.1 * jax.random.normal(kg, (cout,), jnp.float32)
        beta = 0.1 * jax.random.normal(kbe, (cout,), jnp.float32)
        mean = 0.1 * jax.random.normal(km, (cout,), jnp.float32)
        var = 1.0 + 0.1 * jnp.abs(jax.random.normal(kv, (cout,), jnp.float32))
        return (w, b, gamma, beta, mean, var)

    k1, k2, k3 = jax.random.split(key, 3)
    return {
        "conv1": block(k1, (mid, in_ch, 3, 3), mid),
        "conv2": block(k2, (mid, mid, 3, 3), mid),
        "deconv": block(k3, (mid, out_ch, 3, 3), out_ch),   # IOHW (torch deconv)
    }


def _build_polyphase_weight(wd):
    """wd: (3, 3, Cin, Cout) direct-conv taps on the zero-dilated input.
    Returns (4*Cin, 4*Cout): row blocks = 2x2 input neighborhood
    [h[a,b], h[a,b+1], h[a+1,b], h[a+1,b+1]]; column blocks = output parity phases
    [(2a,2b), (2a,2b+1), (2a+1,2b), (2a+1,2b+1)]."""
    cin, cout = wd.shape[2], wd.shape[3]
    z = jnp.zeros((cin, cout), wd.dtype)
    r_ab = jnp.concatenate([wd[1, 1], wd[1, 0], wd[0, 1], wd[0, 0]], axis=1)
    r_ab1 = jnp.concatenate([z, wd[1, 2], z, wd[0, 2]], axis=1)
    r_a1b = jnp.concatenate([z, z, wd[2, 1], wd[2, 0]], axis=1)
    r_a1b1 = jnp.concatenate([z, z, z, wd[2, 2]], axis=1)
    return jnp.concatenate([r_ab, r_ab1, r_a1b, r_a1b1], axis=0)


def prepare_kernel_params(nat, eps=1e-5, compute_dtype=jnp.float32):
    """Fold inference BatchNorm + conv bias into (scaled weights, shift) and repack
    into the layouts the fused kernel consumes.  Use compute_dtype=jnp.bfloat16 on
    v6e/v7x (halves DMA/VMEM for the MXU operands; accumulation stays float32)."""

    def fold(w_hwio, b, gamma, beta, mean, var):
        s = gamma / jnp.sqrt(var + eps)                    # per-output-channel scale
        return w_hwio * s[None, None, None, :], (b - mean) * s + beta

    def conv_block(p):
        w_oihw, b, gamma, beta, mean, var = p
        w = jnp.transpose(w_oihw, (2, 3, 1, 0))            # OIHW -> HWIO
        w, shift = fold(w, b, gamma, beta, mean, var)
        kh, kw, cin, cout = w.shape
        return w.reshape(kh * kw * cin, cout).astype(compute_dtype), shift

    w1, b1 = conv_block(nat["conv1"])
    w2, b2 = conv_block(nat["conv2"])

    # ConvTranspose2d weight (IOHW) -> equivalent direct-conv taps on the
    # zero-dilated input: flip both spatial dims, move channels to HWIO.
    w_iohw, b, gamma, beta, mean, var = nat["deconv"]
    wd = jnp.transpose(w_iohw[:, :, ::-1, ::-1], (2, 3, 0, 1))   # (3, 3, mid, out)
    wd, shift_d = fold(wd, b, gamma, beta, mean, var)
    wpoly = _build_polyphase_weight(wd).astype(compute_dtype)
    bpoly = jnp.tile(shift_d, 4)                          # same shift for all 4 phases

    return {"w1": w1, "b1": b1, "w2": w2, "b2": b2, "wd": wpoly, "bd": bpoly}


# ----------------------------------------------------------------------------
# Pure-XLA reference (validates the polyphase ConvTranspose + BN folding)
# ----------------------------------------------------------------------------
def upsample_layer_reference(nat, x, skip, eps=1e-5):
    def conv_bn_relu(v, p):
        w_oihw, b, gamma, beta, mean, var = p
        w = jnp.transpose(w_oihw, (2, 3, 1, 0))
        y = jax.lax.conv_general_dilated(
            v, w, window_strides=(1, 1), padding="SAME",
            dimension_numbers=("NHWC", "HWIO", "NHWC"))
        y = (y + b - mean) * (gamma / jnp.sqrt(var + eps)) + beta
        return jnp.maximum(y, 0.0)

    h = conv_bn_relu(x, nat["conv1"])
    h = conv_bn_relu(h, nat["conv2"])

    # ConvTranspose2d(k=3, s=2, p=1, output_padding=1) via input dilation.
    w_iohw, b, gamma, beta, mean, var = nat["deconv"]
    w = jnp.transpose(w_iohw[:, :, ::-1, ::-1], (2, 3, 0, 1))
    y = jax.lax.conv_general_dilated(
        h, w, window_strides=(1, 1), padding=((1, 2), (1, 2)),
        lhs_dilation=(2, 2), dimension_numbers=("NHWC", "HWIO", "NHWC"))
    y = (y + b - mean) * (gamma / jnp.sqrt(var + eps)) + beta
    y = jnp.maximum(y, 0.0)
    return jnp.concatenate([y, skip], axis=-1)


if __name__ == "__main__":
    key = jax.random.PRNGKey(0)
    k_x, k_skip, k_p = jax.random.split(key, 3)

    N, H, W = 2, 16, 16
    in_ch, out_ch = 4, 4

    x = jax.random.normal(k_x, (N, H, W, in_ch), jnp.float32)
    skip = jax.random.normal(k_skip, (N, 2 * H, 2 * W, out_ch), jnp.float32)

    nat = init_params(k_p, in_ch, out_ch)
    params = prepare_kernel_params(nat)          # compute_dtype=jnp.bfloat16 on v6e/v7x

    fwd = jax.jit(upsample_layer_forward)
    y = jax.block_until_ready(fwd(params, x, skip))

    assert y.shape == (N, 2 * H, 2 * W, 2 * out_ch), y.shape
    assert y.dtype == jnp.float32
    assert bool(jnp.all(jnp.isfinite(y)))

    # Numerical check vs. a pure-XLA reference of the same module (covers the
    # polyphase ConvTranspose equivalence and the BN folding). Tolerance is loose
    # to accommodate MXU multi-pass f32 precision; structural bugs are O(1) errors.
    y_ref = jax.block_until_ready(upsample_layer_reference(nat, x, skip))
    max_err = float(jnp.max(jnp.abs(y - y_ref)))
    assert max_err < 5e-2, f"mismatch vs reference: max abs err = {max_err}"

    print("KERNEL_OK")
</pallas_src>

<mosaic_0001>
module attributes {stable_mosaic.version = 11 : i64} {
  func.func @_upsample_layer_kernel(%arg0: i32, %arg1: memref<1x16x16x4xf32, #tpu.memory_space<vmem>>, %arg2: memref<1x32x16x8xf32, #tpu.memory_space<vmem>>, %arg3: memref<36x8xf32, #tpu.memory_space<vmem>>, %arg4: memref<1x8xf32, #tpu.memory_space<vmem>>, %arg5: memref<72x8xf32, #tpu.memory_space<vmem>>, %arg6: memref<1x8xf32, #tpu.memory_space<vmem>>, %arg7: memref<32x16xf32, #tpu.memory_space<vmem>>, %arg8: memref<1x16xf32, #tpu.memory_space<vmem>>, %arg9: memref<1x32x16x16xf32, #tpu.memory_space<vmem>>) attributes {dimension_semantics = [#tpu.dimension_semantics<parallel>], iteration_bounds = array<i64: 2>, scalar_prefetch = 0 : i64, scratch_operands = 0 : i64, tpu.core_type = #tpu.core_type<tc>, window_params = [{transform_indices = @transform_0, window_bounds = array<i64: 1, 16, 16, 4>}, {transform_indices = @transform_1, window_bounds = array<i64: 1, 32, 16, 8>}, {pipeline_mode = #tpu.pipeline_mode<synchronous>, transform_indices = @transform_2, window_bounds = array<i64: 36, 8>}, {pipeline_mode = #tpu.pipeline_mode<synchronous>, transform_indices = @transform_3, window_bounds = array<i64: 1, 8>}, {pipeline_mode = #tpu.pipeline_mode<synchronous>, transform_indices = @transform_4, window_bounds = array<i64: 72, 8>}, {pipeline_mode = #tpu.pipeline_mode<synchronous>, transform_indices = @transform_5, window_bounds = array<i64: 1, 8>}, {pipeline_mode = #tpu.pipeline_mode<synchronous>, transform_indices = @transform_6, window_bounds = array<i64: 32, 16>}, {pipeline_mode = #tpu.pipeline_mode<synchronous>, transform_indices = @transform_7, window_bounds = array<i64: 1, 16>}, {transform_indices = @transform_8, window_bounds = array<i64: 1, 32, 16, 16>}]} {
    %c0 = arith.constant 0 : index
    %c0_0 = arith.constant 0 : index
    %c0_1 = arith.constant 0 : index
    %c0_2 = arith.constant 0 : index
    %0 = vector.load %arg1[%c0, %c0_0, %c0_1, %c0_2] : memref<1x16x16x4xf32, #tpu.memory_space<vmem>>, vector<1x16x16x4xf32>
    %1 = vector.shape_cast %0 : vector<1x16x16x4xf32> to vector<16x16x4xf32>
    %c0_3 = arith.constant 0 : index
    %c0_4 = arith.constant 0 : index
    %2 = vector.load %arg3[%c0_3, %c0_4] : memref<36x8xf32, #tpu.memory_space<vmem>>, vector<36x8xf32>
    %c0_5 = arith.constant 0 : index
    %c0_6 = arith.constant 0 : index
    %3 = vector.load %arg4[%c0_5, %c0_6] : memref<1x8xf32, #tpu.memory_space<vmem>>, vector<1x8xf32>
    %cst = arith.constant 0.000000e+00 : f32
    %4 = vector.broadcast %cst : f32 to vector<1x16x4xf32>
    %cst_7 = arith.constant 0.000000e+00 : f32
    %5 = vector.broadcast %cst_7 : f32 to vector<18x1x4xf32>
    %6 = tpu.concatenate %4, %1, %4 in 0 : vector<1x16x4xf32>, vector<16x16x4xf32>, vector<1x16x4xf32> -> vector<18x16x4xf32>
    %7 = tpu.concatenate %5, %6, %5 in 1 : vector<18x1x4xf32>, vector<18x16x4xf32>, vector<18x1x4xf32> -> vector<18x18x4xf32>
    %8 = vector.extract_strided_slice %7 {offsets = [0, 0, 0], sizes = [16, 16, 4], strides = [1, 1, 1]} : vector<18x18x4xf32> to vector<16x16x4xf32>
    %9 = vector.extract_strided_slice %7 {offsets = [0, 1, 0], sizes = [16, 16, 4], strides = [1, 1, 1]} : vector<18x18x4xf32> to vector<16x16x4xf32>
    %10 = vector.extract_strided_slice %7 {offsets = [0, 2, 0], sizes = [16, 16, 4], strides = [1, 1, 1]} : vector<18x18x4xf32> to vector<16x16x4xf32>
    %11 = vector.extract_strided_slice %7 {offsets = [1, 0, 0], sizes = [16, 16, 4], strides = [1, 1, 1]} : vector<18x18x4xf32> to vector<16x16x4xf32>
    %12 = vector.extract_strided_slice %7 {offsets = [1, 1, 0], sizes = [16, 16, 4], strides = [1, 1, 1]} : vector<18x18x4xf32> to vector<16x16x4xf32>
    %13 = vector.extract_strided_slice %7 {offsets = [1, 2, 0], sizes = [16, 16, 4], strides = [1, 1, 1]} : vector<18x18x4xf32> to vector<16x16x4xf32>
    %14 = vector.extract_strided_slice %7 {offsets = [2, 0, 0], sizes = [16, 16, 4], strides = [1, 1, 1]} : vector<18x18x4xf32> to vector<16x16x4xf32>
    %15 = vector.extract_strided_slice %7 {offsets = [2, 1, 0], sizes = [16, 16, 4], strides = [1, 1, 1]} : vector<18x18x4xf32> to vector<16x16x4xf32>
    %16 = vector.extract_strided_slice %7 {offsets = [2, 2, 0], sizes = [16, 16, 4], strides = [1, 1, 1]} : vector<18x18x4xf32> to vector<16x16x4xf32>
    %17 = tpu.concatenate %8, %9, %10, %11, %12, %13, %14, %15, %16 in 2 : vector<16x16x4xf32>, vector<16x16x4xf32>, vector<16x16x4xf32>, vector<16x16x4xf32>, vector<16x16x4xf32>, vector<16x16x4xf32>, vector<16x16x4xf32>, vector<16x16x4xf32>, vector<16x16x4xf32> -> vector<16x16x36xf32>
    %18 = vector.shape_cast %17 : vector<16x16x36xf32> to vector<256x36xf32>
    %cst_8 = arith.constant dense<0.000000e+00> : vector<256x8xf32>
    %19 = tpu.matmul %18, %2, %cst_8 {dimension_numbers = #tpu.dot_dimension_numbers<[1], [0], [0], [1], [0, 0, 1, 1], [], []>} : vector<256x36xf32>, vector<36x8xf32>, vector<256x8xf32> -> vector<256x8xf32>
    %20 = vector.broadcast %3 : vector<1x8xf32> to vector<256x8xf32>
    %21 = arith.addf %19, %20 : vector<256x8xf32>
    %cst_9 = arith.constant 0.000000e+00 : f32
    %22 = vector.broadcast %cst_9 : f32 to vector<256x8xf32>
    %23 = arith.maximumf %21, %22 : vector<256x8xf32>
    %24 = vector.shape_cast %23 : vector<256x8xf32> to vector<16x16x8xf32>
    %c0_10 = arith.constant 0 : index
    %c0_11 = arith.constant 0 : index
    %25 = vector.load %arg5[%c0_10, %c0_11] : memref<72x8xf32, #tpu.memory_space<vmem>>, vector<72x8xf32>
    %c0_12 = arith.constant 0 : index
    %c0_13 = arith.constant 0 : index
    %26 = vector.load %arg6[%c0_12, %c0_13] : memref<1x8xf32, #tpu.memory_space<vmem>>, vector<1x8xf32>
    %cst_14 = arith.constant 0.000000e+00 : f32
    %27 = vector.broadcast %cst_14 : f32 to vector<1x16x8xf32>
    %cst_15 = arith.constant 0.000000e+00 : f32
    %28 = vector.broadcast %cst_15 : f32 to vector<18x1x8xf32>
    %29 = tpu.concatenate %27, %24, %27 in 0 : vector<1x16x8xf32>, vector<16x16x8xf32>, vector<1x16x8xf32> -> vector<18x16x8xf32>
    %30 = tpu.concatenate %28, %29, %28 in 1 : vector<18x1x8xf32>, vector<18x16x8xf32>, vector<18x1x8xf32> -> vector<18x18x8xf32>
    %31 = vector.extract_strided_slice %30 {offsets = [0, 0, 0], sizes = [16, 16, 8], strides = [1, 1, 1]} : vector<18x18x8xf32> to vector<16x16x8xf32>
    %32 = vector.extract_strided_slice %30 {offsets = [0, 1, 0], sizes = [16, 16, 8], strides = [1, 1, 1]} : vector<18x18x8xf32> to vector<16x16x8xf32>
    %33 = vector.extract_strided_slice %30 {offsets = [0, 2, 0], sizes = [16, 16, 8], strides = [1, 1, 1]} : vector<18x18x8xf32> to vector<16x16x8xf32>
    %34 = vector.extract_strided_slice %30 {offsets = [1, 0, 0], sizes = [16, 16, 8], strides = [1, 1, 1]} : vector<18x18x8xf32> to vector<16x16x8xf32>
    %35 = vector.extract_strided_slice %30 {offsets = [1, 1, 0], sizes = [16, 16, 8], strides = [1, 1, 1]} : vector<18x18x8xf32> to vector<16x16x8xf32>
    %36 = vector.extract_strided_slice %30 {offsets = [1, 2, 0], sizes = [16, 16, 8], strides = [1, 1, 1]} : vector<18x18x8xf32> to vector<16x16x8xf32>
    %37 = vector.extract_strided_slice %30 {offsets = [2, 0, 0], sizes = [16, 16, 8], strides = [1, 1, 1]} : vector<18x18x8xf32> to vector<16x16x8xf32>
    %38 = vector.extract_strided_slice %30 {offsets = [2, 1, 0], sizes = [16, 16, 8], strides = [1, 1, 1]} : vector<18x18x8xf32> to vector<16x16x8xf32>
    %39 = vector.extract_strided_slice %30 {offsets = [2, 2, 0], sizes = [16, 16, 8], strides = [1, 1, 1]} : vector<18x18x8xf32> to vector<16x16x8xf32>
    %40 = tpu.concatenate %31, %32, %33, %34, %35, %36, %37, %38, %39 in 2 : vector<16x16x8xf32>, vector<16x16x8xf32>, vector<16x16x8xf32>, vector<16x16x8xf32>, vector<16x16x8xf32>, vector<16x16x8xf32>, vector<16x16x8xf32>, vector<16x16x8xf32>, vector<16x16x8xf32> -> vector<16x16x72xf32>
    %41 = vector.shape_cast %40 : vector<16x16x72xf32> to vector<256x72xf32>
    %cst_16 = arith.constant dense<0.000000e+00> : vector<256x8xf32>
    %42 = tpu.matmul %41, %25, %cst_16 {dimension_numbers = #tpu.dot_dimension_numbers<[1], [0], [0], [1], [0, 0, 1, 1], [], []>} : vector<256x72xf32>, vector<72x8xf32>, vector<256x8xf32> -> vector<256x8xf32>
    %43 = vector.broadcast %26 : vector<1x8xf32> to vector<256x8xf32>
    %44 = arith.addf %42, %43 : vector<256x8xf32>
    %cst_17 = arith.constant 0.000000e+00 : f32
    %45 = vector.broadcast %cst_17 : f32 to vector<256x8xf32>
    %46 = arith.maximumf %44, %45 : vector<256x8xf32>
    %47 = vector.shape_cast %46 : vector<256x8xf32> to vector<16x16x8xf32>
    %c0_18 = arith.constant 0 : index
    %c0_19 = arith.constant 0 : index
    %48 = vector.load %arg7[%c0_18, %c0_19] : memref<32x16xf32, #tpu.memory_space<vmem>>, vector<32x16xf32>
    %c0_20 = arith.constant 0 : index
    %c0_21 = arith.constant 0 : index
    %49 = vector.load %arg8[%c0_20, %c0_21] : memref<1x16xf32, #tpu.memory_space<vmem>>, vector<1x16xf32>
    %cst_22 = arith.constant 0.000000e+00 : f32
    %50 = vector.broadcast %cst_22 : f32 to vector<1x16x8xf32>
    %cst_23 = arith.constant 0.000000e+00 : f32
    %51 = vector.broadcast %cst_23 : f32 to vector<17x1x8xf32>
    %52 = tpu.concatenate %47, %50 in 0 : vector<16x16x8xf32>, vector<1x16x8xf32> -> vector<17x16x8xf32>
    %53 = tpu.concatenate %52, %51 in 1 : vector<17x16x8xf32>, vector<17x1x8xf32> -> vector<17x17x8xf32>
    %54 = vector.extract_strided_slice %53 {offsets = [0, 0, 0], sizes = [16, 16, 8], strides = [1, 1, 1]} : vector<17x17x8xf32> to vector<16x16x8xf32>
    %55 = vector.extract_strided_slice %53 {offsets = [0, 1, 0], sizes = [16, 16, 8], strides = [1, 1, 1]} : vector<17x17x8xf32> to vector<16x16x8xf32>
    %56 = vector.extract_strided_slice %53 {offsets = [1, 0, 0], sizes = [16, 16, 8], strides = [1, 1, 1]} : vector<17x17x8xf32> to vector<16x16x8xf32>
    %57 = vector.extract_strided_slice %53 {offsets = [1, 1, 0], sizes = [16, 16, 8], strides = [1, 1, 1]} : vector<17x17x8xf32> to vector<16x16x8xf32>
    %58 = tpu.concatenate %54, %55, %56, %57 in 2 : vector<16x16x8xf32>, vector<16x16x8xf32>, vector<16x16x8xf32>, vector<16x16x8xf32> -> vector<16x16x32xf32>
    %59 = vector.shape_cast %58 : vector<16x16x32xf32> to vector<256x32xf32>
    %cst_24 = arith.constant dense<0.000000e+00> : vector<256x16xf32>
    %60 = tpu.matmul %59, %48, %cst_24 {dimension_numbers = #tpu.dot_dimension_numbers<[1], [0], [0], [1], [0, 0, 1, 1], [], []>} : vector<256x32xf32>, vector<32x16xf32>, vector<256x16xf32> -> vector<256x16xf32>
    %61 = vector.broadcast %49 : vector<1x16xf32> to vector<256x16xf32>
    %62 = arith.addf %60, %61 : vector<256x16xf32>
    %cst_25 = arith.constant 0.000000e+00 : f32
    %63 = vector.broadcast %cst_25 : f32 to vector<256x16xf32>
    %64 = arith.maximumf %62, %63 : vector<256x16xf32>
    %65 = vector.shape_cast %64 : vector<256x16xf32> to vector<16x16x16xf32>
    %66 = vector.extract_strided_slice %65 {offsets = [0, 0, 0], sizes = [16, 16, 8], strides = [1, 1, 1]} : vector<16x16x16xf32> to vector<16x16x8xf32>
    %67 = vector.shape_cast %66 : vector<16x16x8xf32> to vector<16x1x16x8xf32>
    %68 = vector.extract_strided_slice %65 {offsets = [0, 0, 8], sizes = [16, 16, 8], strides = [1, 1, 1]} : vector<16x16x16xf32> to vector<16x16x8xf32>
    %69 = vector.shape_cast %68 : vector<16x16x8xf32> to vector<16x1x16x8xf32>
    %70 = tpu.concatenate %67, %69 in 1 : vector<16x1x16x8xf32>, vector<16x1x16x8xf32> -> vector<16x2x16x8xf32>
    %71 = vector.shape_cast %70 : vector<16x2x16x8xf32> to vector<32x16x8xf32>
    %c0_26 = arith.constant 0 : index
    %c0_27 = arith.constant 0 : index
    %c0_28 = arith.constant 0 : index
    %c0_29 = arith.constant 0 : index
    %72 = vector.load %arg2[%c0_26, %c0_27, %c0_28, %c0_29] : memref<1x32x16x8xf32, #tpu.memory_space<vmem>>, vector<1x32x16x8xf32>
    %73 = vector.shape_cast %72 : vector<1x32x16x8xf32> to vector<32x16x8xf32>
    %74 = vector.extract_strided_slice %71 {offsets = [0, 0, 0], sizes = [32, 16, 4], strides = [1, 1, 1]} : vector<32x16x8xf32> to vector<32x16x4xf32>
    %75 = vector.extract_strided_slice %73 {offsets = [0, 0, 0], sizes = [32, 16, 4], strides = [1, 1, 1]} : vector<32x16x8xf32> to vector<32x16x4xf32>
    %76 = vector.extract_strided_slice %71 {offsets = [0, 0, 4], sizes = [32, 16, 4], strides = [1, 1, 1]} : vector<32x16x8xf32> to vector<32x16x4xf32>
    %77 = vector.extract_strided_slice %73 {offsets = [0, 0, 4], sizes = [32, 16, 4], strides = [1, 1, 1]} : vector<32x16x8xf32> to vector<32x16x4xf32>
    %78 = tpu.concatenate %74, %75, %76, %77 in 2 : vector<32x16x4xf32>, vector<32x16x4xf32>, vector<32x16x4xf32>, vector<32x16x4xf32> -> vector<32x16x16xf32>
    %79 = vector.shape_cast %78 : vector<32x16x16xf32> to vector<1x32x16x16xf32>
    %c0_30 = arith.constant 0 : index
    %c0_31 = arith.constant 0 : index
    %c0_32 = arith.constant 0 : index
    %c0_33 = arith.constant 0 : index
    %80 = vector.load %arg9[%c0_30, %c0_31, %c0_32, %c0_33] : memref<1x32x16x16xf32, #tpu.memory_space<vmem>>, vector<1x32x16x16xf32>
    tpu.vector_store %arg9[%c0_30, %c0_31, %c0_32, %c0_33], %79 {strides = array<i32>} : memref<1x32x16x16xf32, #tpu.memory_space<vmem>>, vector<1x32x16x16xf32>,
    return
  }
  func.func @transform_0(%arg0: i32) -> (i32, i32, i32, i32) {
    %c0_i32 = arith.constant 0 : i32
    %c0_i32_0 = arith.constant 0 : i32
    %c0_i32_1 = arith.constant 0 : i32
    %c0_i32_2 = arith.constant 0 : i32
    return %arg0, %c0_i32, %c0_i32_0, %c0_i32_1 : i32, i32, i32, i32
  }
  func.func @transform_1(%arg0: i32) -> (i32, i32, i32, i32) {
    %c0_i32 = arith.constant 0 : i32
    %c0_i32_0 = arith.constant 0 : i32
    %c0_i32_1 = arith.constant 0 : i32
    %c0_i32_2 = arith.constant 0 : i32
    return %arg0, %c0_i32, %c0_i32_0, %c0_i32_1 : i32, i32, i32, i32
  }
  func.func @transform_2(%arg0: i32) -> (i32, i32) {
    %c0_i32 = arith.constant 0 : i32
    %c0_i32_0 = arith.constant 0 : i32
    %c0_i32_1 = arith.constant 0 : i32
    return %c0_i32, %c0_i32_0 : i32, i32
  }
  func.func @transform_3(%arg0: i32) -> (i32, i32) {
    %c0_i32 = arith.constant 0 : i32
    %c0_i32_0 = arith.constant 0 : i32
    %c0_i32_1 = arith.constant 0 : i32
    return %c0_i32, %c0_i32_0 : i32, i32
  }
  func.func @transform_4(%arg0: i32) -> (i32, i32) {
    %c0_i32 = arith.constant 0 : i32
    %c0_i32_0 = arith.constant 0 : i32
    %c0_i32_1 = arith.constant 0 : i32
    return %c0_i32, %c0_i32_0 : i32, i32
  }
  func.func @transform_5(%arg0: i32) -> (i32, i32) {
    %c0_i32 = arith.constant 0 : i32
    %c0_i32_0 = arith.constant 0 : i32
    %c0_i32_1 = arith.constant 0 : i32
    return %c0_i32, %c0_i32_0 : i32, i32
  }
  func.func @transform_6(%arg0: i32) -> (i32, i32) {
    %c0_i32 = arith.constant 0 : i32
    %c0_i32_0 = arith.constant 0 : i32
    %c0_i32_1 = arith.constant 0 : i32
    return %c0_i32, %c0_i32_0 : i32, i32
  }
  func.func @transform_7(%arg0: i32) -> (i32, i32) {
    %c0_i32 = arith.constant 0 : i32
    %c0_i32_0 = arith.constant 0 : i32
    %c0_i32_1 = arith.constant 0 : i32
    return %c0_i32, %c0_i32_0 : i32, i32
  }
  func.func @transform_8(%arg0: i32) -> (i32, i32, i32, i32) {
    %c0_i32 = arith.constant 0 : i32
    %c0_i32_0 = arith.constant 0 : i32
    %c0_i32_1 = arith.constant 0 : i32
    %c0_i32_2 = arith.constant 0 : i32
    return %arg0, %c0_i32, %c0_i32_0, %c0_i32_1 : i32, i32, i32, i32
  }
}

</mosaic_0001>

<llo_original>
// kernel: upsample_layer_forward.1
$region0: #{upsample_layer_forward.1}
  #allocation0 [shape = 'u32[]', space=smem, size = 0x4, offset = 0x4, fixed_abs, tag = 'smem constant byte address 0x4 - core index']
  #allocation1 [shape = 'u32[144,128]{1,0:T(1,128)}', space=vmem, size = 0x12000, scoped, tag = 'internal scratch']
  %s0 = inlined_call_operand.vmem [shape: f32[2,16,16,4], index: 0, kind: input, shape index: {}]
  %s1 = inlined_call_operand.vmem [shape: f32[2,32,16,8], index: 1, kind: input, shape index: {}]
  %s2 = inlined_call_operand.vmem [shape: f32[36,8], index: 2, kind: input, shape index: {}]
  %s3 = inlined_call_operand.vmem [shape: f32[1,8], index: 3, kind: input, shape index: {}]
  %s4 = inlined_call_operand.vmem [shape: f32[72,8], index: 4, kind: input, shape index: {}]
  %s5 = inlined_call_operand.vmem [shape: f32[1,8], index: 5, kind: input, shape index: {}]
  %s6 = inlined_call_operand.vmem [shape: f32[32,16], index: 6, kind: input, shape index: {}]
  %s7 = inlined_call_operand.vmem [shape: f32[1,16], index: 7, kind: input, shape index: {}]
  %s8 = inlined_call_operand.vmem [shape: f32[2,32,16,16], index: 8, kind: output, shape index: {}]
  %s9 = sld [smem:[#allocation0]]
  $region65: #{upsample_layer_forward.1} parent=0
    _
  %s11 = ssub.s32 1, %s9
  %s12 = scalar_select 0, %s11, %s9
  loop: start=0, step=1, limit=4
  $region2: #{upsample_layer_forward.1} parent=0 // loop_pre_header
    _
  $region3: #{upsample_layer_forward.1} parent=0 // loop_header
    %s14 = sphi 0, %s18
    %p15 = scmp.ge.s32.totalorder %s14, 4
    %s24 = sphi 0, %s26
    %s27 = sphi 0, %s24
    %s28 = sphi 0, %s27
    %s44 = sphi 0, %s28
    %s50 = sphi 0, %s52
    %s53 = sphi 0, %s50
    %s54 = sphi 0, %s53
    %s70 = sphi 0, %s54
    %s74 = sphi 0, %s74
    %s76 = sphi 0, %s74
    %s77 = sphi 0, %s76
    %s91 = sphi 0, %s77
    %s95 = sphi 0, %s95
    %s97 = sphi 0, %s95
    %s98 = sphi 0, %s97
    %s112 = sphi 0, %s98
    %s116 = sphi 0, %s116
    %s118 = sphi 0, %s116
    %s119 = sphi 0, %s118
    %s133 = sphi 0, %s119
    %s137 = sphi 0, %s137
    %s139 = sphi 0, %s137
    %s140 = sphi 0, %s139
    %s154 = sphi 0, %s140
    %s158 = sphi 0, %s158
    %s160 = sphi 0, %s158
    %s161 = sphi 0, %s160
    %s175 = sphi 0, %s161
    %s179 = sphi 0, %s179
    %s181 = sphi 0, %s179
    %s182 = sphi 0, %s181
    %s196 = sphi 0, %s182
    %s202 = sphi 0, %s204
    %s205 = sphi 0, %s202
    %s206 = sphi 0, %s205
    %s222 = sphi 0, %s206
  $region4: #{upsample_layer_forward.1} parent=0 // loop_header_branch
    %17 = sbr.rel (%p15) target = $region8
  $region5: #{upsample_layer_forward.1} parent=0 // loop_body
    %s19 = ssub.s32 %s14, 1
    %s20 = ssub.s32 %s14, 2
    %s21 = sadd.s32 %s14, 1
    %s22 = ssub.s32 %s14, %s21
    %p23 = scmp.eq.s32.totalorder %s22, 0
    %s25 = sadd.s32 %s24, 1
    %s26 = scalar_select %p23, %s24, %s25
    %p29 = pneg %p23
    %p30 = scmp.eq.s32.totalorder %s14, 1
    %p31 = por %p29, %p30
    %p32 = scmp.ne.s32.totalorder %s24, %s27
    %p33 = scmp.eq.s32.totalorder %s14, 0
    %p34 = por %p32, %p33
    %p35 = scmp.ne.s32.totalorder %s24, %s27
    %p36 = scmp.eq.s32.totalorder %s19, 1
    %p37 = por %p35, %p36
    %p38 = scmp.ne.s32.totalorder %s27, %s28
    %p39 = scmp.eq.s32.totalorder %s19, 0
    %p40 = por %p38, %p39
    %p41 = scmp.ne.s32.totalorder %s27, %s28
    %p42 = scmp.eq.s32.totalorder %s20, 1
    %p43 = por %p41, %p42
    %p45 = scmp.ne.s32.totalorder %s28, %s44
    %p46 = scmp.eq.s32.totalorder %s20, 0
    %p47 = por %p45, %p46
    %s48 = ssub.s32 %s14, %s21
    %p49 = scmp.eq.s32.totalorder %s48, 0
    %s51 = sadd.s32 %s50, 1
    %s52 = scalar_select %p49, %s50, %s51
    %p55 = pneg %p49
    %p56 = scmp.eq.s32.totalorder %s14, 1
    %p57 = por %p55, %p56
    %p58 = scmp.ne.s32.totalorder %s50, %s53
    %p59 = scmp.eq.s32.totalorder %s14, 0
    %p60 = por %p58, %p59
    %p61 = scmp.ne.s32.totalorder %s50, %s53
    %p62 = scmp.eq.s32.totalorder %s19, 1
    %p63 = por %p61, %p62
    %p64 = scmp.ne.s32.totalorder %s53, %s54
    %p65 = scmp.eq.s32.totalorder %s19, 0
    %p66 = por %p64, %p65
    %p67 = scmp.ne.s32.totalorder %s53, %s54
    %p68 = scmp.eq.s32.totalorder %s20, 1
    %p69 = por %p67, %p68
    %p71 = scmp.ne.s32.totalorder %s54, %s70
    %p72 = scmp.eq.s32.totalorder %s20, 0
    %p73 = por %p71, %p72
    %s75 = sadd.s32 %s74, 1
    %p78 = scmp.eq.s32.totalorder %s14, 1
    %p79 = scmp.ne.s32.totalorder %s74, %s76
    %p80 = scmp.eq.s32.totalorder %s14, 0
    %p81 = por %p79, %p80
    %p82 = scmp.ne.s32.totalorder %s74, %s76
    %p83 = scmp.eq.s32.totalorder %s19, 1
    %p84 = por %p82, %p83
    %p85 = scmp.ne.s32.totalorder %s76, %s77
    %p86 = scmp.eq.s32.totalorder %s19, 0
    %p87 = por %p85, %p86
    %p88 = scmp.ne.s32.totalorder %s76, %s77
    %p89 = scmp.eq.s32.totalorder %s20, 1
    %p90 = por %p88, %p89
    %p92 = scmp.ne.s32.totalorder %s77, %s91
    %p93 = scmp.eq.s32.totalorder %s20, 0
    %p94 = por %p92, %p93
    %s96 = sadd.s32 %s95, 1
    %p99 = scmp.eq.s32.totalorder %s14, 1
    %p100 = scmp.ne.s32.totalorder %s95, %s97
    %p101 = scmp.eq.s32.totalorder %s14, 0
    %p102 = por %p100, %p101
    %p103 = scmp.ne.s32.totalorder %s95, %s97
    %p104 = scmp.eq.s32.totalorder %s19, 1
    %p105 = por %p103, %p104
    %p106 = scmp.ne.s32.totalorder %s97, %s98
    %p107 = scmp.eq.s32.totalorder %s19, 0
    %p108 = por %p106, %p107
    %p109 = scmp.ne.s32.totalorder %s97, %s98
    %p110 = scmp.eq.s32.totalorder %s20, 1
    %p111 = por %p109, %p110
    %p113 = scmp.ne.s32.totalorder %s98, %s112
    %p114 = scmp.eq.s32.totalorder %s20, 0
    %p115 = por %p113, %p114
    %s117 = sadd.s32 %s116, 1
    %p120 = scmp.eq.s32.totalorder %s14, 1
    %p121 = scmp.ne.s32.totalorder %s116, %s118
    %p122 = scmp.eq.s32.totalorder %s14, 0
    %p123 = por %p121, %p122
    %p124 = scmp.ne.s32.totalorder %s116, %s118
    %p125 = scmp.eq.s32.totalorder %s19, 1
    %p126 = por %p124, %p125
    %p127 = scmp.ne.s32.totalorder %s118, %s119
    %p128 = scmp.eq.s32.totalorder %s19, 0
    %p129 = por %p127, %p128
    %p130 = scmp.ne.s32.totalorder %s118, %s119
    %p131 = scmp.eq.s32.totalorder %s20, 1
    %p132 = por %p130, %p131
    %p134 = scmp.ne.s32.totalorder %s119, %s133
    %p135 = scmp.eq.s32.totalorder %s20, 0
    %p136 = por %p134, %p135
    %s138 = sadd.s32 %s137, 1
    %p141 = scmp.eq.s32.totalorder %s14, 1
    %p142 = scmp.ne.s32.totalorder %s137, %s139
    %p143 = scmp.eq.s32.totalorder %s14, 0
    %p144 = por %p142, %p143
    %p145 = scmp.ne.s32.totalorder %s137, %s139
    %p146 = scmp.eq.s32.totalorder %s19, 1
    %p147 = por %p145, %p146
    %p148 = scmp.ne.s32.totalorder %s139, %s140
    %p149 = scmp.eq.s32.totalorder %s19, 0
    %p150 = por %p148, %p149
    %p151 = scmp.ne.s32.totalorder %s139, %s140
    %p152 = scmp.eq.s32.totalorder %s20, 1
    %p153 = por %p151, %p152
    %p155 = scmp.ne.s32.totalorder %s140, %s154
    %p156 = scmp.eq.s32.totalorder %s20, 0
    %p157 = por %p155, %p156
    %s159 = sadd.s32 %s158, 1
    %p162 = scmp.eq.s32.totalorder %s14, 1
    %p163 = scmp.ne.s32.totalorder %s158, %s160
    %p164 = scmp.eq.s32.totalorder %s14, 0
    %p165 = por %p163, %p164
    %p166 = scmp.ne.s32.totalorder %s158, %s160
    %p167 = scmp.eq.s32.totalorder %s19, 1
    %p168 = por %p166, %p167
    %p169 = scmp.ne.s32.totalorder %s160, %s161
    %p170 = scmp.eq.s32.totalorder %s19, 0
    %p171 = por %p169, %p170
    %p172 = scmp.ne.s32.totalorder %s160, %s161
    %p173 = scmp.eq.s32.totalorder %s20, 1
    %p174 = por %p172, %p173
    %p176 = scmp.ne.s32.totalorder %s161, %s175
    %p177 = scmp.eq.s32.totalorder %s20, 0
    %p178 = por %p176, %p177
    %s180 = sadd.s32 %s179, 1
    %p183 = scmp.eq.s32.totalorder %s14, 1
    %p184 = scmp.ne.s32.totalorder %s179, %s181
    %p185 = scmp.eq.s32.totalorder %s14, 0
    %p186 = por %p184, %p185
    %p187 = scmp.ne.s32.totalorder %s179, %s181
    %p188 = scmp.eq.s32.totalorder %s19, 1
    %p189 = por %p187, %p188
    %p190 = scmp.ne.s32.totalorder %s181, %s182
    %p191 = scmp.eq.s32.totalorder %s19, 0
    %p192 = por %p190, %p191
    %p193 = scmp.ne.s32.totalorder %s181, %s182
    %p194 = scmp.eq.s32.totalorder %s20, 1
    %p195 = por %p193, %p194
    %p197 = scmp.ne.s32.totalorder %s182, %s196
    %p198 = scmp.eq.s32.totalorder %s20, 0
    %p199 = por %p197, %p198
    %s200 = ssub.s32 %s14, %s21
    %p201 = scmp.eq.s32.totalorder %s200, 0
    %s203 = sadd.s32 %s202, 1
    %s204 = scalar_select %p201, %s202, %s203
    %p207 = pneg %p201
    %p208 = scmp.eq.s32.totalorder %s14, 1
    %p209 = por %p207, %p208
    %p210 = scmp.ne.s32.totalorder %s202, %s205
    %p211 = scmp.eq.s32.totalorder %s14, 0
    %p212 = por %p210, %p211
    %p213 = scmp.ne.s32.totalorder %s202, %s205
    %p214 = scmp.eq.s32.totalorder %s19, 1
    %p215 = por %p213, %p214
    %p216 = scmp.ne.s32.totalorder %s205, %s206
    %p217 = scmp.eq.s32.totalorder %s19, 0
    %p218 = por %p216, %p217
    %p219 = scmp.ne.s32.totalorder %s205, %s206
    %p220 = scmp.eq.s32.totalorder %s20, 1
    %p221 = por %p219, %p220
    %p223 = scmp.ne.s32.totalorder %s206, %s222
    %p224 = scmp.eq.s32.totalorder %s20, 0
    %p225 = por %p223, %p224
    %p226 = scmp.le.s32.totalorder 1, %s14
    %p227 = scmp.lt.s32.totalorder %s14, 3
    %p228 = pnand %p226, %p227
    %p229 = pneg %p228
    // Predicated region
    $region9: #{upsample_layer_forward.1} parent=5 // pred_check
      _
    $region10: #{upsample_layer_forward.1} parent=5 // pred_check_branch
      %231 = sbr.rel (%p228) target = $region12
    $region11: #{upsample_layer_forward.1} parent=5 // pred_region
      %s232 = ssub.s32 %s14, 1
      // Predicated region
      $region13: #{upsample_layer_forward.1} parent=11 // pred_check
        %p233 = pneg %p87
      $region14: #{upsample_layer_forward.1} parent=11 // pred_check_branch
        %235 = sbr.rel (%p233) target = $region16
      $region15: #{upsample_layer_forward.1} parent=11 // pred_region
        _
      $region16: #{upsample_layer_forward.1} parent=11 // pred_fallthru
        _
      // Predicated region
      $region17: #{upsample_layer_forward.1} parent=11 // pred_check
        %p236 = pneg %p108
      $region18: #{upsample_layer_forward.1} parent=11 // pred_check_branch
        %238 = sbr.rel (%p236) target = $region20
      $region19: #{upsample_layer_forward.1} parent=11 // pred_region
        _
      $region20: #{upsample_layer_forward.1} parent=11 // pred_fallthru
        _
      // Predicated region
      $region21: #{upsample_layer_forward.1} parent=11 // pred_check
        %p239 = pneg %p129
      $region22: #{upsample_layer_forward.1} parent=11 // pred_check_branch
        %241 = sbr.rel (%p239) target = $region24
      $region23: #{upsample_layer_forward.1} parent=11 // pred_region
        _
      $region24: #{upsample_layer_forward.1} parent=11 // pred_fallthru
        _
      // Predicated region
      $region25: #{upsample_layer_forward.1} parent=11 // pred_check
        %p242 = pneg %p150
      $region26: #{upsample_layer_forward.1} parent=11 // pred_check_branch
        %244 = sbr.rel (%p242) target = $region28
      $region27: #{upsample_layer_forward.1} parent=11 // pred_region
        _
      $region28: #{upsample_layer_forward.1} parent=11 // pred_fallthru
        _
      // Predicated region
      $region29: #{upsample_layer_forward.1} parent=11 // pred_check
        %p245 = pneg %p171
      $region30: #{upsample_layer_forward.1} parent=11 // pred_check_branch
        %247 = sbr.rel (%p245) target = $region32
      $region31: #{upsample_layer_forward.1} parent=11 // pred_region
        _
      $region32: #{upsample_layer_forward.1} parent=11 // pred_fallthru
        _
      // Predicated region
      $region33: #{upsample_layer_forward.1} parent=11 // pred_check
        %p248 = pneg %p192
      $region34: #{upsample_layer_forward.1} parent=11 // pred_check_branch
        %250 = sbr.rel (%p248) target = $region36
      $region35: #{upsample_layer_forward.1} parent=11 // pred_region
        _
      $region36: #{upsample_layer_forward.1} parent=11 // pred_fallthru
        _
    $region12: #{upsample_layer_forward.1} parent=5 // pred_fallthru
      _
    %p251 = scmp.lt.s32.totalorder %s14, 2
    // Predicated region
    $region37: #{upsample_layer_forward.1} parent=5 // pred_check
      %p252 = pneg %p251
    $region38: #{upsample_layer_forward.1} parent=5 // pred_check_branch
      %254 = sbr.rel (%p252) target = $region40
    $region39: #{upsample_layer_forward.1} parent=5 // pred_region
      // Predicated region
      $region41: #{upsample_layer_forward.1} parent=39 // pred_check
        %p255 = pneg %p34
      $region42: #{upsample_layer_forward.1} parent=39 // pred_check_branch
        %257 = sbr.rel (%p255) target = $region44
      $region43: #{upsample_layer_forward.1} parent=39 // pred_region
        %p258 = scmp.lt.s32.totalorder %s14, 1
        %s259 = scalar_select %p258, %s14, 1
        %s260 = smul.addr %s259, 32
        %s261 = smul.addr %s260, 8
        %s262 = scalar_lea.vmem %s0, %s261
      $region44: #{upsample_layer_forward.1} parent=39 // pred_fallthru
        _
      // Predicated region
      $region45: #{upsample_layer_forward.1} parent=39 // pred_check
        %p263 = pneg %p60
      $region46: #{upsample_layer_forward.1} parent=39 // pred_check_branch
        %265 = sbr.rel (%p263) target = $region48
      $region47: #{upsample_layer_forward.1} parent=39 // pred_region
        %p266 = scmp.lt.s32.totalorder %s14, 1
        %s267 = scalar_select %p266, %s14, 1
        %s268 = smul.addr %s267, 64
        %s269 = smul.addr %s268, 8
        %s270 = scalar_lea.vmem %s1, %s269
      $region48: #{upsample_layer_forward.1} parent=39 // pred_fallthru
        _
    $region40: #{upsample_layer_forward.1} parent=5 // pred_fallthru
      _
    %p271 = scmp.le.s32.totalorder 1, %s14
    %p272 = scmp.lt.s32.totalorder %s14, 3
    %p273 = pnand %p271, %p272
    %p274 = pneg %p273
    // Predicated region
    $region49: #{upsample_layer_forward.1} parent=5 // pred_check
      _
    $region50: #{upsample_layer_forward.1} parent=5 // pred_check_branch
      %276 = sbr.rel (%p273) target = $region52
    $region51: #{upsample_layer_forward.1} parent=5 // pred_region
      %s277 = ssub.s32 %s14, 1
      %p278 = scmp.lt.s32.totalorder %s19, 1
      %s279 = scalar_select %p278, %s19, 1
      %s280 = smul.addr %s279, 32
      %s281 = smul.addr %s280, 8
      %s282 = scalar_lea.vmem %s0, %s281
      %p283 = pneg %p40
      %p284 = pneg %p37
      %p285 = scmp.lt.s32.totalorder %s19, 1
      %s286 = scalar_select %p285, %s19, 1
      %s287 = smul.addr %s286, 64
      %s288 = smul.addr %s287, 8
      %s289 = scalar_lea.vmem %s1, %s288
      %p290 = pneg %p66
      %p291 = pneg %p63
      %p292 = pneg %p87
      %p293 = pneg %p84
      %p294 = pneg %p108
      %p295 = pneg %p105
      %p296 = pneg %p129
      %p297 = pneg %p126
      %p298 = pneg %p150
      %p299 = pneg %p147
      %p300 = pneg %p171
      %p301 = pneg %p168
      %p302 = pneg %p192
      %p303 = pneg %p189
      %p304 = pneg %p218
      %p305 = pneg %p215
      %p306 = scmp.lt.s32.totalorder %s19, 1
      %s307 = scalar_select %p306, %s19, 1
      %s308 = smul.addr %s307, 64
      %s309 = smul.addr %s308, 8
      %s310 = scalar_lea.vmem %s8, %s309
      %p311 = scmp.lt.s32.totalorder %s19, 1
      %s312 = scalar_select %p311, %s19, 1
      %s313 = smul.addr %s312, 32
      %s314 = smul.addr %s313, 8
      %s315 = scalar_lea.vmem %s0, %s314
      %p316 = scmp.lt.s32.totalorder %s19, 1
      %s317 = scalar_select %p316, %s19, 1
      %s318 = smul.addr %s317, 64
      %s319 = smul.addr %s318, 8
      %s320 = scalar_lea.vmem %s1, %s319
      %p321 = scmp.lt.s32.totalorder %s19, 1
      %s322 = scalar_select %p321, %s19, 1
      %s323 = smul.addr %s322, 64
      %s324 = smul.addr %s323, 8
      %s325 = scalar_lea.vmem %s8, %s324
      %v326 = vld [vmem:[%s315] sm:$0xff]
      %v327 = vld [vmem:[%s315 + $0x8] sm:$0xff]
      %v328 = vld [vmem:[%s315 + $0x10] sm:$0xff]
      %v329 = vld [vmem:[%s315 + $0x18] sm:$0xff]
      %v330 = vld [vmem:[%s315 + $0x20] sm:$0xff]
      %v331 = vld [vmem:[%s315 + $0x28] sm:$0xff]
      %v332 = vld [vmem:[%s315 + $0x30] sm:$0xff]
      %v333 = vld [vmem:[%s315 + $0x38] sm:$0xff]
      %v334 = vld [vmem:[%s315 + $0x40] sm:$0xff]
      %v335 = vld [vmem:[%s315 + $0x48] sm:$0xff]
      %v336 = vld [vmem:[%s315 + $0x50] sm:$0xff]
      %v337 = vld [vmem:[%s315 + $0x58] sm:$0xff]
      %v338 = vld [vmem:[%s315 + $0x60] sm:$0xff]
      %v339 = vld [vmem:[%s315 + $0x68] sm:$0xff]
      %v340 = vld [vmem:[%s315 + $0x70] sm:$0xff]
      %v341 = vld [vmem:[%s315 + $0x78] sm:$0xff]
      %v342 = vld [vmem:[%s315 + $0x80] sm:$0xff]
      %v343 = vld [vmem:[%s315 + $0x88] sm:$0xff]
      %v344 = vld [vmem:[%s315 + $0x90] sm:$0xff]
      %v345 = vld [vmem:[%s315 + $0x98] sm:$0xff]
      %v346 = vld [vmem:[%s315 + $0xa0] sm:$0xff]
      %v347 = vld [vmem:[%s315 + $0xa8] sm:$0xff]
      %v348 = vld [vmem:[%s315 + $0xb0] sm:$0xff]
      %v349 = vld [vmem:[%s315 + $0xb8] sm:$0xff]
      %v350 = vld [vmem:[%s315 + $0xc0] sm:$0xff]
      %v351 = vld [vmem:[%s315 + $0xc8] sm:$0xff]
      %v352 = vld [vmem:[%s315 + $0xd0] sm:$0xff]
      %v353 = vld [vmem:[%s315 + $0xd8] sm:$0xff]
      %v354 = vld [vmem:[%s315 + $0xe0] sm:$0xff]
      %v355 = vld [vmem:[%s315 + $0xe8] sm:$0xff]
      %v356 = vld [vmem:[%s315 + $0xf0] sm:$0xff]
      %v357 = vld [vmem:[%s315 + $0xf8] sm:$0xff]
      %v358 = vld [vmem:[%s2] sm:$0xff]
      %v359 = vld [vmem:[%s2 + $0x8] sm:$0xff]
      %v360 = vld [vmem:[%s2 + $0x10] sm:$0xff]
      %v361 = vld [vmem:[%s2 + $0x18] sm:$0xff]
      %v362 = vld [vmem:[%s2 + $0x20] sm:$0xf]
      %v363 = vld [vmem:[%s3] sm:$0x1]
      %vm397 = vcmask 1040384
      %v398 = vrot.slane 0.0, 7
      %v399 = vsel %vm397, %v398, %v398
      %v400 = vrot.slane %v326, 7
      %v401 = vrot.slane %v327, 7
      %v402 = vsel %vm397, %v400, %v401
      %v403 = vrot.slane %v328, 7
      %v404 = vrot.slane %v329, 7
      %v405 = vsel %vm397, %v403, %v404
      %v406 = vrot.slane %v330, 7
      %v407 = vrot.slane %v331, 7
      %v408 = vsel %vm397, %v406, %v407
      %v409 = vrot.slane %v332, 7
      %v410 = vrot.slane %v333, 7
      %v411 = vsel %vm397, %v409, %v410
      %v412 = vrot.slane %v334, 7
      %v413 = vrot.slane %v335, 7
      %v414 = vsel %vm397, %v412, %v413
      %v415 = vrot.slane %v336, 7
      %v416 = vrot.slane %v337, 7
      %v417 = vsel %vm397, %v415, %v416
      %v418 = vrot.slane %v338, 7
      %v419 = vrot.slane %v339, 7
      %v420 = vsel %vm397, %v418, %v419
      %v421 = vrot.slane %v340, 7
      %v422 = vrot.slane %v341, 7
      %v423 = vsel %vm397, %v421, %v422
      %v424 = vrot.slane %v342, 7
      %v425 = vrot.slane %v343, 7
      %v426 = vsel %vm397, %v424, %v425
      %v427 = vrot.slane %v344, 7
      %v428 = vrot.slane %v345, 7
      %v429 = vsel %vm397, %v427, %v428
      %v430 = vrot.slane %v346, 7
      %v431 = vrot.slane %v347, 7
      %v432 = vsel %vm397, %v430, %v431
      %v433 = vrot.slane %v348, 7
      %v434 = vrot.slane %v349, 7
      %v435 = vsel %vm397, %v433, %v434
      %v436 = vrot.slane %v350, 7
      %v437 = vrot.slane %v351, 7
      %v438 = vsel %vm397, %v436, %v437
      %v439 = vrot.slane %v352, 7
      %v440 = vrot.slane %v353, 7
      %v441 = vsel %vm397, %v439, %v440
      %v442 = vrot.slane %v354, 7
      %v443 = vrot.slane %v355, 7
      %v444 = vsel %vm397, %v442, %v443
      %v445 = vrot.slane %v356, 7
      %v446 = vrot.slane %v357, 7
      %v447 = vsel %vm397, %v445, %v446
      %v497 = vsel %vm397, 0.0, %v398
      %v498 = vsel %vm397, 0.0, %v400
      %v499 = vsel %vm397, 0.0, %v403
      %v500 = vsel %vm397, 0.0, %v406
      %v501 = vsel %vm397, 0.0, %v409
      %v502 = vsel %vm397, 0.0, %v412
      %v503 = vsel %vm397, 0.0, %v415
      %v504 = vsel %vm397, 0.0, %v418
      %v505 = vsel %vm397, 0.0, %v421
      %v506 = vsel %vm397, 0.0, %v424
      %v507 = vsel %vm397, 0.0, %v427
      %v508 = vsel %vm397, 0.0, %v430
      %v509 = vsel %vm397, 0.0, %v433
      %v510 = vsel %vm397, 0.0, %v436
      %v511 = vsel %vm397, 0.0, %v439
      %v512 = vsel %vm397, 0.0, %v442
      %v513 = vsel %vm397, 0.0, %v445
      %v514 = vsel %vm397, %v398, 0.0
      %v515 = vsel %vm397, %v401, 0.0
      %v516 = vsel %vm397, %v404, 0.0
      %v517 = vsel %vm397, %v407, 0.0
      %v518 = vsel %vm397, %v410, 0.0
      %v519 = vsel %vm397, %v413, 0.0
      %v520 = vsel %vm397, %v416, 0.0
      %v521 = vsel %vm397, %v419, 0.0
      %v522 = vsel %vm397, %v422, 0.0
      %v523 = vsel %vm397, %v425, 0.0
      %v524 = vsel %vm397, %v428, 0.0
      %v525 = vsel %vm397, %v431, 0.0
      %v526 = vsel %vm397, %v434, 0.0
      %v527 = vsel %vm397, %v437, 0.0
      %v528 = vsel %vm397, %v440, 0.0
      %v529 = vsel %vm397, %v443, 0.0
      %v530 = vsel %vm397, %v446, 0.0
      %vm563 = vcmask 1046528
      %v564 = vrot.slane %v497, 1
      %v565 = vrot.slane %v399, 1
      %v566 = vsel %vm563, %v564, %v565
      %v567 = vrot.slane %v514, 1
      %v568 = vsel %vm563, %v565, %v567
      %v569 = vrot.slane %v498, 1
      %v570 = vrot.slane %v402, 1
      %v571 = vsel %vm563, %v569, %v570
      %v572 = vrot.slane %v515, 1
      %v573 = vsel %vm563, %v570, %v572
      %v574 = vrot.slane %v499, 1
      %v575 = vrot.slane %v405, 1
      %v576 = vsel %vm563, %v574, %v575
      %v577 = vrot.slane %v516, 1
      %v578 = vsel %vm563, %v575, %v577
      %v579 = vrot.slane %v500, 1
      %v580 = vrot.slane %v408, 1
      %v581 = vsel %vm563, %v579, %v580
      %v582 = vrot.slane %v517, 1
      %v583 = vsel %vm563, %v580, %v582
      %v584 = vrot.slane %v501, 1
      %v585 = vrot.slane %v411, 1
      %v586 = vsel %vm563, %v584, %v585
      %v587 = vrot.slane %v518, 1
      %v588 = vsel %vm563, %v585, %v587
      %v589 = vrot.slane %v502, 1
      %v590 = vrot.slane %v414, 1
      %v591 = vsel %vm563, %v589, %v590
      %v592 = vrot.slane %v519, 1
      %v593 = vsel %vm563, %v590, %v592
      %v594 = vrot.slane %v503, 1
      %v595 = vrot.slane %v417, 1
      %v596 = vsel %vm563, %v594, %v595
      %v597 = vrot.slane %v520, 1
      %v598 = vsel %vm563, %v595, %v597
      %v599 = vrot.slane %v504, 1
      %v600 = vrot.slane %v420, 1
      %v601 = vsel %vm563, %v599, %v600
      %v602 = vrot.slane %v521, 1
      %v603 = vsel %vm563, %v600, %v602
      %v604 = vrot.slane %v505, 1
      %v605 = vrot.slane %v423, 1
      %v606 = vsel %vm563, %v604, %v605
      %v607 = vrot.slane %v522, 1
      %v608 = vsel %vm563, %v605, %v607
      %v609 = vrot.slane %v506, 1
      %v610 = vrot.slane %v426, 1
      %v611 = vsel %vm563, %v609, %v610
      %v612 = vrot.slane %v523, 1
      %v613 = vsel %vm563, %v610, %v612
      %v614 = vrot.slane %v507, 1
      %v615 = vrot.slane %v429, 1
      %v616 = vsel %vm563, %v614, %v615
      %v617 = vrot.slane %v524, 1
      %v618 = vsel %vm563, %v615, %v617
      %v619 = vrot.slane %v508, 1
      %v620 = vrot.slane %v432, 1
      %v621 = vsel %vm563, %v619, %v620
      %v622 = vrot.slane %v525, 1
      %v623 = vsel %vm563, %v620, %v622
      %v624 = vrot.slane %v509, 1
      %v625 = vrot.slane %v435, 1
      %v626 = vsel %vm563, %v624, %v625
      %v627 = vrot.slane %v526, 1
      %v628 = vsel %vm563, %v625, %v627
      %v629 = vrot.slane %v510, 1
      %v630 = vrot.slane %v438, 1
      %v631 = vsel %vm563, %v629, %v630
      %v632 = vrot.slane %v527, 1
      %v633 = vsel %vm563, %v630, %v632
      %v634 = vrot.slane %v511, 1
      %v635 = vrot.slane %v441, 1
      %v636 = vsel %vm563, %v634, %v635
      %v637 = vrot.slane %v528, 1
      %v638 = vsel %vm563, %v635, %v637
      %v639 = vrot.slane %v512, 1
      %v640 = vrot.slane %v444, 1
      %v641 = vsel %vm563, %v639, %v640
      %v642 = vrot.slane %v529, 1
      %v643 = vsel %vm563, %v640, %v642
      %644 = vrot.lane.b32.xlu0 %v566, 4
      %v645 = vpop.permute.xlu0 %644
      %646 = vrot.lane.b32.xlu0 %v568, 4
      %v647 = vpop.permute.xlu0 %646
      %648 = vrot.lane.b32.xlu0 %v571, 4
      %v649 = vpop.permute.xlu0 %648
      %650 = vrot.lane.b32.xlu0 %v573, 4
      %v651 = vpop.permute.xlu0 %650
      %652 = vrot.lane.b32.xlu0 %v576, 4
      %v653 = vpop.permute.xlu0 %652
      %654 = vrot.lane.b32.xlu0 %v578, 4
      %v655 = vpop.permute.xlu0 %654
      %656 = vrot.lane.b32.xlu0 %v581, 4
      %v657 = vpop.permute.xlu0 %656
      %658 = vrot.lane.b32.xlu0 %v583, 4
      %v659 = vpop.permute.xlu0 %658
      %660 = vrot.lane.b32.xlu0 %v586, 4
      %v661 = vpop.permute.xlu0 %660
      %662 = vrot.lane.b32.xlu0 %v588, 4
      %v663 = vpop.permute.xlu0 %662
      %664 = vrot.lane.b32.xlu0 %v591, 4
      %v665 = vpop.permute.xlu0 %664
      %666 = vrot.lane.b32.xlu0 %v593, 4
      %v667 = vpop.permute.xlu0 %666
      %668 = vrot.lane.b32.xlu0 %v596, 4
      %v669 = vpop.permute.xlu0 %668
      %670 = vrot.lane.b32.xlu0 %v598, 4
      %v671 = vpop.permute.xlu0 %670
      %672 = vrot.lane.b32.xlu0 %v601, 4
      %v673 = vpop.permute.xlu0 %672
      %674 = vrot.lane.b32.xlu0 %v603, 4
      %v675 = vpop.permute.xlu0 %674
      %676 = vrot.lane.b32.xlu0 %v606, 4
      %v677 = vpop.permute.xlu0 %676
      %678 = vrot.lane.b32.xlu0 %v608, 4
      %v679 = vpop.permute.xlu0 %678
      %680 = vrot.lane.b32.xlu0 %v611, 4
      %v681 = vpop.permute.xlu0 %680
      %682 = vrot.lane.b32.xlu0 %v613, 4
      %v683 = vpop.permute.xlu0 %682
      %684 = vrot.lane.b32.xlu0 %v616, 4
      %v685 = vpop.permute.xlu0 %684
      %686 = vrot.lane.b32.xlu0 %v618, 4
      %v687 = vpop.permute.xlu0 %686
      %688 = vrot.lane.b32.xlu0 %v621, 4
      %v689 = vpop.permute.xlu0 %688
      %690 = vrot.lane.b32.xlu0 %v623, 4
      %v691 = vpop.permute.xlu0 %690
      %692 = vrot.lane.b32.xlu0 %v626, 4
      %v693 = vpop.permute.xlu0 %692
      %694 = vrot.lane.b32.xlu0 %v628, 4
      %v695 = vpop.permute.xlu0 %694
      %696 = vrot.lane.b32.xlu0 %v631, 4
      %v697 = vpop.permute.xlu0 %696
      %698 = vrot.lane.b32.xlu0 %v633, 4
      %v699 = vpop.permute.xlu0 %698
      %700 = vrot.lane.b32.xlu0 %v636, 4
      %v701 = vpop.permute.xlu0 %700
      %702 = vrot.lane.b32.xlu0 %v638, 4
      %v703 = vpop.permute.xlu0 %702
      %704 = vrot.lane.b32.xlu0 %v641, 4
      %v705 = vpop.permute.xlu0 %704
      %706 = vrot.lane.b32.xlu0 %v643, 4
      %v707 = vpop.permute.xlu0 %706
      %vm740 = vcmask 1045504
      %v741 = vrot.slane %v497, 2
      %v742 = vrot.slane %v399, 2
      %v743 = vsel %vm740, %v741, %v742
      %v744 = vrot.slane %v514, 2
      %v745 = vsel %vm740, %v742, %v744
      %v746 = vrot.slane %v498, 2
      %v747 = vrot.slane %v402, 2
      %v748 = vsel %vm740, %v746, %v747
      %v749 = vrot.slane %v515, 2
      %v750 = vsel %vm740, %v747, %v749
      %v751 = vrot.slane %v499, 2
      %v752 = vrot.slane %v405, 2
      %v753 = vsel %vm740, %v751, %v752
      %v754 = vrot.slane %v516, 2
      %v755 = vsel %vm740, %v752, %v754
      %v756 = vrot.slane %v500, 2
      %v757 = vrot.slane %v408, 2
      %v758 = vsel %vm740, %v756, %v757
      %v759 = vrot.slane %v517, 2
      %v760 = vsel %vm740, %v757, %v759
      %v761 = vrot.slane %v501, 2
      %v762 = vrot.slane %v411, 2
      %v763 = vsel %vm740, %v761, %v762
      %v764 = vrot.slane %v518, 2
      %v765 = vsel %vm740, %v762, %v764
      %v766 = vrot.slane %v502, 2
      %v767 = vrot.slane %v414, 2
      %v768 = vsel %vm740, %v766, %v767
      %v769 = vrot.slane %v519, 2
      %v770 = vsel %vm740, %v767, %v769
      %v771 = vrot.slane %v503, 2
      %v772 = vrot.slane %v417, 2
      %v773 = vsel %vm740, %v771, %v772
      %v774 = vrot.slane %v520, 2
      %v775 = vsel %vm740, %v772, %v774
      %v776 = vrot.slane %v504, 2
      %v777 = vrot.slane %v420, 2
      %v778 = vsel %vm740, %v776, %v777
      %v779 = vrot.slane %v521, 2
      %v780 = vsel %vm740, %v777, %v779
      %v781 = vrot.slane %v505, 2
      %v782 = vrot.slane %v423, 2
      %v783 = vsel %vm740, %v781, %v782
      %v784 = vrot.slane %v522, 2
      %v785 = vsel %vm740, %v782, %v784
      %v786 = vrot.slane %v506, 2
      %v787 = vrot.slane %v426, 2
      %v788 = vsel %vm740, %v786, %v787
      %v789 = vrot.slane %v523, 2
      %v790 = vsel %vm740, %v787, %v789
      %v791 = vrot.slane %v507, 2
      %v792 = vrot.slane %v429, 2
      %v793 = vsel %vm740, %v791, %v792
      %v794 = vrot.slane %v524, 2
      %v795 = vsel %vm740, %v792, %v794
      %v796 = vrot.slane %v508, 2
      %v797 = vrot.slane %v432, 2
      %v798 = vsel %vm740, %v796, %v797
      %v799 = vrot.slane %v525, 2
      %v800 = vsel %vm740, %v797, %v799
      %v801 = vrot.slane %v509, 2
      %v802 = vrot.slane %v435, 2
      %v803 = vsel %vm740, %v801, %v802
      %v804 = vrot.slane %v526, 2
      %v805 = vsel %vm740, %v802, %v804
      %v806 = vrot.slane %v510, 2
      %v807 = vrot.slane %v438, 2
      %v808 = vsel %vm740, %v806, %v807
      %v809 = vrot.slane %v527, 2
      %v810 = vsel %vm740, %v807, %v809
      %v811 = vrot.slane %v511, 2
      %v812 = vrot.slane %v441, 2
      %v813 = vsel %vm740, %v811, %v812
      %v814 = vrot.slane %v528, 2
      %v815 = vsel %vm740, %v812, %v814
      %v816 = vrot.slane %v512, 2
      %v817 = vrot.slane %v444, 2
      %v818 = vsel %vm740, %v816, %v817
      %v819 = vrot.slane %v529, 2
      %v820 = vsel %vm740, %v817, %v819
      %821 = vrot.lane.b32.xlu0 %v743, 8
      %v822 = vpop.permute.xlu0 %821
      %823 = vrot.lane.b32.xlu0 %v745, 8
      %v824 = vpop.permute.xlu0 %823
      %825 = vrot.lane.b32.xlu0 %v748, 8
      %v826 = vpop.permute.xlu0 %825
      %827 = vrot.lane.b32.xlu0 %v750, 8
      %v828 = vpop.permute.xlu0 %827
      %829 = vrot.lane.b32.xlu0 %v753, 8
      %v830 = vpop.permute.xlu0 %829
      %831 = vrot.lane.b32.xlu0 %v755, 8
      %v832 = vpop.permute.xlu0 %831
      %833 = vrot.lane.b32.xlu0 %v758, 8
      %v834 = vpop.permute.xlu0 %833
      %835 = vrot.lane.b32.xlu0 %v760, 8
      %v836 = vpop.permute.xlu0 %835
      %837 = vrot.lane.b32.xlu0 %v763, 8
      %v838 = vpop.permute.xlu0 %837
      %839 = vrot.lane.b32.xlu0 %v765, 8
      %v840 = vpop.permute.xlu0 %839
      %841 = vrot.lane.b32.xlu0 %v768, 8
      %v842 = vpop.permute.xlu0 %841
      %843 = vrot.lane.b32.xlu0 %v770, 8
      %v844 = vpop.permute.xlu0 %843
      %845 = vrot.lane.b32.xlu0 %v773, 8
      %v846 = vpop.permute.xlu0 %845
      %847 = vrot.lane.b32.xlu0 %v775, 8
      %v848 = vpop.permute.xlu0 %847
      %849 = vrot.lane.b32.xlu0 %v778, 8
      %v850 = vpop.permute.xlu0 %849
      %851 = vrot.lane.b32.xlu0 %v780, 8
      %v852 = vpop.permute.xlu0 %851
      %853 = vrot.lane.b32.xlu0 %v783, 8
      %v854 = vpop.permute.xlu0 %853
      %855 = vrot.lane.b32.xlu0 %v785, 8
      %v856 = vpop.permute.xlu0 %855
      %857 = vrot.lane.b32.xlu0 %v788, 8
      %v858 = vpop.permute.xlu0 %857
      %859 = vrot.lane.b32.xlu0 %v790, 8
      %v860 = vpop.permute.xlu0 %859
      %861 = vrot.lane.b32.xlu0 %v793, 8
      %v862 = vpop.permute.xlu0 %861
      %863 = vrot.lane.b32.xlu0 %v795, 8
      %v864 = vpop.permute.xlu0 %863
      %865 = vrot.lane.b32.xlu0 %v798, 8
      %v866 = vpop.permute.xlu0 %865
      %867 = vrot.lane.b32.xlu0 %v800, 8
      %v868 = vpop.permute.xlu0 %867
      %869 = vrot.lane.b32.xlu0 %v803, 8
      %v870 = vpop.permute.xlu0 %869
      %871 = vrot.lane.b32.xlu0 %v805, 8
      %v872 = vpop.permute.xlu0 %871
      %873 = vrot.lane.b32.xlu0 %v808, 8
      %v874 = vpop.permute.xlu0 %873
      %875 = vrot.lane.b32.xlu0 %v810, 8
      %v876 = vpop.permute.xlu0 %875
      %877 = vrot.lane.b32.xlu0 %v813, 8
      %v878 = vpop.permute.xlu0 %877
      %879 = vrot.lane.b32.xlu0 %v815, 8
      %v880 = vpop.permute.xlu0 %879
      %881 = vrot.lane.b32.xlu0 %v818, 8
      %v882 = vpop.permute.xlu0 %881
      %883 = vrot.lane.b32.xlu0 %v820, 8
      %v884 = vpop.permute.xlu0 %883
      %918 = vrot.lane.b32.xlu0 %v498, 12
      %v919 = vpop.permute.xlu0 %918
      %920 = vrot.lane.b32.xlu0 %v402, 12
      %v921 = vpop.permute.xlu0 %920
      %922 = vrot.lane.b32.xlu0 %v499, 12
      %v923 = vpop.permute.xlu0 %922
      %924 = vrot.lane.b32.xlu0 %v405, 12
      %v925 = vpop.permute.xlu0 %924
      %926 = vrot.lane.b32.xlu0 %v500, 12
      %v927 = vpop.permute.xlu0 %926
      %928 = vrot.lane.b32.xlu0 %v408, 12
      %v929 = vpop.permute.xlu0 %928
      %930 = vrot.lane.b32.xlu0 %v501, 12
      %v931 = vpop.permute.xlu0 %930
      %932 = vrot.lane.b32.xlu0 %v411, 12
      %v933 = vpop.permute.xlu0 %932
      %934 = vrot.lane.b32.xlu0 %v502, 12
      %v935 = vpop.permute.xlu0 %934
      %936 = vrot.lane.b32.xlu0 %v414, 12
      %v937 = vpop.permute.xlu0 %936
      %938 = vrot.lane.b32.xlu0 %v503, 12
      %v939 = vpop.permute.xlu0 %938
      %940 = vrot.lane.b32.xlu0 %v417, 12
      %v941 = vpop.permute.xlu0 %940
      %942 = vrot.lane.b32.xlu0 %v504, 12
      %v943 = vpop.permute.xlu0 %942
      %944 = vrot.lane.b32.xlu0 %v420, 12
      %v945 = vpop.permute.xlu0 %944
      %946 = vrot.lane.b32.xlu0 %v505, 12
      %v947 = vpop.permute.xlu0 %946
      %948 = vrot.lane.b32.xlu0 %v423, 12
      %v949 = vpop.permute.xlu0 %948
      %950 = vrot.lane.b32.xlu0 %v506, 12
      %v951 = vpop.permute.xlu0 %950
      %952 = vrot.lane.b32.xlu0 %v426, 12
      %v953 = vpop.permute.xlu0 %952
      %954 = vrot.lane.b32.xlu0 %v507, 12
      %v955 = vpop.permute.xlu0 %954
      %956 = vrot.lane.b32.xlu0 %v429, 12
      %v957 = vpop.permute.xlu0 %956
      %958 = vrot.lane.b32.xlu0 %v508, 12
      %v959 = vpop.permute.xlu0 %958
      %960 = vrot.lane.b32.xlu0 %v432, 12
      %v961 = vpop.permute.xlu0 %960
      %962 = vrot.lane.b32.xlu0 %v509, 12
      %v963 = vpop.permute.xlu0 %962
      %964 = vrot.lane.b32.xlu0 %v435, 12
      %v965 = vpop.permute.xlu0 %964
      %966 = vrot.lane.b32.xlu0 %v510, 12
      %v967 = vpop.permute.xlu0 %966
      %968 = vrot.lane.b32.xlu0 %v438, 12
      %v969 = vpop.permute.xlu0 %968
      %970 = vrot.lane.b32.xlu0 %v511, 12
      %v971 = vpop.permute.xlu0 %970
      %972 = vrot.lane.b32.xlu0 %v441, 12
      %v973 = vpop.permute.xlu0 %972
      %974 = vrot.lane.b32.xlu0 %v512, 12
      %v975 = vpop.permute.xlu0 %974
      %976 = vrot.lane.b32.xlu0 %v444, 12
      %v977 = vpop.permute.xlu0 %976
      %978 = vrot.lane.b32.xlu0 %v513, 12
      %v979 = vpop.permute.xlu0 %978
      %980 = vrot.lane.b32.xlu0 %v447, 12
      %v981 = vpop.permute.xlu0 %980
      %v1015 = vrot.slane %v513, 1
      %v1016 = vrot.slane %v447, 1
      %v1017 = vsel %vm563, %v1015, %v1016
      %v1018 = vrot.slane %v530, 1
      %v1019 = vsel %vm563, %v1016, %v1018
      %1020 = vrot.lane.b32.xlu0 %v571, 16
      %v1021 = vpop.permute.xlu0 %1020
      %1022 = vrot.lane.b32.xlu0 %v573, 16
      %v1023 = vpop.permute.xlu0 %1022
      %1024 = vrot.lane.b32.xlu0 %v576, 16
      %v1025 = vpop.permute.xlu0 %1024
      %1026 = vrot.lane.b32.xlu0 %v578, 16
      %v1027 = vpop.permute.xlu0 %1026
      %1028 = vrot.lane.b32.xlu0 %v581, 16
      %v1029 = vpop.permute.xlu0 %1028
      %1030 = vrot.lane.b32.xlu0 %v583, 16
      %v1031 = vpop.permute.xlu0 %1030
      %1032 = vrot.lane.b32.xlu0 %v586, 16
      %v1033 = vpop.permute.xlu0 %1032
      %1034 = vrot.lane.b32.xlu0 %v588, 16
      %v1035 = vpop.permute.xlu0 %1034
      %1036 = vrot.lane.b32.xlu0 %v591, 16
      %v1037 = vpop.permute.xlu0 %1036
      %1038 = vrot.lane.b32.xlu0 %v593, 16
      %v1039 = vpop.permute.xlu0 %1038
      %1040 = vrot.lane.b32.xlu0 %v596, 16
      %v1041 = vpop.permute.xlu0 %1040
      %1042 = vrot.lane.b32.xlu0 %v598, 16
      %v1043 = vpop.permute.xlu0 %1042
      %1044 = vrot.lane.b32.xlu0 %v601, 16
      %v1045 = vpop.permute.xlu0 %1044
      %1046 = vrot.lane.b32.xlu0 %v603, 16
      %v1047 = vpop.permute.xlu0 %1046
      %1048 = vrot.lane.b32.xlu0 %v606, 16
      %v1049 = vpop.permute.xlu0 %1048
      %1050 = vrot.lane.b32.xlu0 %v608, 16
      %v1051 = vpop.permute.xlu0 %1050
      %1052 = vrot.lane.b32.xlu0 %v611, 16
      %v1053 = vpop.permute.xlu0 %1052
      %1054 = vrot.lane.b32.xlu0 %v613, 16
      %v1055 = vpop.permute.xlu0 %1054
      %1056 = vrot.lane.b32.xlu0 %v616, 16
      %v1057 = vpop.permute.xlu0 %1056
      %1058 = vrot.lane.b32.xlu0 %v618, 16
      %v1059 = vpop.permute.xlu0 %1058
      %1060 = vrot.lane.b32.xlu0 %v621, 16
      %v1061 = vpop.permute.xlu0 %1060
      %1062 = vrot.lane.b32.xlu0 %v623, 16
      %v1063 = vpop.permute.xlu0 %1062
      %1064 = vrot.lane.b32.xlu0 %v626, 16
      %v1065 = vpop.permute.xlu0 %1064
      %1066 = vrot.lane.b32.xlu0 %v628, 16
      %v1067 = vpop.permute.xlu0 %1066
      %1068 = vrot.lane.b32.xlu0 %v631, 16
      %v1069 = vpop.permute.xlu0 %1068
      %1070 = vrot.lane.b32.xlu0 %v633, 16
      %v1071 = vpop.permute.xlu0 %1070
      %1072 = vrot.lane.b32.xlu0 %v636, 16
      %v1073 = vpop.permute.xlu0 %1072
      %1074 = vrot.lane.b32.xlu0 %v638, 16
      %v1075 = vpop.permute.xlu0 %1074
      %1076 = vrot.lane.b32.xlu0 %v641, 16
      %v1077 = vpop.permute.xlu0 %1076
      %1078 = vrot.lane.b32.xlu0 %v643, 16
      %v1079 = vpop.permute.xlu0 %1078
      %1080 = vrot.lane.b32.xlu0 %v1017, 16
      %v1081 = vpop.permute.xlu0 %1080
      %1082 = vrot.lane.b32.xlu0 %v1019, 16
      %v1083 = vpop.permute.xlu0 %1082
      %v1116 = vrot.slane %v513, 2
      %v1117 = vrot.slane %v447, 2
      %v1118 = vsel %vm740, %v1116, %v1117
      %v1119 = vrot.slane %v530, 2
      %v1120 = vsel %vm740, %v1117, %v1119
      %1121 = vrot.lane.b32.xlu0 %v748, 20
      %v1122 = vpop.permute.xlu0 %1121
      %1123 = vrot.lane.b32.xlu0 %v750, 20
      %v1124 = vpop.permute.xlu0 %1123
      %1125 = vrot.lane.b32.xlu0 %v753, 20
      %v1126 = vpop.permute.xlu0 %1125
      %1127 = vrot.lane.b32.xlu0 %v755, 20
      %v1128 = vpop.permute.xlu0 %1127
      %1129 = vrot.lane.b32.xlu0 %v758, 20
      %v1130 = vpop.permute.xlu0 %1129
      %1131 = vrot.lane.b32.xlu0 %v760, 20
      %v1132 = vpop.permute.xlu0 %1131
      %1133 = vrot.lane.b32.xlu0 %v763, 20
      %v1134 = vpop.permute.xlu0 %1133
      %1135 = vrot.lane.b32.xlu0 %v765, 20
      %v1136 = vpop.permute.xlu0 %1135
      %1137 = vrot.lane.b32.xlu0 %v768, 20
      %v1138 = vpop.permute.xlu0 %1137
      %1139 = vrot.lane.b32.xlu0 %v770, 20
      %v1140 = vpop.permute.xlu0 %1139
      %1141 = vrot.lane.b32.xlu0 %v773, 20
      %v1142 = vpop.permute.xlu0 %1141
      %1143 = vrot.lane.b32.xlu0 %v775, 20
      %v1144 = vpop.permute.xlu0 %1143
      %1145 = vrot.lane.b32.xlu0 %v778, 20
      %v1146 = vpop.permute.xlu0 %1145
      %1147 = vrot.lane.b32.xlu0 %v780, 20
      %v1148 = vpop.permute.xlu0 %1147
      %1149 = vrot.lane.b32.xlu0 %v783, 20
      %v1150 = vpop.permute.xlu0 %1149
      %1151 = vrot.lane.b32.xlu0 %v785, 20
      %v1152 = vpop.permute.xlu0 %1151
      %1153 = vrot.lane.b32.xlu0 %v788, 20
      %v1154 = vpop.permute.xlu0 %1153
      %1155 = vrot.lane.b32.xlu0 %v790, 20
      %v1156 = vpop.permute.xlu0 %1155
      %1157 = vrot.lane.b32.xlu0 %v793, 20
      %v1158 = vpop.permute.xlu0 %1157
      %1159 = vrot.lane.b32.xlu0 %v795, 20
      %v1160 = vpop.permute.xlu0 %1159
      %1161 = vrot.lane.b32.xlu0 %v798, 20
      %v1162 = vpop.permute.xlu0 %1161
      %1163 = vrot.lane.b32.xlu0 %v800, 20
      %v1164 = vpop.permute.xlu0 %1163
      %1165 = vrot.lane.b32.xlu0 %v803, 20
      %v1166 = vpop.permute.xlu0 %1165
      %1167 = vrot.lane.b32.xlu0 %v805, 20
      %v1168 = vpop.permute.xlu0 %1167
      %1169 = vrot.lane.b32.xlu0 %v808, 20
      %v1170 = vpop.permute.xlu0 %1169
      %1171 = vrot.lane.b32.xlu0 %v810, 20
      %v1172 = vpop.permute.xlu0 %1171
      %1173 = vrot.lane.b32.xlu0 %v813, 20
      %v1174 = vpop.permute.xlu0 %1173
      %1175 = vrot.lane.b32.xlu0 %v815, 20
      %v1176 = vpop.permute.xlu0 %1175
      %1177 = vrot.lane.b32.xlu0 %v818, 20
      %v1178 = vpop.permute.xlu0 %1177
      %1179 = vrot.lane.b32.xlu0 %v820, 20
      %v1180 = vpop.permute.xlu0 %1179
      %1181 = vrot.lane.b32.xlu0 %v1118, 20
      %v1182 = vpop.permute.xlu0 %1181
      %1183 = vrot.lane.b32.xlu0 %v1120, 20
      %v1184 = vpop.permute.xlu0 %1183
      %1217 = vrot.lane.b32.xlu0 %v499, 24
      %v1218 = vpop.permute.xlu0 %1217
      %1219 = vrot.lane.b32.xlu0 %v405, 24
      %v1220 = vpop.permute.xlu0 %1219
      %1221 = vrot.lane.b32.xlu0 %v500, 24
      %v1222 = vpop.permute.xlu0 %1221
      %1223 = vrot.lane.b32.xlu0 %v408, 24
      %v1224 = vpop.permute.xlu0 %1223
      %1225 = vrot.lane.b32.xlu0 %v501, 24
      %v1226 = vpop.permute.xlu0 %1225
      %1227 = vrot.lane.b32.xlu0 %v411, 24
      %v1228 = vpop.permute.xlu0 %1227
      %1229 = vrot.lane.b32.xlu0 %v502, 24
      %v1230 = vpop.permute.xlu0 %1229
      %1231 = vrot.lane.b32.xlu0 %v414, 24
      %v1232 = vpop.permute.xlu0 %1231
      %1233 = vrot.lane.b32.xlu0 %v503, 24
      %v1234 = vpop.permute.xlu0 %1233
      %1235 = vrot.lane.b32.xlu0 %v417, 24
      %v1236 = vpop.permute.xlu0 %1235
      %1237 = vrot.lane.b32.xlu0 %v504, 24
      %v1238 = vpop.permute.xlu0 %1237
      %1239 = vrot.lane.b32.xlu0 %v420, 24
      %v1240 = vpop.permute.xlu0 %1239
      %1241 = vrot.lane.b32.xlu0 %v505, 24
      %v1242 = vpop.permute.xlu0 %1241
      %1243 = vrot.lane.b32.xlu0 %v423, 24
      %v1244 = vpop.permute.xlu0 %1243
      %1245 = vrot.lane.b32.xlu0 %v506, 24
      %v1246 = vpop.permute.xlu0 %1245
      %1247 = vrot.lane.b32.xlu0 %v426, 24
      %v1248 = vpop.permute.xlu0 %1247
      %1249 = vrot.lane.b32.xlu0 %v507, 24
      %v1250 = vpop.permute.xlu0 %1249
      %1251 = vrot.lane.b32.xlu0 %v429, 24
      %v1252 = vpop.permute.xlu0 %1251
      %1253 = vrot.lane.b32.xlu0 %v508, 24
      %v1254 = vpop.permute.xlu0 %1253
      %1255 = vrot.lane.b32.xlu0 %v432, 24
      %v1256 = vpop.permute.xlu0 %1255
      %1257 = vrot.lane.b32.xlu0 %v509, 24
      %v1258 = vpop.permute.xlu0 %1257
      %1259 = vrot.lane.b32.xlu0 %v435, 24
      %v1260 = vpop.permute.xlu0 %1259
      %1261 = vrot.lane.b32.xlu0 %v510, 24
      %v1262 = vpop.permute.xlu0 %1261
      %1263 = vrot.lane.b32.xlu0 %v438, 24
      %v1264 = vpop.permute.xlu0 %1263
      %1265 = vrot.lane.b32.xlu0 %v511, 24
      %v1266 = vpop.permute.xlu0 %1265
      %1267 = vrot.lane.b32.xlu0 %v441, 24
      %v1268 = vpop.permute.xlu0 %1267
      %1269 = vrot.lane.b32.xlu0 %v512, 24
      %v1270 = vpop.permute.xlu0 %1269
      %1271 = vrot.lane.b32.xlu0 %v444, 24
      %v1272 = vpop.permute.xlu0 %1271
      %1273 = vrot.lane.b32.xlu0 %v513, 24
      %v1274 = vpop.permute.xlu0 %1273
      %1275 = vrot.lane.b32.xlu0 %v447, 24
      %v1276 = vpop.permute.xlu0 %1275
      %1277 = vrot.lane.b32.xlu0 %v497, 24
      %v1278 = vpop.permute.xlu0 %1277
      %1279 = vrot.lane.b32.xlu0 %v399, 24
      %v1280 = vpop.permute.xlu0 %1279
      %1313 = vrot.lane.b32.xlu0 %v576, 28
      %v1314 = vpop.permute.xlu0 %1313
      %1315 = vrot.lane.b32.xlu0 %v578, 28
      %v1316 = vpop.permute.xlu0 %1315
      %1317 = vrot.lane.b32.xlu0 %v581, 28
      %v1318 = vpop.permute.xlu0 %1317
      %1319 = vrot.lane.b32.xlu0 %v583, 28
      %v1320 = vpop.permute.xlu0 %1319
      %1321 = vrot.lane.b32.xlu0 %v586, 28
      %v1322 = vpop.permute.xlu0 %1321
      %1323 = vrot.lane.b32.xlu0 %v588, 28
      %v1324 = vpop.permute.xlu0 %1323
      %1325 = vrot.lane.b32.xlu0 %v591, 28
      %v1326 = vpop.permute.xlu0 %1325
      %1327 = vrot.lane.b32.xlu0 %v593, 28
      %v1328 = vpop.permute.xlu0 %1327
      %1329 = vrot.lane.b32.xlu0 %v596, 28
      %v1330 = vpop.permute.xlu0 %1329
      %1331 = vrot.lane.b32.xlu0 %v598, 28
      %v1332 = vpop.permute.xlu0 %1331
      %1333 = vrot.lane.b32.xlu0 %v601, 28
      %v1334 = vpop.permute.xlu0 %1333
      %1335 = vrot.lane.b32.xlu0 %v603, 28
      %v1336 = vpop.permute.xlu0 %1335
      %1337 = vrot.lane.b32.xlu0 %v606, 28
      %v1338 = vpop.permute.xlu0 %1337
      %1339 = vrot.lane.b32.xlu0 %v608, 28
      %v1340 = vpop.permute.xlu0 %1339
      %1341 = vrot.lane.b32.xlu0 %v611, 28
      %v1342 = vpop.permute.xlu0 %1341
      %1343 = vrot.lane.b32.xlu0 %v613, 28
      %v1344 = vpop.permute.xlu0 %1343
      %1345 = vrot.lane.b32.xlu0 %v616, 28
      %v1346 = vpop.permute.xlu0 %1345
      %1347 = vrot.lane.b32.xlu0 %v618, 28
      %v1348 = vpop.permute.xlu0 %1347
      %1349 = vrot.lane.b32.xlu0 %v621, 28
      %v1350 = vpop.permute.xlu0 %1349
      %1351 = vrot.lane.b32.xlu0 %v623, 28
      %v1352 = vpop.permute.xlu0 %1351
      %1353 = vrot.lane.b32.xlu0 %v626, 28
      %v1354 = vpop.permute.xlu0 %1353
      %1355 = vrot.lane.b32.xlu0 %v628, 28
      %v1356 = vpop.permute.xlu0 %1355
      %1357 = vrot.lane.b32.xlu0 %v631, 28
      %v1358 = vpop.permute.xlu0 %1357
      %1359 = vrot.lane.b32.xlu0 %v633, 28
      %v1360 = vpop.permute.xlu0 %1359
      %1361 = vrot.lane.b32.xlu0 %v636, 28
      %v1362 = vpop.permute.xlu0 %1361
      %1363 = vrot.lane.b32.xlu0 %v638, 28
      %v1364 = vpop.permute.xlu0 %1363
      %1365 = vrot.lane.b32.xlu0 %v641, 28
      %v1366 = vpop.permute.xlu0 %1365
      %1367 = vrot.lane.b32.xlu0 %v643, 28
      %v1368 = vpop.permute.xlu0 %1367
      %1369 = vrot.lane.b32.xlu0 %v1017, 28
      %v1370 = vpop.permute.xlu0 %1369
      %1371 = vrot.lane.b32.xlu0 %v1019, 28
      %v1372 = vpop.permute.xlu0 %1371
      %1373 = vrot.lane.b32.xlu0 %v566, 28
      %v1374 = vpop.permute.xlu0 %1373
      %1375 = vrot.lane.b32.xlu0 %v568, 28
      %v1376 = vpop.permute.xlu0 %1375
      %1409 = vrot.lane.b32.xlu0 %v753, 32
      %v1410 = vpop.permute.xlu0 %1409
      %1411 = vrot.lane.b32.xlu0 %v755, 32
      %v1412 = vpop.permute.xlu0 %1411
      %1413 = vrot.lane.b32.xlu0 %v758, 32
      %v1414 = vpop.permute.xlu0 %1413
      %1415 = vrot.lane.b32.xlu0 %v760, 32
      %v1416 = vpop.permute.xlu0 %1415
      %1417 = vrot.lane.b32.xlu0 %v763, 32
      %v1418 = vpop.permute.xlu0 %1417
      %1419 = vrot.lane.b32.xlu0 %v765, 32
      %v1420 = vpop.permute.xlu0 %1419
      %1421 = vrot.lane.b32.xlu0 %v768, 32
      %v1422 = vpop.permute.xlu0 %1421
      %1423 = vrot.lane.b32.xlu0 %v770, 32
      %v1424 = vpop.permute.xlu0 %1423
      %1425 = vrot.lane.b32.xlu0 %v773, 32
      %v1426 = vpop.permute.xlu0 %1425
      %1427 = vrot.lane.b32.xlu0 %v775, 32
      %v1428 = vpop.permute.xlu0 %1427
      %1429 = vrot.lane.b32.xlu0 %v778, 32
      %v1430 = vpop.permute.xlu0 %1429
      %1431 = vrot.lane.b32.xlu0 %v780, 32
      %v1432 = vpop.permute.xlu0 %1431
      %1433 = vrot.lane.b32.xlu0 %v783, 32
      %v1434 = vpop.permute.xlu0 %1433
      %1435 = vrot.lane.b32.xlu0 %v785, 32
      %v1436 = vpop.permute.xlu0 %1435
      %1437 = vrot.lane.b32.xlu0 %v788, 32
      %v1438 = vpop.permute.xlu0 %1437
      %1439 = vrot.lane.b32.xlu0 %v790, 32
      %v1440 = vpop.permute.xlu0 %1439
      %1441 = vrot.lane.b32.xlu0 %v793, 32
      %v1442 = vpop.permute.xlu0 %1441
      %1443 = vrot.lane.b32.xlu0 %v795, 32
      %v1444 = vpop.permute.xlu0 %1443
      %1445 = vrot.lane.b32.xlu0 %v798, 32
      %v1446 = vpop.permute.xlu0 %1445
      %1447 = vrot.lane.b32.xlu0 %v800, 32
      %v1448 = vpop.permute.xlu0 %1447
      %1449 = vrot.lane.b32.xlu0 %v803, 32
      %v1450 = vpop.permute.xlu0 %1449
      %1451 = vrot.lane.b32.xlu0 %v805, 32
      %v1452 = vpop.permute.xlu0 %1451
      %1453 = vrot.lane.b32.xlu0 %v808, 32
      %v1454 = vpop.permute.xlu0 %1453
      %1455 = vrot.lane.b32.xlu0 %v810, 32
      %v1456 = vpop.permute.xlu0 %1455
      %1457 = vrot.lane.b32.xlu0 %v813, 32
      %v1458 = vpop.permute.xlu0 %1457
      %1459 = vrot.lane.b32.xlu0 %v815, 32
      %v1460 = vpop.permute.xlu0 %1459
      %1461 = vrot.lane.b32.xlu0 %v818, 32
      %v1462 = vpop.permute.xlu0 %1461
      %1463 = vrot.lane.b32.xlu0 %v820, 32
      %v1464 = vpop.permute.xlu0 %1463
      %1465 = vrot.lane.b32.xlu0 %v1118, 32
      %v1466 = vpop.permute.xlu0 %1465
      %1467 = vrot.lane.b32.xlu0 %v1120, 32
      %v1468 = vpop.permute.xlu0 %1467
      %1469 = vrot.lane.b32.xlu0 %v743, 32
      %v1470 = vpop.permute.xlu0 %1469
      %1471 = vrot.lane.b32.xlu0 %v745, 32
      %v1472 = vpop.permute.xlu0 %1471
      %vm1505 = vcmask 31744
      %v1506 = vsel %vm1505, %v497, %v645
      %v1507 = vsel %vm1505, %v399, %v647
      %v1508 = vsel %vm1505, %v498, %v649
      %v1509 = vsel %vm1505, %v402, %v651
      %v1510 = vsel %vm1505, %v499, %v653
      %v1511 = vsel %vm1505, %v405, %v655
      %v1512 = vsel %vm1505, %v500, %v657
      %v1513 = vsel %vm1505, %v408, %v659
      %v1514 = vsel %vm1505, %v501, %v661
      %v1515 = vsel %vm1505, %v411, %v663
      %v1516 = vsel %vm1505, %v502, %v665
      %v1517 = vsel %vm1505, %v414, %v667
      %v1518 = vsel %vm1505, %v503, %v669
      %v1519 = vsel %vm1505, %v417, %v671
      %v1520 = vsel %vm1505, %v504, %v673
      %v1521 = vsel %vm1505, %v420, %v675
      %v1522 = vsel %vm1505, %v505, %v677
      %v1523 = vsel %vm1505, %v423, %v679
      %v1524 = vsel %vm1505, %v506, %v681
      %v1525 = vsel %vm1505, %v426, %v683
      %v1526 = vsel %vm1505, %v507, %v685
      %v1527 = vsel %vm1505, %v429, %v687
      %v1528 = vsel %vm1505, %v508, %v689
      %v1529 = vsel %vm1505, %v432, %v691
      %v1530 = vsel %vm1505, %v509, %v693
      %v1531 = vsel %vm1505, %v435, %v695
      %v1532 = vsel %vm1505, %v510, %v697
      %v1533 = vsel %vm1505, %v438, %v699
      %v1534 = vsel %vm1505, %v511, %v701
      %v1535 = vsel %vm1505, %v441, %v703
      %v1536 = vsel %vm1505, %v512, %v705
      %v1537 = vsel %vm1505, %v444, %v707
      %vm1538 = vcmask 64512
      %v1539 = vsel %vm1538, %v1506, %v822
      %v1540 = vsel %vm1538, %v1507, %v824
      %v1541 = vsel %vm1538, %v1508, %v826
      %v1542 = vsel %vm1538, %v1509, %v828
      %v1543 = vsel %vm1538, %v1510, %v830
      %v1544 = vsel %vm1538, %v1511, %v832
      %v1545 = vsel %vm1538, %v1512, %v834
      %v1546 = vsel %vm1538, %v1513, %v836
      %v1547 = vsel %vm1538, %v1514, %v838
      %v1548 = vsel %vm1538, %v1515, %v840
      %v1549 = vsel %vm1538, %v1516, %v842
      %v1550 = vsel %vm1538, %v1517, %v844
      %v1551 = vsel %vm1538, %v1518, %v846
      %v1552 = vsel %vm1538, %v1519, %v848
      %v1553 = vsel %vm1538, %v1520, %v850
      %v1554 = vsel %vm1538, %v1521, %v852
      %v1555 = vsel %vm1538, %v1522, %v854
      %v1556 = vsel %vm1538, %v1523, %v856
      %v1557 = vsel %vm1538, %v1524, %v858
      %v1558 = vsel %vm1538, %v1525, %v860
      %v1559 = vsel %vm1538, %v1526, %v862
      %v1560 = vsel %vm1538, %v1527, %v864
      %v1561 = vsel %vm1538, %v1528, %v866
      %v1562 = vsel %vm1538, %v1529, %v868
      %v1563 = vsel %vm1538, %v1530, %v870
      %v1564 = vsel %vm1538, %v1531, %v872
      %v1565 = vsel %vm1538, %v1532, %v874
      %v1566 = vsel %vm1538, %v1533, %v876
      %v1567 = vsel %vm1538, %v1534, %v878
      %v1568 = vsel %vm1538, %v1535, %v880
      %v1569 = vsel %vm1538, %v1536, %v882
      %v1570 = vsel %vm1538, %v1537, %v884
      %vm1571 = vcmask 97280
      %v1572 = vsel %vm1571, %v1539, %v919
      %v1573 = vsel %vm1571, %v1540, %v921
      %v1574 = vsel %vm1571, %v1541, %v923
      %v1575 = vsel %vm1571, %v1542, %v925
      %v1576 = vsel %vm1571, %v1543, %v927
      %v1577 = vsel %vm1571, %v1544, %v929
      %v1578 = vsel %vm1571, %v1545, %v931
      %v1579 = vsel %vm1571, %v1546, %v933
      %v1580 = vsel %vm1571, %v1547, %v935
      %v1581 = vsel %vm1571, %v1548, %v937
      %v1582 = vsel %vm1571, %v1549, %v939
      %v1583 = vsel %vm1571, %v1550, %v941
      %v1584 = vsel %vm1571, %v1551, %v943
      %v1585 = vsel %vm1571, %v1552, %v945
      %v1586 = vsel %vm1571, %v1553, %v947
      %v1587 = vsel %vm1571, %v1554, %v949
      %v1588 = vsel %vm1571, %v1555, %v951
      %v1589 = vsel %vm1571, %v1556, %v953
      %v1590 = vsel %vm1571, %v1557, %v955
      %v1591 = vsel %vm1571, %v1558, %v957
      %v1592 = vsel %vm1571, %v1559, %v959
      %v1593 = vsel %vm1571, %v1560, %v961
      %v1594 = vsel %vm1571, %v1561, %v963
      %v1595 = vsel %vm1571, %v1562, %v965
      %v1596 = vsel %vm1571, %v1563, %v967
      %v1597 = vsel %vm1571, %v1564, %v969
      %v1598 = vsel %vm1571, %v1565, %v971
      %v1599 = vsel %vm1571, %v1566, %v973
      %v1600 = vsel %vm1571, %v1567, %v975
      %v1601 = vsel %vm1571, %v1568, %v977
      %v1602 = vsel %vm1571, %v1569, %v979
      %v1603 = vsel %vm1571, %v1570, %v981
      %vm1604 = vcmask 130048
      %v1605 = vsel %vm1604, %v1572, %v1021
      %v1606 = vsel %vm1604, %v1573, %v1023
      %v1607 = vsel %vm1604, %v1574, %v1025
      %v1608 = vsel %vm1604, %v1575, %v1027
      %v1609 = vsel %vm1604, %v1576, %v1029
      %v1610 = vsel %vm1604, %v1577, %v1031
      %v1611 = vsel %vm1604, %v1578, %v1033
      %v1612 = vsel %vm1604, %v1579, %v1035
      %v1613 = vsel %vm1604, %v1580, %v1037
      %v1614 = vsel %vm1604, %v1581, %v1039
      %v1615 = vsel %vm1604, %v1582, %v1041
      %v1616 = vsel %vm1604, %v1583, %v1043
      %v1617 = vsel %vm1604, %v1584, %v1045
      %v1618 = vsel %vm1604, %v1585, %v1047
      %v1619 = vsel %vm1604, %v1586, %v1049
      %v1620 = vsel %vm1604, %v1587, %v1051
      %v1621 = vsel %vm1604, %v1588, %v1053
      %v1622 = vsel %vm1604, %v1589, %v1055
      %v1623 = vsel %vm1604, %v1590, %v1057
      %v1624 = vsel %vm1604, %v1591, %v1059
      %v1625 = vsel %vm1604, %v1592, %v1061
      %v1626 = vsel %vm1604, %v1593, %v1063
      %v1627 = vsel %vm1604, %v1594, %v1065
      %v1628 = vsel %vm1604, %v1595, %v1067
      %v1629 = vsel %vm1604, %v1596, %v1069
      %v1630 = vsel %vm1604, %v1597, %v1071
      %v1631 = vsel %vm1604, %v1598, %v1073
      %v1632 = vsel %vm1604, %v1599, %v1075
      %v1633 = vsel %vm1604, %v1600, %v1077
      %v1634 = vsel %vm1604, %v1601, %v1079
      %v1635 = vsel %vm1604, %v1602, %v1081
      %v1636 = vsel %vm1604, %v1603, %v1083
      %vm1637 = vcmask 162816
      %v1638 = vsel %vm1637, %v1605, %v1122
      %v1639 = vsel %vm1637, %v1606, %v1124
      %v1640 = vsel %vm1637, %v1607, %v1126
      %v1641 = vsel %vm1637, %v1608, %v1128
      %v1642 = vsel %vm1637, %v1609, %v1130
      %v1643 = vsel %vm1637, %v1610, %v1132
      %v1644 = vsel %vm1637, %v1611, %v1134
      %v1645 = vsel %vm1637, %v1612, %v1136
      %v1646 = vsel %vm1637, %v1613, %v1138
      %v1647 = vsel %vm1637, %v1614, %v1140
      %v1648 = vsel %vm1637, %v1615, %v1142
      %v1649 = vsel %vm1637, %v1616, %v1144
      %v1650 = vsel %vm1637, %v1617, %v1146
      %v1651 = vsel %vm1637, %v1618, %v1148
      %v1652 = vsel %vm1637, %v1619, %v1150
      %v1653 = vsel %vm1637, %v1620, %v1152
      %v1654 = vsel %vm1637, %v1621, %v1154
      %v1655 = vsel %vm1637, %v1622, %v1156
      %v1656 = vsel %vm1637, %v1623, %v1158
      %v1657 = vsel %vm1637, %v1624, %v1160
      %v1658 = vsel %vm1637, %v1625, %v1162
      %v1659 = vsel %vm1637, %v1626, %v1164
      %v1660 = vsel %vm1637, %v1627, %v1166
      %v1661 = vsel %vm1637, %v1628, %v1168
      %v1662 = vsel %vm1637, %v1629, %v1170
      %v1663 = vsel %vm1637, %v1630, %v1172
      %v1664 = vsel %vm1637, %v1631, %v1174
      %v1665 = vsel %vm1637, %v1632, %v1176
      %v1666 = vsel %vm1637, %v1633, %v1178
      %v1667 = vsel %vm1637, %v1634, %v1180
      %v1668 = vsel %vm1637, %v1635, %v1182
      %v1669 = vsel %vm1637, %v1636, %v1184
      %vm1670 = vcmask 195584
      %v1671 = vsel %vm1670, %v1638, %v1218
      %v1672 = vsel %vm1670, %v1639, %v1220
      %v1673 = vsel %vm1670, %v1640, %v1222
      %v1674 = vsel %vm1670, %v1641, %v1224
      %v1675 = vsel %vm1670, %v1642, %v1226
      %v1676 = vsel %vm1670, %v1643, %v1228
      %v1677 = vsel %vm1670, %v1644, %v1230
      %v1678 = vsel %vm1670, %v1645, %v1232
      %v1679 = vsel %vm1670, %v1646, %v1234
      %v1680 = vsel %vm1670, %v1647, %v1236
      %v1681 = vsel %vm1670, %v1648, %v1238
      %v1682 = vsel %vm1670, %v1649, %v1240
      %v1683 = vsel %vm1670, %v1650, %v1242
      %v1684 = vsel %vm1670, %v1651, %v1244
      %v1685 = vsel %vm1670, %v1652, %v1246
      %v1686 = vsel %vm1670, %v1653, %v1248
      %v1687 = vsel %vm1670, %v1654, %v1250
      %v1688 = vsel %vm1670, %v1655, %v1252
      %v1689 = vsel %vm1670, %v1656, %v1254
      %v1690 = vsel %vm1670, %v1657, %v1256
      %v1691 = vsel %vm1670, %v1658, %v1258
      %v1692 = vsel %vm1670, %v1659, %v1260
      %v1693 = vsel %vm1670, %v1660, %v1262
      %v1694 = vsel %vm1670, %v1661, %v1264
      %v1695 = vsel %vm1670, %v1662, %v1266
      %v1696 = vsel %vm1670, %v1663, %v1268
      %v1697 = vsel %vm1670, %v1664, %v1270
      %v1698 = vsel %vm1670, %v1665, %v1272
      %v1699 = vsel %vm1670, %v1666, %v1274
      %v1700 = vsel %vm1670, %v1667, %v1276
      %v1701 = vsel %vm1670, %v1668, %v1278
      %v1702 = vsel %vm1670, %v1669, %v1280
      %vm1703 = vcmask 228352
      %v1704 = vsel %vm1703, %v1671, %v1314
      %v1705 = vsel %vm1703, %v1672, %v1316
      %v1706 = vsel %vm1703, %v1673, %v1318
      %v1707 = vsel %vm1703, %v1674, %v1320
      %v1708 = vsel %vm1703, %v1675, %v1322
      %v1709 = vsel %vm1703, %v1676, %v1324
      %v1710 = vsel %vm1703, %v1677, %v1326
      %v1711 = vsel %vm1703, %v1678, %v1328
      %v1712 = vsel %vm1703, %v1679, %v1330
      %v1713 = vsel %vm1703, %v1680, %v1332
      %v1714 = vsel %vm1703, %v1681, %v1334
      %v1715 = vsel %vm1703, %v1682, %v1336
      %v1716 = vsel %vm1703, %v1683, %v1338
      %v1717 = vsel %vm1703, %v1684, %v1340
      %v1718 = vsel %vm1703, %v1685, %v1342
      %v1719 = vsel %vm1703, %v1686, %v1344
      %v1720 = vsel %vm1703, %v1687, %v1346
      %v1721 = vsel %vm1703, %v1688, %v1348
      %v1722 = vsel %vm1703, %v1689, %v1350
      %v1723 = vsel %vm1703, %v1690, %v1352
      %v1724 = vsel %vm1703, %v1691, %v1354
      %v1725 = vsel %vm1703, %v1692, %v1356
      %v1726 = vsel %vm1703, %v1693, %v1358
      %v1727 = vsel %vm1703, %v1694, %v1360
      %v1728 = vsel %vm1703, %v1695, %v1362
      %v1729 = vsel %vm1703, %v1696, %v1364
      %v1730 = vsel %vm1703, %v1697, %v1366
      %v1731 = vsel %vm1703, %v1698, %v1368
      %v1732 = vsel %vm1703, %v1699, %v1370
      %v1733 = vsel %vm1703, %v1700, %v1372
      %v1734 = vsel %vm1703, %v1701, %v1374
      %v1735 = vsel %vm1703, %v1702, %v1376
      %vm1736 = vcmask 261120
      %v1737 = vsel %vm1736, %v1704, %v1410
      %v1738 = vsel %vm1736, %v1705, %v1412
      %v1739 = vsel %vm1736, %v1706, %v1414
      %v1740 = vsel %vm1736, %v1707, %v1416
      %v1741 = vsel %vm1736, %v1708, %v1418
      %v1742 = vsel %vm1736, %v1709, %v1420
      %v1743 = vsel %vm1736, %v1710, %v1422
      %v1744 = vsel %vm1736, %v1711, %v1424
      %v1745 = vsel %vm1736, %v1712, %v1426
      %v1746 = vsel %vm1736, %v1713, %v1428
      %v1747 = vsel %vm1736, %v1714, %v1430
      %v1748 = vsel %vm1736, %v1715, %v1432
      %v1749 = vsel %vm1736, %v1716, %v1434
      %v1750 = vsel %vm1736, %v1717, %v1436
      %v1751 = vsel %vm1736, %v1718, %v1438
      %v1752 = vsel %vm1736, %v1719, %v1440
      %v1753 = vsel %vm1736, %v1720, %v1442
      %v1754 = vsel %vm1736, %v1721, %v1444
      %v1755 = vsel %vm1736, %v1722, %v1446
      %v1756 = vsel %vm1736, %v1723, %v1448
      %v1757 = vsel %vm1736, %v1724, %v1450
      %v1758 = vsel %vm1736, %v1725, %v1452
      %v1759 = vsel %vm1736, %v1726, %v1454
      %v1760 = vsel %vm1736, %v1727, %v1456
      %v1761 = vsel %vm1736, %v1728, %v1458
      %v1762 = vsel %vm1736, %v1729, %v1460
      %v1763 = vsel %vm1736, %v1730, %v1462
      %v1764 = vsel %vm1736, %v1731, %v1464
      %v1765 = vsel %vm1736, %v1732, %v1466
      %v1766 = vsel %vm1736, %v1733, %v1468
      %v1767 = vsel %vm1736, %v1734, %v1470
      %v1768 = vsel %vm1736, %v1735, %v1472
      %v1770 = vlaneseq
      %v1771 = vshrl.u32 %v1770, 7
      %v1772 = vsub.s32 0, %v1771
      %v1773 = vrot.slane %v363, %v1772
      %vm1775 = vcmask 293888
      %v1777 = vsel %vm1775, %v1737, 0
      %v1780 = vsel %vm1775, %v1738, 0
      %v1783 = vsel %vm1775, %v1739, 0
      %v1786 = vsel %vm1775, %v1740, 0
      %v1789 = vsel %vm1775, %v1741, 0
      %v1792 = vsel %vm1775, %v1742, 0
      %v1795 = vsel %vm1775, %v1743, 0
      %v1798 = vsel %vm1775, %v1744, 0
      %v1801 = vsel %vm1775, %v1745, 0
      %v1804 = vsel %vm1775, %v1746, 0
      %v1807 = vsel %vm1775, %v1747, 0
      %v1810 = vsel %vm1775, %v1748, 0
      %v1813 = vsel %vm1775, %v1749, 0
      %v1816 = vsel %vm1775, %v1750, 0
      %v1819 = vsel %vm1775, %v1751, 0
      %v1822 = vsel %vm1775, %v1752, 0
      %v1825 = vsel %vm1775, %v1753, 0
      %v1828 = vsel %vm1775, %v1754, 0
      %v1831 = vsel %vm1775, %v1755, 0
      %v1834 = vsel %vm1775, %v1756, 0
      %v1837 = vsel %vm1775, %v1757, 0
      %v1840 = vsel %vm1775, %v1758, 0
      %v1843 = vsel %vm1775, %v1759, 0
      %v1846 = vsel %vm1775, %v1760, 0
      %v1849 = vsel %vm1775, %v1761, 0
      %v1852 = vsel %vm1775, %v1762, 0
      %v1855 = vsel %vm1775, %v1763, 0
      %v1858 = vsel %vm1775, %v1764, 0
      %v1861 = vsel %vm1775, %v1765, 0
      %v1864 = vsel %vm1775, %v1766, 0
      %v1867 = vsel %vm1775, %v1767, 0
      %v1870 = vsel %vm1775, %v1768, 0
      %vm1872 = vcmask 1043456
      %v1874 = vsel %vm1872, %v362, 0
      %1876 = vmatprep.subr.mxu0 0.0
      %1877 = vmatpush1.msra.mxu0 0.0
      %1878 = vmatprep.subr.mxu0 0.0
      %1879 = vmatpush1.msra.mxu0 0.0
      %1880 = vmatprep.subr.mxu0 0.0
      %1881 = vmatpush1.msra.mxu0 0.0
      %1882 = vmatprep.subr.mxu0 0.0
      %1883 = vmatpush1.msra.mxu0 0.0
      %1884 = vmatprep.subr.mxu0 0.0
      %1885 = vmatpush1.msra.mxu0 0.0
      %1886 = vmatprep.subr.mxu0 0.0
      %1887 = vmatpush1.msra.mxu0 0.0
      %1888 = vmatprep.subr.mxu0 0.0
      %1889 = vmatpush1.msra.mxu0 0.0
      %1890 = vmatprep.subr.mxu0 0.0
      %1891 = vmatpush1.msra.mxu0 0.0
      %1892 = vmatprep.subr.mxu0 0.0
      %1893 = vmatpush1.msra.mxu0 0.0
      %1894 = vmatprep.subr.mxu0 0.0
      %1895 = vmatpush1.msra.mxu0 0.0
      %1896 = vmatprep.subr.mxu0 0.0
      %1897 = vmatpush1.msra.mxu0 0.0
      %1898 = vmatprep.subr.mxu0 0.0
      %1899 = vmatpush1.msra.mxu0 %v1874
      %1900 = vmatprep.subr.mxu0 0.0
      %1901 = vmatpush1.msra.mxu0 %v361
      %1902 = vmatprep.subr.mxu0 0.0
      %1903 = vmatpush1.msra.mxu0 %v360
      %1904 = vmatprep.subr.mxu0 0.0
      %1905 = vmatpush1.msra.mxu0 %v359
      %1906 = vmatprep.subr.mxu0 0.0
      %1907 = vmatpush1.msra.mxu0 %v358
      %1908 = vmatprep.subr.mxu0 0.0
      %1909 = vmatpush2.msra.mxu0 0.0
      %1910 = vmatprep.subr.mxu0 0.0
      %1911 = vmatpush2.msra.mxu0 0.0
      %1912 = vmatprep.subr.mxu0 0.0
      %1913 = vmatpush2.msra.mxu0 0.0
      %1914 = vmatprep.subr.mxu0 0.0
      %1915 = vmatpush2.msra.mxu0 0.0
      %1916 = vmatprep.subr.mxu0 0.0
      %1917 = vmatpush2.msra.mxu0 0.0
      %1918 = vmatprep.subr.mxu0 0.0
      %1919 = vmatpush2.msra.mxu0 0.0
      %1920 = vmatprep.subr.mxu0 0.0
      %1921 = vmatpush2.msra.mxu0 0.0
      %1922 = vmatprep.subr.mxu0 0.0
      %1923 = vmatpush2.msra.mxu0 0.0
      %1924 = vmatprep.subr.mxu0 0.0
      %1925 = vmatpush2.msra.mxu0 0.0
      %1926 = vmatprep.subr.mxu0 0.0
      %1927 = vmatpush2.msra.mxu0 0.0
      %1928 = vmatprep.subr.mxu0 0.0
      %1929 = vmatpush2.msra.mxu0 0.0
      %1930 = vmatprep.subr.mxu0 0.0
      %1931 = vmatpush2.msra.mxu0 0.0
      %1932 = vmatprep.subr.mxu0 0.0
      %1933 = vmatpush2.msra.mxu0 0.0
      %1934 = vmatprep.subr.mxu0 0.0
      %1935 = vmatpush2.msra.mxu0 0.0
      %1936 = vmatprep.subr.mxu0 0.0
      %1937 = vmatpush2.msra.mxu0 0.0
      %1938 = vmatprep.subr.mxu0 0.0
      %1939 = vmatpush2.msra.mxu0 0.0
      %1940 = vmatprep.mubr.f32.mxu0 0.0
      %1941 = vmatmul.mubr.f32.gmra.mxu0 %v1777
      %v1942 = vpop.f32.mrf.mxu0
      %v1943 = vadd.f32 %v1773, %v1942
      %v1944 = vpop.f32.mrf.mxu0
      %1945 = vmatprep.mubr.f32.mxu0 0.0
      %1946 = vmatmul.mubr.f32.gmra.mxu0 %v1780
      %v1947 = vpop.f32.mrf.mxu0
      %v1948 = vadd.f32 %v1773, %v1947
      %v1949 = vpop.f32.mrf.mxu0
      %1950 = vmatprep.mubr.f32.mxu0 0.0
      %1951 = vmatmul.mubr.f32.gmra.mxu0 %v1783
      %v1952 = vpop.f32.mrf.mxu0
      %v1953 = vadd.f32 %v1773, %v1952
      %v1954 = vpop.f32.mrf.mxu0
      %1955 = vmatprep.mubr.f32.mxu0 0.0
      %1956 = vmatmul.mubr.f32.gmra.mxu0 %v1786
      %v1957 = vpop.f32.mrf.mxu0
      %v1958 = vadd.f32 %v1773, %v1957
      %v1959 = vpop.f32.mrf.mxu0
      %1960 = vmatprep.mubr.f32.mxu0 0.0
      %1961 = vmatmul.mubr.f32.gmra.mxu0 %v1789
      %v1962 = vpop.f32.mrf.mxu0
      %v1963 = vadd.f32 %v1773, %v1962
      %v1964 = vpop.f32.mrf.mxu0
      %1965 = vmatprep.mubr.f32.mxu0 0.0
      %1966 = vmatmul.mubr.f32.gmra.mxu0 %v1792
      %v1967 = vpop.f32.mrf.mxu0
      %v1968 = vadd.f32 %v1773, %v1967
      %v1969 = vpop.f32.mrf.mxu0
      %1970 = vmatprep.mubr.f32.mxu0 0.0
      %1971 = vmatmul.mubr.f32.gmra.mxu0 %v1795
      %v1972 = vpop.f32.mrf.mxu0
      %v1973 = vadd.f32 %v1773, %v1972
      %v1974 = vpop.f32.mrf.mxu0
      %1975 = vmatprep.mubr.f32.mxu0 0.0
      %1976 = vmatmul.mubr.f32.gmra.mxu0 %v1798
      %v1977 = vpop.f32.mrf.mxu0
      %v1978 = vadd.f32 %v1773, %v1977
      %v1979 = vpop.f32.mrf.mxu0
      %1980 = vmatprep.mubr.f32.mxu0 0.0
      %1981 = vmatmul.mubr.f32.gmra.mxu0 %v1801
      %v1982 = vpop.f32.mrf.mxu0
      %v1983 = vadd.f32 %v1773, %v1982
      %v1984 = vpop.f32.mrf.mxu0
      %1985 = vmatprep.mubr.f32.mxu0 0.0
      %1986 = vmatmul.mubr.f32.gmra.mxu0 %v1804
      %v1987 = vpop.f32.mrf.mxu0
      %v1988 = vadd.f32 %v1773, %v1987
      %v1989 = vpop.f32.mrf.mxu0
      %1990 = vmatprep.mubr.f32.mxu0 0.0
      %1991 = vmatmul.mubr.f32.gmra.mxu0 %v1807
      %v1992 = vpop.f32.mrf.mxu0
      %v1993 = vadd.f32 %v1773, %v1992
      %v1994 = vpop.f32.mrf.mxu0
      %1995 = vmatprep.mubr.f32.mxu0 0.0
      %1996 = vmatmul.mubr.f32.gmra.mxu0 %v1810
      %v1997 = vpop.f32.mrf.mxu0
      %v1998 = vadd.f32 %v1773, %v1997
      %v1999 = vpop.f32.mrf.mxu0
      %2000 = vmatprep.mubr.f32.mxu0 0.0
      %2001 = vmatmul.mubr.f32.gmra.mxu0 %v1813
      %v2002 = vpop.f32.mrf.mxu0
      %v2003 = vadd.f32 %v1773, %v2002
      %v2004 = vpop.f32.mrf.mxu0
      %2005 = vmatprep.mubr.f32.mxu0 0.0
      %2006 = vmatmul.mubr.f32.gmra.mxu0 %v1816
      %v2007 = vpop.f32.mrf.mxu0
      %v2008 = vadd.f32 %v1773, %v2007
      %v2009 = vpop.f32.mrf.mxu0
      %2010 = vmatprep.mubr.f32.mxu0 0.0
      %2011 = vmatmul.mubr.f32.gmra.mxu0 %v1819
      %v2012 = vpop.f32.mrf.mxu0
      %v2013 = vadd.f32 %v1773, %v2012
      %v2014 = vpop.f32.mrf.mxu0
      %2015 = vmatprep.mubr.f32.mxu0 0.0
      %2016 = vmatmul.mubr.f32.gmra.mxu0 %v1822
      %v2017 = vpop.f32.mrf.mxu0
      %v2018 = vadd.f32 %v1773, %v2017
      %v2019 = vpop.f32.mrf.mxu0
      %2020 = vmatprep.mubr.f32.mxu0 0.0
      %2021 = vmatmul.mubr.f32.gmra.mxu0 %v1825
      %v2022 = vpop.f32.mrf.mxu0
      %v2023 = vadd.f32 %v1773, %v2022
      %v2024 = vpop.f32.mrf.mxu0
      %2025 = vmatprep.mubr.f32.mxu0 0.0
      %2026 = vmatmul.mubr.f32.gmra.mxu0 %v1828
      %v2027 = vpop.f32.mrf.mxu0
      %v2028 = vadd.f32 %v1773, %v2027
      %v2029 = vpop.f32.mrf.mxu0
      %2030 = vmatprep.mubr.f32.mxu0 0.0
      %2031 = vmatmul.mubr.f32.gmra.mxu0 %v1831
      %v2032 = vpop.f32.mrf.mxu0
      %v2033 = vadd.f32 %v1773, %v2032
      %v2034 = vpop.f32.mrf.mxu0
      %2035 = vmatprep.mubr.f32.mxu0 0.0
      %2036 = vmatmul.mubr.f32.gmra.mxu0 %v1834
      %v2037 = vpop.f32.mrf.mxu0
      %v2038 = vadd.f32 %v1773, %v2037
      %v2039 = vpop.f32.mrf.mxu0
      %2040 = vmatprep.mubr.f32.mxu0 0.0
      %2041 = vmatmul.mubr.f32.gmra.mxu0 %v1837
      %v2042 = vpop.f32.mrf.mxu0
      %v2043 = vadd.f32 %v1773, %v2042
      %v2044 = vpop.f32.mrf.mxu0
      %2045 = vmatprep.mubr.f32.mxu0 0.0
      %2046 = vmatmul.mubr.f32.gmra.mxu0 %v1840
      %v2047 = vpop.f32.mrf.mxu0
      %v2048 = vadd.f32 %v1773, %v2047
      %v2049 = vpop.f32.mrf.mxu0
      %2050 = vmatprep.mubr.f32.mxu0 0.0
      %2051 = vmatmul.mubr.f32.gmra.mxu0 %v1843
      %v2052 = vpop.f32.mrf.mxu0
      %v2053 = vadd.f32 %v1773, %v2052
      %v2054 = vpop.f32.mrf.mxu0
      %2055 = vmatprep.mubr.f32.mxu0 0.0
      %2056 = vmatmul.mubr.f32.gmra.mxu0 %v1846
      %v2057 = vpop.f32.mrf.mxu0
      %v2058 = vadd.f32 %v1773, %v2057
      %v2059 = vpop.f32.mrf.mxu0
      %2060 = vmatprep.mubr.f32.mxu0 0.0
      %2061 = vmatmul.mubr.f32.gmra.mxu0 %v1849
      %v2062 = vpop.f32.mrf.mxu0
      %v2063 = vadd.f32 %v1773, %v2062
      %v2064 = vpop.f32.mrf.mxu0
      %2065 = vmatprep.mubr.f32.mxu0 0.0
      %2066 = vmatmul.mubr.f32.gmra.mxu0 %v1852
      %v2067 = vpop.f32.mrf.mxu0
      %v2068 = vadd.f32 %v1773, %v2067
      %v2069 = vpop.f32.mrf.mxu0
      %2070 = vmatprep.mubr.f32.mxu0 0.0
      %2071 = vmatmul.mubr.f32.gmra.mxu0 %v1855
      %v2072 = vpop.f32.mrf.mxu0
      %v2073 = vadd.f32 %v1773, %v2072
      %v2074 = vpop.f32.mrf.mxu0
      %2075 = vmatprep.mubr.f32.mxu0 0.0
      %2076 = vmatmul.mubr.f32.gmra.mxu0 %v1858
      %v2077 = vpop.f32.mrf.mxu0
      %v2078 = vadd.f32 %v1773, %v2077
      %v2079 = vpop.f32.mrf.mxu0
      %2080 = vmatprep.mubr.f32.mxu0 0.0
      %2081 = vmatmul.mubr.f32.gmra.mxu0 %v1861
      %v2082 = vpop.f32.mrf.mxu0
      %v2083 = vadd.f32 %v1773, %v2082
      %v2084 = vpop.f32.mrf.mxu0
      %2085 = vmatprep.mubr.f32.mxu0 0.0
      %2086 = vmatmul.mubr.f32.gmra.mxu0 %v1864
      %v2087 = vpop.f32.mrf.mxu0
      %v2088 = vadd.f32 %v1773, %v2087
      %v2089 = vpop.f32.mrf.mxu0
      %2090 = vmatprep.mubr.f32.mxu0 0.0
      %2091 = vmatmul.mubr.f32.gmra.mxu0 %v1867
      %v2092 = vpop.f32.mrf.mxu0
      %v2093 = vadd.f32 %v1773, %v2092
      %v2094 = vpop.f32.mrf.mxu0
      %2095 = vmatprep.mubr.f32.mxu0 0.0
      %2096 = vmatmul.mubr.f32.gmra.mxu0 %v1870
      %v2097 = vpop.f32.mrf.mxu0
      %v2098 = vadd.f32 %v1773, %v2097
      %v2099 = vpop.f32.mrf.mxu0
      %2100 = vdwg.mxu0
      %v2101 = vmax.f32 %v1943, 0.0
      %v2102 = vmax.f32 %v1948, 0.0
      %v2103 = vmax.f32 %v1953, 0.0
      %v2104 = vmax.f32 %v1958, 0.0
      %v2105 = vmax.f32 %v1963, 0.0
      %v2106 = vmax.f32 %v1968, 0.0
      %v2107 = vmax.f32 %v1973, 0.0
      %v2108 = vmax.f32 %v1978, 0.0
      %v2109 = vmax.f32 %v1983, 0.0
      %v2110 = vmax.f32 %v1988, 0.0
      %v2111 = vmax.f32 %v1993, 0.0
      %v2112 = vmax.f32 %v1998, 0.0
      %v2113 = vmax.f32 %v2003, 0.0
      %v2114 = vmax.f32 %v2008, 0.0
      %v2115 = vmax.f32 %v2013, 0.0
      %v2116 = vmax.f32 %v2018, 0.0
      %v2117 = vmax.f32 %v2023, 0.0
      %v2118 = vmax.f32 %v2028, 0.0
      %v2119 = vmax.f32 %v2033, 0.0
      %v2120 = vmax.f32 %v2038, 0.0
      %v2121 = vmax.f32 %v2043, 0.0
      %v2122 = vmax.f32 %v2048, 0.0
      %v2123 = vmax.f32 %v2053, 0.0
      %v2124 = vmax.f32 %v2058, 0.0
      %v2125 = vmax.f32 %v2063, 0.0
      %v2126 = vmax.f32 %v2068, 0.0
      %v2127 = vmax.f32 %v2073, 0.0
      %v2128 = vmax.f32 %v2078, 0.0
      %v2129 = vmax.f32 %v2083, 0.0
      %v2130 = vmax.f32 %v2088, 0.0
      %v2131 = vmax.f32 %v2093, 0.0
      %v2132 = vmax.f32 %v2098, 0.0
      %v2133 = vld [vmem:[%s4] sm:$0xff]
      %v2134 = vld [vmem:[%s4 + $0x8] sm:$0xff]
      %v2135 = vld [vmem:[%s4 + $0x10] sm:$0xff]
      %v2136 = vld [vmem:[%s4 + $0x18] sm:$0xff]
      %v2137 = vld [vmem:[%s4 + $0x20] sm:$0xff]
      %v2138 = vld [vmem:[%s4 + $0x28] sm:$0xff]
      %v2139 = vld [vmem:[%s4 + $0x30] sm:$0xff]
      %v2140 = vld [vmem:[%s4 + $0x38] sm:$0xff]
      %v2141 = vld [vmem:[%s4 + $0x40] sm:$0xff]
      %v2142 = vld [vmem:[%s5] sm:$0x1]
      %v2175 = vrot.slane %v2101, 7
      %v2176 = vrot.slane %v2102, 7
      %v2177 = vsel %vm397, %v2175, %v2176
      %v2178 = vrot.slane %v2103, 7
      %v2179 = vrot.slane %v2104, 7
      %v2180 = vsel %vm397, %v2178, %v2179
      %v2181 = vrot.slane %v2105, 7
      %v2182 = vrot.slane %v2106, 7
      %v2183 = vsel %vm397, %v2181, %v2182
      %v2184 = vrot.slane %v2107, 7
      %v2185 = vrot.slane %v2108, 7
      %v2186 = vsel %vm397, %v2184, %v2185
      %v2187 = vrot.slane %v2109, 7
      %v2188 = vrot.slane %v2110, 7
      %v2189 = vsel %vm397, %v2187, %v2188
      %v2190 = vrot.slane %v2111, 7
      %v2191 = vrot.slane %v2112, 7
      %v2192 = vsel %vm397, %v2190, %v2191
      %v2193 = vrot.slane %v2113, 7
      %v2194 = vrot.slane %v2114, 7
      %v2195 = vsel %vm397, %v2193, %v2194
      %v2196 = vrot.slane %v2115, 7
      %v2197 = vrot.slane %v2116, 7
      %v2198 = vsel %vm397, %v2196, %v2197
      %v2199 = vrot.slane %v2117, 7
      %v2200 = vrot.slane %v2118, 7
      %v2201 = vsel %vm397, %v2199, %v2200
      %v2202 = vrot.slane %v2119, 7
      %v2203 = vrot.slane %v2120, 7
      %v2204 = vsel %vm397, %v2202, %v2203
      %v2205 = vrot.slane %v2121, 7
      %v2206 = vrot.slane %v2122, 7
      %v2207 = vsel %vm397, %v2205, %v2206
      %v2208 = vrot.slane %v2123, 7
      %v2209 = vrot.slane %v2124, 7
      %v2210 = vsel %vm397, %v2208, %v2209
      %v2211 = vrot.slane %v2125, 7
      %v2212 = vrot.slane %v2126, 7
      %v2213 = vsel %vm397, %v2211, %v2212
      %v2214 = vrot.slane %v2127, 7
      %v2215 = vrot.slane %v2128, 7
      %v2216 = vsel %vm397, %v2214, %v2215
      %v2217 = vrot.slane %v2129, 7
      %v2218 = vrot.slane %v2130, 7
      %v2219 = vsel %vm397, %v2217, %v2218
      %v2220 = vrot.slane %v2131, 7
      %v2221 = vrot.slane %v2132, 7
      %v2222 = vsel %vm397, %v2220, %v2221
      %v2270 = vsel %vm397, 0.0, %v2175
      %v2271 = vsel %vm397, 0.0, %v2178
      %v2272 = vsel %vm397, 0.0, %v2181
      %v2273 = vsel %vm397, 0.0, %v2184
      %v2274 = vsel %vm397, 0.0, %v2187
      %v2275 = vsel %vm397, 0.0, %v2190
      %v2276 = vsel %vm397, 0.0, %v2193
      %v2277 = vsel %vm397, 0.0, %v2196
      %v2278 = vsel %vm397, 0.0, %v2199
      %v2279 = vsel %vm397, 0.0, %v2202
      %v2280 = vsel %vm397, 0.0, %v2205
      %v2281 = vsel %vm397, 0.0, %v2208
      %v2282 = vsel %vm397, 0.0, %v2211
      %v2283 = vsel %vm397, 0.0, %v2214
      %v2284 = vsel %vm397, 0.0, %v2217
      %v2285 = vsel %vm397, 0.0, %v2220
      %v2286 = vsel %vm397, %v2176, 0.0
      %v2287 = vsel %vm397, %v2179, 0.0
      %v2288 = vsel %vm397, %v2182, 0.0
      %v2289 = vsel %vm397, %v2185, 0.0
      %v2290 = vsel %vm397, %v2188, 0.0
      %v2291 = vsel %vm397, %v2191, 0.0
      %v2292 = vsel %vm397, %v2194, 0.0
      %v2293 = vsel %vm397, %v2197, 0.0
      %v2294 = vsel %vm397, %v2200, 0.0
      %v2295 = vsel %vm397, %v2203, 0.0
      %v2296 = vsel %vm397, %v2206, 0.0
      %v2297 = vsel %vm397, %v2209, 0.0
      %v2298 = vsel %vm397, %v2212, 0.0
      %v2299 = vsel %vm397, %v2215, 0.0
      %v2300 = vsel %vm397, %v2218, 0.0
      %v2301 = vsel %vm397, %v2221, 0.0
      %v2332 = vrot.slane %v2270, 1
      %v2333 = vrot.slane %v2177, 1
      %v2334 = vsel %vm563, %v2332, %v2333
      %v2335 = vrot.slane %v2286, 1
      %v2336 = vsel %vm563, %v2333, %v2335
      %v2337 = vrot.slane %v2271, 1
      %v2338 = vrot.slane %v2180, 1
      %v2339 = vsel %vm563, %v2337, %v2338
      %v2340 = vrot.slane %v2287, 1
      %v2341 = vsel %vm563, %v2338, %v2340
      %v2342 = vrot.slane %v2272, 1
      %v2343 = vrot.slane %v2183, 1
      %v2344 = vsel %vm563, %v2342, %v2343
      %v2345 = vrot.slane %v2288, 1
      %v2346 = vsel %vm563, %v2343, %v2345
      %v2347 = vrot.slane %v2273, 1
      %v2348 = vrot.slane %v2186, 1
      %v2349 = vsel %vm563, %v2347, %v2348
      %v2350 = vrot.slane %v2289, 1
      %v2351 = vsel %vm563, %v2348, %v2350
      %v2352 = vrot.slane %v2274, 1
      %v2353 = vrot.slane %v2189, 1
      %v2354 = vsel %vm563, %v2352, %v2353
      %v2355 = vrot.slane %v2290, 1
      %v2356 = vsel %vm563, %v2353, %v2355
      %v2357 = vrot.slane %v2275, 1
      %v2358 = vrot.slane %v2192, 1
      %v2359 = vsel %vm563, %v2357, %v2358
      %v2360 = vrot.slane %v2291, 1
      %v2361 = vsel %vm563, %v2358, %v2360
      %v2362 = vrot.slane %v2276, 1
      %v2363 = vrot.slane %v2195, 1
      %v2364 = vsel %vm563, %v2362, %v2363
      %v2365 = vrot.slane %v2292, 1
      %v2366 = vsel %vm563, %v2363, %v2365
      %v2367 = vrot.slane %v2277, 1
      %v2368 = vrot.slane %v2198, 1
      %v2369 = vsel %vm563, %v2367, %v2368
      %v2370 = vrot.slane %v2293, 1
      %v2371 = vsel %vm563, %v2368, %v2370
      %v2372 = vrot.slane %v2278, 1
      %v2373 = vrot.slane %v2201, 1
      %v2374 = vsel %vm563, %v2372, %v2373
      %v2375 = vrot.slane %v2294, 1
      %v2376 = vsel %vm563, %v2373, %v2375
      %v2377 = vrot.slane %v2279, 1
      %v2378 = vrot.slane %v2204, 1
      %v2379 = vsel %vm563, %v2377, %v2378
      %v2380 = vrot.slane %v2295, 1
      %v2381 = vsel %vm563, %v2378, %v2380
      %v2382 = vrot.slane %v2280, 1
      %v2383 = vrot.slane %v2207, 1
      %v2384 = vsel %vm563, %v2382, %v2383
      %v2385 = vrot.slane %v2296, 1
      %v2386 = vsel %vm563, %v2383, %v2385
      %v2387 = vrot.slane %v2281, 1
      %v2388 = vrot.slane %v2210, 1
      %v2389 = vsel %vm563, %v2387, %v2388
      %v2390 = vrot.slane %v2297, 1
      %v2391 = vsel %vm563, %v2388, %v2390
      %v2392 = vrot.slane %v2282, 1
      %v2393 = vrot.slane %v2213, 1
      %v2394 = vsel %vm563, %v2392, %v2393
      %v2395 = vrot.slane %v2298, 1
      %v2396 = vsel %vm563, %v2393, %v2395
      %v2397 = vrot.slane %v2283, 1
      %v2398 = vrot.slane %v2216, 1
      %v2399 = vsel %vm563, %v2397, %v2398
      %v2400 = vrot.slane %v2299, 1
      %v2401 = vsel %vm563, %v2398, %v2400
      %v2402 = vrot.slane %v2284, 1
      %v2403 = vrot.slane %v2219, 1
      %v2404 = vsel %vm563, %v2402, %v2403
      %v2405 = vrot.slane %v2300, 1
      %v2406 = vsel %vm563, %v2403, %v2405
      %2407 = vrot.lane.b32.xlu0 %v566, 8
      %v2408 = vpop.permute.xlu0 %2407
      %2409 = vrot.lane.b32.xlu0 %v568, 8
      %v2410 = vpop.permute.xlu0 %2409
      %2411 = vrot.lane.b32.xlu0 %v2334, 8
      %v2412 = vpop.permute.xlu0 %2411
      %2413 = vrot.lane.b32.xlu0 %v2336, 8
      %v2414 = vpop.permute.xlu0 %2413
      %2415 = vrot.lane.b32.xlu0 %v2339, 8
      %v2416 = vpop.permute.xlu0 %2415
      %2417 = vrot.lane.b32.xlu0 %v2341, 8
      %v2418 = vpop.permute.xlu0 %2417
      %2419 = vrot.lane.b32.xlu0 %v2344, 8
      %v2420 = vpop.permute.xlu0 %2419
      %2421 = vrot.lane.b32.xlu0 %v2346, 8
      %v2422 = vpop.permute.xlu0 %2421
      %2423 = vrot.lane.b32.xlu0 %v2349, 8
      %v2424 = vpop.permute.xlu0 %2423
      %2425 = vrot.lane.b32.xlu0 %v2351, 8
      %v2426 = vpop.permute.xlu0 %2425
      %2427 = vrot.lane.b32.xlu0 %v2354, 8
      %v2428 = vpop.permute.xlu0 %2427
      %2429 = vrot.lane.b32.xlu0 %v2356, 8
      %v2430 = vpop.permute.xlu0 %2429
      %2431 = vrot.lane.b32.xlu0 %v2359, 8
      %v2432 = vpop.permute.xlu0 %2431
      %2433 = vrot.lane.b32.xlu0 %v2361, 8
      %v2434 = vpop.permute.xlu0 %2433
      %2435 = vrot.lane.b32.xlu0 %v2364, 8
      %v2436 = vpop.permute.xlu0 %2435
      %2437 = vrot.lane.b32.xlu0 %v2366, 8
      %v2438 = vpop.permute.xlu0 %2437
      %2439 = vrot.lane.b32.xlu0 %v2369, 8
      %v2440 = vpop.permute.xlu0 %2439
      %2441 = vrot.lane.b32.xlu0 %v2371, 8
      %v2442 = vpop.permute.xlu0 %2441
      %2443 = vrot.lane.b32.xlu0 %v2374, 8
      %v2444 = vpop.permute.xlu0 %2443
      %2445 = vrot.lane.b32.xlu0 %v2376, 8
      %v2446 = vpop.permute.xlu0 %2445
      %2447 = vrot.lane.b32.xlu0 %v2379, 8
      %v2448 = vpop.permute.xlu0 %2447
      %2449 = vrot.lane.b32.xlu0 %v2381, 8
      %v2450 = vpop.permute.xlu0 %2449
      %2451 = vrot.lane.b32.xlu0 %v2384, 8
      %v2452 = vpop.permute.xlu0 %2451
      %2453 = vrot.lane.b32.xlu0 %v2386, 8
      %v2454 = vpop.permute.xlu0 %2453
      %2455 = vrot.lane.b32.xlu0 %v2389, 8
      %v2456 = vpop.permute.xlu0 %2455
      %2457 = vrot.lane.b32.xlu0 %v2391, 8
      %v2458 = vpop.permute.xlu0 %2457
      %2459 = vrot.lane.b32.xlu0 %v2394, 8
      %v2460 = vpop.permute.xlu0 %2459
      %2461 = vrot.lane.b32.xlu0 %v2396, 8
      %v2462 = vpop.permute.xlu0 %2461
      %2463 = vrot.lane.b32.xlu0 %v2399, 8
      %v2464 = vpop.permute.xlu0 %2463
      %2465 = vrot.lane.b32.xlu0 %v2401, 8
      %v2466 = vpop.permute.xlu0 %2465
      %2467 = vrot.lane.b32.xlu0 %v2404, 8
      %v2468 = vpop.permute.xlu0 %2467
      %2469 = vrot.lane.b32.xlu0 %v2406, 8
      %v2470 = vpop.permute.xlu0 %2469
      %v2503 = vrot.slane %v2270, 2
      %v2504 = vrot.slane %v2177, 2
      %v2505 = vsel %vm740, %v2503, %v2504
      %v2506 = vrot.slane %v2286, 2
      %v2507 = vsel %vm740, %v2504, %v2506
      %v2508 = vrot.slane %v2271, 2
      %v2509 = vrot.slane %v2180, 2
      %v2510 = vsel %vm740, %v2508, %v2509
      %v2511 = vrot.slane %v2287, 2
      %v2512 = vsel %vm740, %v2509, %v2511
      %v2513 = vrot.slane %v2272, 2
      %v2514 = vrot.slane %v2183, 2
      %v2515 = vsel %vm740, %v2513, %v2514
      %v2516 = vrot.slane %v2288, 2
      %v2517 = vsel %vm740, %v2514, %v2516
      %v2518 = vrot.slane %v2273, 2
      %v2519 = vrot.slane %v2186, 2
      %v2520 = vsel %vm740, %v2518, %v2519
      %v2521 = vrot.slane %v2289, 2
      %v2522 = vsel %vm740, %v2519, %v2521
      %v2523 = vrot.slane %v2274, 2
      %v2524 = vrot.slane %v2189, 2
      %v2525 = vsel %vm740, %v2523, %v2524
      %v2526 = vrot.slane %v2290, 2
      %v2527 = vsel %vm740, %v2524, %v2526
      %v2528 = vrot.slane %v2275, 2
      %v2529 = vrot.slane %v2192, 2
      %v2530 = vsel %vm740, %v2528, %v2529
      %v2531 = vrot.slane %v2291, 2
      %v2532 = vsel %vm740, %v2529, %v2531
      %v2533 = vrot.slane %v2276, 2
      %v2534 = vrot.slane %v2195, 2
      %v2535 = vsel %vm740, %v2533, %v2534
      %v2536 = vrot.slane %v2292, 2
      %v2537 = vsel %vm740, %v2534, %v2536
      %v2538 = vrot.slane %v2277, 2
      %v2539 = vrot.slane %v2198, 2
      %v2540 = vsel %vm740, %v2538, %v2539
      %v2541 = vrot.slane %v2293, 2
      %v2542 = vsel %vm740, %v2539, %v2541
      %v2543 = vrot.slane %v2278, 2
      %v2544 = vrot.slane %v2201, 2
      %v2545 = vsel %vm740, %v2543, %v2544
      %v2546 = vrot.slane %v2294, 2
      %v2547 = vsel %vm740, %v2544, %v2546
      %v2548 = vrot.slane %v2279, 2
      %v2549 = vrot.slane %v2204, 2
      %v2550 = vsel %vm740, %v2548, %v2549
      %v2551 = vrot.slane %v2295, 2
      %v2552 = vsel %vm740, %v2549, %v2551
      %v2553 = vrot.slane %v2280, 2
      %v2554 = vrot.slane %v2207, 2
      %v2555 = vsel %vm740, %v2553, %v2554
      %v2556 = vrot.slane %v2296, 2
      %v2557 = vsel %vm740, %v2554, %v2556
      %v2558 = vrot.slane %v2281, 2
      %v2559 = vrot.slane %v2210, 2
      %v2560 = vsel %vm740, %v2558, %v2559
      %v2561 = vrot.slane %v2297, 2
      %v2562 = vsel %vm740, %v2559, %v2561
      %v2563 = vrot.slane %v2282, 2
      %v2564 = vrot.slane %v2213, 2
      %v2565 = vsel %vm740, %v2563, %v2564
      %v2566 = vrot.slane %v2298, 2
      %v2567 = vsel %vm740, %v2564, %v2566
      %v2568 = vrot.slane %v2283, 2
      %v2569 = vrot.slane %v2216, 2
      %v2570 = vsel %vm740, %v2568, %v2569
      %v2571 = vrot.slane %v2299, 2
      %v2572 = vsel %vm740, %v2569, %v2571
      %v2573 = vrot.slane %v2284, 2
      %v2574 = vrot.slane %v2219, 2
      %v2575 = vsel %vm740, %v2573, %v2574
      %v2576 = vrot.slane %v2300, 2
      %v2577 = vsel %vm740, %v2574, %v2576
      %2578 = vrot.lane.b32.xlu0 %v743, 16
      %v2579 = vpop.permute.xlu0 %2578
      %2580 = vrot.lane.b32.xlu0 %v745, 16
      %v2581 = vpop.permute.xlu0 %2580
      %2582 = vrot.lane.b32.xlu0 %v2505, 16
      %v2583 = vpop.permute.xlu0 %2582
      %2584 = vrot.lane.b32.xlu0 %v2507, 16
      %v2585 = vpop.permute.xlu0 %2584
      %2586 = vrot.lane.b32.xlu0 %v2510, 16
      %v2587 = vpop.permute.xlu0 %2586
      %2588 = vrot.lane.b32.xlu0 %v2512, 16
      %v2589 = vpop.permute.xlu0 %2588
      %2590 = vrot.lane.b32.xlu0 %v2515, 16
      %v2591 = vpop.permute.xlu0 %2590
      %2592 = vrot.lane.b32.xlu0 %v2517, 16
      %v2593 = vpop.permute.xlu0 %2592
      %2594 = vrot.lane.b32.xlu0 %v2520, 16
      %v2595 = vpop.permute.xlu0 %2594
      %2596 = vrot.lane.b32.xlu0 %v2522, 16
      %v2597 = vpop.permute.xlu0 %2596
      %2598 = vrot.lane.b32.xlu0 %v2525, 16
      %v2599 = vpop.permute.xlu0 %2598
      %2600 = vrot.lane.b32.xlu0 %v2527, 16
      %v2601 = vpop.permute.xlu0 %2600
      %2602 = vrot.lane.b32.xlu0 %v2530, 16
      %v2603 = vpop.permute.xlu0 %2602
      %2604 = vrot.lane.b32.xlu0 %v2532, 16
      %v2605 = vpop.permute.xlu0 %2604
      %2606 = vrot.lane.b32.xlu0 %v2535, 16
      %v2607 = vpop.permute.xlu0 %2606
      %2608 = vrot.lane.b32.xlu0 %v2537, 16
      %v2609 = vpop.permute.xlu0 %2608
      %2610 = vrot.lane.b32.xlu0 %v2540, 16
      %v2611 = vpop.permute.xlu0 %2610
      %2612 = vrot.lane.b32.xlu0 %v2542, 16
      %v2613 = vpop.permute.xlu0 %2612
      %2614 = vrot.lane.b32.xlu0 %v2545, 16
      %v2615 = vpop.permute.xlu0 %2614
      %2616 = vrot.lane.b32.xlu0 %v2547, 16
      %v2617 = vpop.permute.xlu0 %2616
      %2618 = vrot.lane.b32.xlu0 %v2550, 16
      %v2619 = vpop.permute.xlu0 %2618
      %2620 = vrot.lane.b32.xlu0 %v2552, 16
      %v2621 = vpop.permute.xlu0 %2620
      %2622 = vrot.lane.b32.xlu0 %v2555, 16
      %v2623 = vpop.permute.xlu0 %2622
      %2624 = vrot.lane.b32.xlu0 %v2557, 16
      %v2625 = vpop.permute.xlu0 %2624
      %2626 = vrot.lane.b32.xlu0 %v2560, 16
      %v2627 = vpop.permute.xlu0 %2626
      %2628 = vrot.lane.b32.xlu0 %v2562, 16
      %v2629 = vpop.permute.xlu0 %2628
      %2630 = vrot.lane.b32.xlu0 %v2565, 16
      %v2631 = vpop.permute.xlu0 %2630
      %2632 = vrot.lane.b32.xlu0 %v2567, 16
      %v2633 = vpop.permute.xlu0 %2632
      %2634 = vrot.lane.b32.xlu0 %v2570, 16
      %v2635 = vpop.permute.xlu0 %2634
      %2636 = vrot.lane.b32.xlu0 %v2572, 16
      %v2637 = vpop.permute.xlu0 %2636
      %2638 = vrot.lane.b32.xlu0 %v2575, 16
      %v2639 = vpop.permute.xlu0 %2638
      %2640 = vrot.lane.b32.xlu0 %v2577, 16
      %v2641 = vpop.permute.xlu0 %2640
      %2675 = vrot.lane.b32.xlu0 %v2270, 24
      %v2676 = vpop.permute.xlu0 %2675
      %2677 = vrot.lane.b32.xlu0 %v2177, 24
      %v2678 = vpop.permute.xlu0 %2677
      %2679 = vrot.lane.b32.xlu0 %v2271, 24
      %v2680 = vpop.permute.xlu0 %2679
      %2681 = vrot.lane.b32.xlu0 %v2180, 24
      %v2682 = vpop.permute.xlu0 %2681
      %2683 = vrot.lane.b32.xlu0 %v2272, 24
      %v2684 = vpop.permute.xlu0 %2683
      %2685 = vrot.lane.b32.xlu0 %v2183, 24
      %v2686 = vpop.permute.xlu0 %2685
      %2687 = vrot.lane.b32.xlu0 %v2273, 24
      %v2688 = vpop.permute.xlu0 %2687
      %2689 = vrot.lane.b32.xlu0 %v2186, 24
      %v2690 = vpop.permute.xlu0 %2689
      %2691 = vrot.lane.b32.xlu0 %v2274, 24
      %v2692 = vpop.permute.xlu0 %2691
      %2693 = vrot.lane.b32.xlu0 %v2189, 24
      %v2694 = vpop.permute.xlu0 %2693
      %2695 = vrot.lane.b32.xlu0 %v2275, 24
      %v2696 = vpop.permute.xlu0 %2695
      %2697 = vrot.lane.b32.xlu0 %v2192, 24
      %v2698 = vpop.permute.xlu0 %2697
      %2699 = vrot.lane.b32.xlu0 %v2276, 24
      %v2700 = vpop.permute.xlu0 %2699
      %2701 = vrot.lane.b32.xlu0 %v2195, 24
      %v2702 = vpop.permute.xlu0 %2701
      %2703 = vrot.lane.b32.xlu0 %v2277, 24
      %v2704 = vpop.permute.xlu0 %2703
      %2705 = vrot.lane.b32.xlu0 %v2198, 24
      %v2706 = vpop.permute.xlu0 %2705
      %2707 = vrot.lane.b32.xlu0 %v2278, 24
      %v2708 = vpop.permute.xlu0 %2707
      %2709 = vrot.lane.b32.xlu0 %v2201, 24
      %v2710 = vpop.permute.xlu0 %2709
      %2711 = vrot.lane.b32.xlu0 %v2279, 24
      %v2712 = vpop.permute.xlu0 %2711
      %2713 = vrot.lane.b32.xlu0 %v2204, 24
      %v2714 = vpop.permute.xlu0 %2713
      %2715 = vrot.lane.b32.xlu0 %v2280, 24
      %v2716 = vpop.permute.xlu0 %2715
      %2717 = vrot.lane.b32.xlu0 %v2207, 24
      %v2718 = vpop.permute.xlu0 %2717
      %2719 = vrot.lane.b32.xlu0 %v2281, 24
      %v2720 = vpop.permute.xlu0 %2719
      %2721 = vrot.lane.b32.xlu0 %v2210, 24
      %v2722 = vpop.permute.xlu0 %2721
      %2723 = vrot.lane.b32.xlu0 %v2282, 24
      %v2724 = vpop.permute.xlu0 %2723
      %2725 = vrot.lane.b32.xlu0 %v2213, 24
      %v2726 = vpop.permute.xlu0 %2725
      %2727 = vrot.lane.b32.xlu0 %v2283, 24
      %v2728 = vpop.permute.xlu0 %2727
      %2729 = vrot.lane.b32.xlu0 %v2216, 24
      %v2730 = vpop.permute.xlu0 %2729
      %2731 = vrot.lane.b32.xlu0 %v2284, 24
      %v2732 = vpop.permute.xlu0 %2731
      %2733 = vrot.lane.b32.xlu0 %v2219, 24
      %v2734 = vpop.permute.xlu0 %2733
      %2735 = vrot.lane.b32.xlu0 %v2285, 24
      %v2736 = vpop.permute.xlu0 %2735
      %2737 = vrot.lane.b32.xlu0 %v2222, 24
      %v2738 = vpop.permute.xlu0 %2737
      %v2772 = vrot.slane %v2285, 1
      %v2773 = vrot.slane %v2222, 1
      %v2774 = vsel %vm563, %v2772, %v2773
      %v2775 = vrot.slane %v2301, 1
      %v2776 = vsel %vm563, %v2773, %v2775
      %2777 = vrot.lane.b32.xlu0 %v2334, 32
      %v2778 = vpop.permute.xlu0 %2777
      %2779 = vrot.lane.b32.xlu0 %v2336, 32
      %v2780 = vpop.permute.xlu0 %2779
      %2781 = vrot.lane.b32.xlu0 %v2339, 32
      %v2782 = vpop.permute.xlu0 %2781
      %2783 = vrot.lane.b32.xlu0 %v2341, 32
      %v2784 = vpop.permute.xlu0 %2783
      %2785 = vrot.lane.b32.xlu0 %v2344, 32
      %v2786 = vpop.permute.xlu0 %2785
      %2787 = vrot.lane.b32.xlu0 %v2346, 32
      %v2788 = vpop.permute.xlu0 %2787
      %2789 = vrot.lane.b32.xlu0 %v2349, 32
      %v2790 = vpop.permute.xlu0 %2789
      %2791 = vrot.lane.b32.xlu0 %v2351, 32
      %v2792 = vpop.permute.xlu0 %2791
      %2793 = vrot.lane.b32.xlu0 %v2354, 32
      %v2794 = vpop.permute.xlu0 %2793
      %2795 = vrot.lane.b32.xlu0 %v2356, 32
      %v2796 = vpop.permute.xlu0 %2795
      %2797 = vrot.lane.b32.xlu0 %v2359, 32
      %v2798 = vpop.permute.xlu0 %2797
      %2799 = vrot.lane.b32.xlu0 %v2361, 32
      %v2800 = vpop.permute.xlu0 %2799
      %2801 = vrot.lane.b32.xlu0 %v2364, 32
      %v2802 = vpop.permute.xlu0 %2801
      %2803 = vrot.lane.b32.xlu0 %v2366, 32
      %v2804 = vpop.permute.xlu0 %2803
      %2805 = vrot.lane.b32.xlu0 %v2369, 32
      %v2806 = vpop.permute.xlu0 %2805
      %2807 = vrot.lane.b32.xlu0 %v2371, 32
      %v2808 = vpop.permute.xlu0 %2807
      %2809 = vrot.lane.b32.xlu0 %v2374, 32
      %v2810 = vpop.permute.xlu0 %2809
      %2811 = vrot.lane.b32.xlu0 %v2376, 32
      %v2812 = vpop.permute.xlu0 %2811
      %2813 = vrot.lane.b32.xlu0 %v2379, 32
      %v2814 = vpop.permute.xlu0 %2813
      %2815 = vrot.lane.b32.xlu0 %v2381, 32
      %v2816 = vpop.permute.xlu0 %2815
      %2817 = vrot.lane.b32.xlu0 %v2384, 32
      %v2818 = vpop.permute.xlu0 %2817
      %2819 = vrot.lane.b32.xlu0 %v2386, 32
      %v2820 = vpop.permute.xlu0 %2819
      %2821 = vrot.lane.b32.xlu0 %v2389, 32
      %v2822 = vpop.permute.xlu0 %2821
      %2823 = vrot.lane.b32.xlu0 %v2391, 32
      %v2824 = vpop.permute.xlu0 %2823
      %2825 = vrot.lane.b32.xlu0 %v2394, 32
      %v2826 = vpop.permute.xlu0 %2825
      %2827 = vrot.lane.b32.xlu0 %v2396, 32
      %v2828 = vpop.permute.xlu0 %2827
      %2829 = vrot.lane.b32.xlu0 %v2399, 32
      %v2830 = vpop.permute.xlu0 %2829
      %2831 = vrot.lane.b32.xlu0 %v2401, 32
      %v2832 = vpop.permute.xlu0 %2831
      %2833 = vrot.lane.b32.xlu0 %v2404, 32
      %v2834 = vpop.permute.xlu0 %2833
      %2835 = vrot.lane.b32.xlu0 %v2406, 32
      %v2836 = vpop.permute.xlu0 %2835
      %2837 = vrot.lane.b32.xlu0 %v2774, 32
      %v2838 = vpop.permute.xlu0 %2837
      %2839 = vrot.lane.b32.xlu0 %v2776, 32
      %v2840 = vpop.permute.xlu0 %2839
      %v2873 = vrot.slane %v2285, 2
      %v2874 = vrot.slane %v2222, 2
      %v2875 = vsel %vm740, %v2873, %v2874
      %v2876 = vrot.slane %v2301, 2
      %v2877 = vsel %vm740, %v2874, %v2876
      %2878 = vrot.lane.b32.xlu0 %v2505, 40
      %v2879 = vpop.permute.xlu0 %2878
      %2880 = vrot.lane.b32.xlu0 %v2507, 40
      %v2881 = vpop.permute.xlu0 %2880
      %2882 = vrot.lane.b32.xlu0 %v2510, 40
      %v2883 = vpop.permute.xlu0 %2882
      %2884 = vrot.lane.b32.xlu0 %v2512, 40
      %v2885 = vpop.permute.xlu0 %2884
      %2886 = vrot.lane.b32.xlu0 %v2515, 40
      %v2887 = vpop.permute.xlu0 %2886
      %2888 = vrot.lane.b32.xlu0 %v2517, 40
      %v2889 = vpop.permute.xlu0 %2888
      %2890 = vrot.lane.b32.xlu0 %v2520, 40
      %v2891 = vpop.permute.xlu0 %2890
      %2892 = vrot.lane.b32.xlu0 %v2522, 40
      %v2893 = vpop.permute.xlu0 %2892
      %2894 = vrot.lane.b32.xlu0 %v2525, 40
      %v2895 = vpop.permute.xlu0 %2894
      %2896 = vrot.lane.b32.xlu0 %v2527, 40
      %v2897 = vpop.permute.xlu0 %2896
      %2898 = vrot.lane.b32.xlu0 %v2530, 40
      %v2899 = vpop.permute.xlu0 %2898
      %2900 = vrot.lane.b32.xlu0 %v2532, 40
      %v2901 = vpop.permute.xlu0 %2900
      %2902 = vrot.lane.b32.xlu0 %v2535, 40
      %v2903 = vpop.permute.xlu0 %2902
      %2904 = vrot.lane.b32.xlu0 %v2537, 40
      %v2905 = vpop.permute.xlu0 %2904
      %2906 = vrot.lane.b32.xlu0 %v2540, 40
      %v2907 = vpop.permute.xlu0 %2906
      %2908 = vrot.lane.b32.xlu0 %v2542, 40
      %v2909 = vpop.permute.xlu0 %2908
      %2910 = vrot.lane.b32.xlu0 %v2545, 40
      %v2911 = vpop.permute.xlu0 %2910
      %2912 = vrot.lane.b32.xlu0 %v2547, 40
      %v2913 = vpop.permute.xlu0 %2912
      %2914 = vrot.lane.b32.xlu0 %v2550, 40
      %v2915 = vpop.permute.xlu0 %2914
      %2916 = vrot.lane.b32.xlu0 %v2552, 40
      %v2917 = vpop.permute.xlu0 %2916
      %2918 = vrot.lane.b32.xlu0 %v2555, 40
      %v2919 = vpop.permute.xlu0 %2918
      %2920 = vrot.lane.b32.xlu0 %v2557, 40
      %v2921 = vpop.permute.xlu0 %2920
      %2922 = vrot.lane.b32.xlu0 %v2560, 40
      %v2923 = vpop.permute.xlu0 %2922
      %2924 = vrot.lane.b32.xlu0 %v2562, 40
      %v2925 = vpop.permute.xlu0 %2924
      %2926 = vrot.lane.b32.xlu0 %v2565, 40
      %v2927 = vpop.permute.xlu0 %2926
      %2928 = vrot.lane.b32.xlu0 %v2567, 40
      %v2929 = vpop.permute.xlu0 %2928
      %2930 = vrot.lane.b32.xlu0 %v2570, 40
      %v2931 = vpop.permute.xlu0 %2930
      %2932 = vrot.lane.b32.xlu0 %v2572, 40
      %v2933 = vpop.permute.xlu0 %2932
      %2934 = vrot.lane.b32.xlu0 %v2575, 40
      %v2935 = vpop.permute.xlu0 %2934
      %2936 = vrot.lane.b32.xlu0 %v2577, 40
      %v2937 = vpop.permute.xlu0 %2936
      %2938 = vrot.lane.b32.xlu0 %v2875, 40
      %v2939 = vpop.permute.xlu0 %2938
      %2940 = vrot.lane.b32.xlu0 %v2877, 40
      %v2941 = vpop.permute.xlu0 %2940
      %2974 = vrot.lane.b32.xlu0 %v2271, 48
      %v2975 = vpop.permute.xlu0 %2974
      %2976 = vrot.lane.b32.xlu0 %v2180, 48
      %v2977 = vpop.permute.xlu0 %2976
      %2978 = vrot.lane.b32.xlu0 %v2272, 48
      %v2979 = vpop.permute.xlu0 %2978
      %2980 = vrot.lane.b32.xlu0 %v2183, 48
      %v2981 = vpop.permute.xlu0 %2980
      %2982 = vrot.lane.b32.xlu0 %v2273, 48
      %v2983 = vpop.permute.xlu0 %2982
      %2984 = vrot.lane.b32.xlu0 %v2186, 48
      %v2985 = vpop.permute.xlu0 %2984
      %2986 = vrot.lane.b32.xlu0 %v2274, 48
      %v2987 = vpop.permute.xlu0 %2986
      %2988 = vrot.lane.b32.xlu0 %v2189, 48
      %v2989 = vpop.permute.xlu0 %2988
      %2990 = vrot.lane.b32.xlu0 %v2275, 48
      %v2991 = vpop.permute.xlu0 %2990
      %2992 = vrot.lane.b32.xlu0 %v2192, 48
      %v2993 = vpop.permute.xlu0 %2992
      %2994 = vrot.lane.b32.xlu0 %v2276, 48
      %v2995 = vpop.permute.xlu0 %2994
      %2996 = vrot.lane.b32.xlu0 %v2195, 48
      %v2997 = vpop.permute.xlu0 %2996
      %2998 = vrot.lane.b32.xlu0 %v2277, 48
      %v2999 = vpop.permute.xlu0 %2998
      %3000 = vrot.lane.b32.xlu0 %v2198, 48
      %v3001 = vpop.permute.xlu0 %3000
      %3002 = vrot.lane.b32.xlu0 %v2278, 48
      %v3003 = vpop.permute.xlu0 %3002
      %3004 = vrot.lane.b32.xlu0 %v2201, 48
      %v3005 = vpop.permute.xlu0 %3004
      %3006 = vrot.lane.b32.xlu0 %v2279, 48
      %v3007 = vpop.permute.xlu0 %3006
      %3008 = vrot.lane.b32.xlu0 %v2204, 48
      %v3009 = vpop.permute.xlu0 %3008
      %3010 = vrot.lane.b32.xlu0 %v2280, 48
      %v3011 = vpop.permute.xlu0 %3010
      %3012 = vrot.lane.b32.xlu0 %v2207, 48
      %v3013 = vpop.permute.xlu0 %3012
      %3014 = vrot.lane.b32.xlu0 %v2281, 48
      %v3015 = vpop.permute.xlu0 %3014
      %3016 = vrot.lane.b32.xlu0 %v2210, 48
      %v3017 = vpop.permute.xlu0 %3016
      %3018 = vrot.lane.b32.xlu0 %v2282, 48
      %v3019 = vpop.permute.xlu0 %3018
      %3020 = vrot.lane.b32.xlu0 %v2213, 48
      %v3021 = vpop.permute.xlu0 %3020
      %3022 = vrot.lane.b32.xlu0 %v2283, 48
      %v3023 = vpop.permute.xlu0 %3022
      %3024 = vrot.lane.b32.xlu0 %v2216, 48
      %v3025 = vpop.permute.xlu0 %3024
      %3026 = vrot.lane.b32.xlu0 %v2284, 48
      %v3027 = vpop.permute.xlu0 %3026
      %3028 = vrot.lane.b32.xlu0 %v2219, 48
      %v3029 = vpop.permute.xlu0 %3028
      %3030 = vrot.lane.b32.xlu0 %v2285, 48
      %v3031 = vpop.permute.xlu0 %3030
      %3032 = vrot.lane.b32.xlu0 %v2222, 48
      %v3033 = vpop.permute.xlu0 %3032
      %3034 = vrot.lane.b32.xlu0 %v497, 48
      %v3035 = vpop.permute.xlu0 %3034
      %3036 = vrot.lane.b32.xlu0 %v399, 48
      %v3037 = vpop.permute.xlu0 %3036
      %3070 = vrot.lane.b32.xlu0 %v2339, 56
      %v3071 = vpop.permute.xlu0 %3070
      %3072 = vrot.lane.b32.xlu0 %v2341, 56
      %v3073 = vpop.permute.xlu0 %3072
      %3074 = vrot.lane.b32.xlu0 %v2344, 56
      %v3075 = vpop.permute.xlu0 %3074
      %3076 = vrot.lane.b32.xlu0 %v2346, 56
      %v3077 = vpop.permute.xlu0 %3076
      %3078 = vrot.lane.b32.xlu0 %v2349, 56
      %v3079 = vpop.permute.xlu0 %3078
      %3080 = vrot.lane.b32.xlu0 %v2351, 56
      %v3081 = vpop.permute.xlu0 %3080
      %3082 = vrot.lane.b32.xlu0 %v2354, 56
      %v3083 = vpop.permute.xlu0 %3082
      %3084 = vrot.lane.b32.xlu0 %v2356, 56
      %v3085 = vpop.permute.xlu0 %3084
      %3086 = vrot.lane.b32.xlu0 %v2359, 56
      %v3087 = vpop.permute.xlu0 %3086
      %3088 = vrot.lane.b32.xlu0 %v2361, 56
      %v3089 = vpop.permute.xlu0 %3088
      %3090 = vrot.lane.b32.xlu0 %v2364, 56
      %v3091 = vpop.permute.xlu0 %3090
      %3092 = vrot.lane.b32.xlu0 %v2366, 56
      %v3093 = vpop.permute.xlu0 %3092
      %3094 = vrot.lane.b32.xlu0 %v2369, 56
      %v3095 = vpop.permute.xlu0 %3094
      %3096 = vrot.lane.b32.xlu0 %v2371, 56
      %v3097 = vpop.permute.xlu0 %3096
      %3098 = vrot.lane.b32.xlu0 %v2374, 56
      %v3099 = vpop.permute.xlu0 %3098
      %3100 = vrot.lane.b32.xlu0 %v2376, 56
      %v3101 = vpop.permute.xlu0 %3100
      %3102 = vrot.lane.b32.xlu0 %v2379, 56
      %v3103 = vpop.permute.xlu0 %3102
      %3104 = vrot.lane.b32.xlu0 %v2381, 56
      %v3105 = vpop.permute.xlu0 %3104
      %3106 = vrot.lane.b32.xlu0 %v2384, 56
      %v3107 = vpop.permute.xlu0 %3106
      %3108 = vrot.lane.b32.xlu0 %v2386, 56
      %v3109 = vpop.permute.xlu0 %3108
      %3110 = vrot.lane.b32.xlu0 %v2389, 56
      %v3111 = vpop.permute.xlu0 %3110
      %3112 = vrot.lane.b32.xlu0 %v2391, 56
      %v3113 = vpop.permute.xlu0 %3112
      %3114 = vrot.lane.b32.xlu0 %v2394, 56
      %v3115 = vpop.permute.xlu0 %3114
      %3116 = vrot.lane.b32.xlu0 %v2396, 56
      %v3117 = vpop.permute.xlu0 %3116
      %3118 = vrot.lane.b32.xlu0 %v2399, 56
      %v3119 = vpop.permute.xlu0 %3118
      %3120 = vrot.lane.b32.xlu0 %v2401, 56
      %v3121 = vpop.permute.xlu0 %3120
      %3122 = vrot.lane.b32.xlu0 %v2404, 56
      %v3123 = vpop.permute.xlu0 %3122
      %3124 = vrot.lane.b32.xlu0 %v2406, 56
      %v3125 = vpop.permute.xlu0 %3124
      %3126 = vrot.lane.b32.xlu0 %v2774, 56
      %v3127 = vpop.permute.xlu0 %3126
      %3128 = vrot.lane.b32.xlu0 %v2776, 56
      %v3129 = vpop.permute.xlu0 %3128
      %3130 = vrot.lane.b32.xlu0 %v566, 56
      %v3131 = vpop.permute.xlu0 %3130
      %3132 = vrot.lane.b32.xlu0 %v568, 56
      %v3133 = vpop.permute.xlu0 %3132
      %3166 = vrot.lane.b32.xlu0 %v2510, 64
      %v3167 = vpop.permute.xlu0 %3166
      %3168 = vrot.lane.b32.xlu0 %v2512, 64
      %v3169 = vpop.permute.xlu0 %3168
      %3170 = vrot.lane.b32.xlu0 %v2515, 64
      %v3171 = vpop.permute.xlu0 %3170
      %3172 = vrot.lane.b32.xlu0 %v2517, 64
      %v3173 = vpop.permute.xlu0 %3172
      %3174 = vrot.lane.b32.xlu0 %v2520, 64
      %v3175 = vpop.permute.xlu0 %3174
      %3176 = vrot.lane.b32.xlu0 %v2522, 64
      %v3177 = vpop.permute.xlu0 %3176
      %3178 = vrot.lane.b32.xlu0 %v2525, 64
      %v3179 = vpop.permute.xlu0 %3178
      %3180 = vrot.lane.b32.xlu0 %v2527, 64
      %v3181 = vpop.permute.xlu0 %3180
      %3182 = vrot.lane.b32.xlu0 %v2530, 64
      %v3183 = vpop.permute.xlu0 %3182
      %3184 = vrot.lane.b32.xlu0 %v2532, 64
      %v3185 = vpop.permute.xlu0 %3184
      %3186 = vrot.lane.b32.xlu0 %v2535, 64
      %v3187 = vpop.permute.xlu0 %3186
      %3188 = vrot.lane.b32.xlu0 %v2537, 64
      %v3189 = vpop.permute.xlu0 %3188
      %3190 = vrot.lane.b32.xlu0 %v2540, 64
      %v3191 = vpop.permute.xlu0 %3190
      %3192 = vrot.lane.b32.xlu0 %v2542, 64
      %v3193 = vpop.permute.xlu0 %3192
      %3194 = vrot.lane.b32.xlu0 %v2545, 64
      %v3195 = vpop.permute.xlu0 %3194
      %3196 = vrot.lane.b32.xlu0 %v2547, 64
      %v3197 = vpop.permute.xlu0 %3196
      %3198 = vrot.lane.b32.xlu0 %v2550, 64
      %v3199 = vpop.permute.xlu0 %3198
      %3200 = vrot.lane.b32.xlu0 %v2552, 64
      %v3201 = vpop.permute.xlu0 %3200
      %3202 = vrot.lane.b32.xlu0 %v2555, 64
      %v3203 = vpop.permute.xlu0 %3202
      %3204 = vrot.lane.b32.xlu0 %v2557, 64
      %v3205 = vpop.permute.xlu0 %3204
      %3206 = vrot.lane.b32.xlu0 %v2560, 64
      %v3207 = vpop.permute.xlu0 %3206
      %3208 = vrot.lane.b32.xlu0 %v2562, 64
      %v3209 = vpop.permute.xlu0 %3208
      %3210 = vrot.lane.b32.xlu0 %v2565, 64
      %v3211 = vpop.permute.xlu0 %3210
      %3212 = vrot.lane.b32.xlu0 %v2567, 64
      %v3213 = vpop.permute.xlu0 %3212
      %3214 = vrot.lane.b32.xlu0 %v2570, 64
      %v3215 = vpop.permute.xlu0 %3214
      %3216 = vrot.lane.b32.xlu0 %v2572, 64
      %v3217 = vpop.permute.xlu0 %3216
      %3218 = vrot.lane.b32.xlu0 %v2575, 64
      %v3219 = vpop.permute.xlu0 %3218
      %3220 = vrot.lane.b32.xlu0 %v2577, 64
      %v3221 = vpop.permute.xlu0 %3220
      %3222 = vrot.lane.b32.xlu0 %v2875, 64
      %v3223 = vpop.permute.xlu0 %3222
      %3224 = vrot.lane.b32.xlu0 %v2877, 64
      %v3225 = vpop.permute.xlu0 %3224
      %3226 = vrot.lane.b32.xlu0 %v743, 64
      %v3227 = vpop.permute.xlu0 %3226
      %3228 = vrot.lane.b32.xlu0 %v745, 64
      %v3229 = vpop.permute.xlu0 %3228
      %v3262 = vsel %vm1538, %v497, %v2408
      %v3263 = vsel %vm1538, %v399, %v2410
      %v3264 = vsel %vm1538, %v2270, %v2412
      %v3265 = vsel %vm1538, %v2177, %v2414
      %v3266 = vsel %vm1538, %v2271, %v2416
      %v3267 = vsel %vm1538, %v2180, %v2418
      %v3268 = vsel %vm1538, %v2272, %v2420
      %v3269 = vsel %vm1538, %v2183, %v2422
      %v3270 = vsel %vm1538, %v2273, %v2424
      %v3271 = vsel %vm1538, %v2186, %v2426
      %v3272 = vsel %vm1538, %v2274, %v2428
      %v3273 = vsel %vm1538, %v2189, %v2430
      %v3274 = vsel %vm1538, %v2275, %v2432
      %v3275 = vsel %vm1538, %v2192, %v2434
      %v3276 = vsel %vm1538, %v2276, %v2436
      %v3277 = vsel %vm1538, %v2195, %v2438
      %v3278 = vsel %vm1538, %v2277, %v2440
      %v3279 = vsel %vm1538, %v2198, %v2442
      %v3280 = vsel %vm1538, %v2278, %v2444
      %v3281 = vsel %vm1538, %v2201, %v2446
      %v3282 = vsel %vm1538, %v2279, %v2448
      %v3283 = vsel %vm1538, %v2204, %v2450
      %v3284 = vsel %vm1538, %v2280, %v2452
      %v3285 = vsel %vm1538, %v2207, %v2454
      %v3286 = vsel %vm1538, %v2281, %v2456
      %v3287 = vsel %vm1538, %v2210, %v2458
      %v3288 = vsel %vm1538, %v2282, %v2460
      %v3289 = vsel %vm1538, %v2213, %v2462
      %v3290 = vsel %vm1538, %v2283, %v2464
      %v3291 = vsel %vm1538, %v2216, %v2466
      %v3292 = vsel %vm1538, %v2284, %v2468
      %v3293 = vsel %vm1538, %v2219, %v2470
      %v3294 = vsel %vm1604, %v3262, %v2579
      %v3295 = vsel %vm1604, %v3263, %v2581
      %v3296 = vsel %vm1604, %v3264, %v2583
      %v3297 = vsel %vm1604, %v3265, %v2585
      %v3298 = vsel %vm1604, %v3266, %v2587
      %v3299 = vsel %vm1604, %v3267, %v2589
      %v3300 = vsel %vm1604, %v3268, %v2591
      %v3301 = vsel %vm1604, %v3269, %v2593
      %v3302 = vsel %vm1604, %v3270, %v2595
      %v3303 = vsel %vm1604, %v3271, %v2597
      %v3304 = vsel %vm1604, %v3272, %v2599
      %v3305 = vsel %vm1604, %v3273, %v2601
      %v3306 = vsel %vm1604, %v3274, %v2603
      %v3307 = vsel %vm1604, %v3275, %v2605
      %v3308 = vsel %vm1604, %v3276, %v2607
      %v3309 = vsel %vm1604, %v3277, %v2609
      %v3310 = vsel %vm1604, %v3278, %v2611
      %v3311 = vsel %vm1604, %v3279, %v2613
      %v3312 = vsel %vm1604, %v3280, %v2615
      %v3313 = vsel %vm1604, %v3281, %v2617
      %v3314 = vsel %vm1604, %v3282, %v2619
      %v3315 = vsel %vm1604, %v3283, %v2621
      %v3316 = vsel %vm1604, %v3284, %v2623
      %v3317 = vsel %vm1604, %v3285, %v2625
      %v3318 = vsel %vm1604, %v3286, %v2627
      %v3319 = vsel %vm1604, %v3287, %v2629
      %v3320 = vsel %vm1604, %v3288, %v2631
      %v3321 = vsel %vm1604, %v3289, %v2633
      %v3322 = vsel %vm1604, %v3290, %v2635
      %v3323 = vsel %vm1604, %v3291, %v2637
      %v3324 = vsel %vm1604, %v3292, %v2639
      %v3325 = vsel %vm1604, %v3293, %v2641
      %v3326 = vsel %vm1670, %v3294, %v2676
      %v3327 = vsel %vm1670, %v3295, %v2678
      %v3328 = vsel %vm1670, %v3296, %v2680
      %v3329 = vsel %vm1670, %v3297, %v2682
      %v3330 = vsel %vm1670, %v3298, %v2684
      %v3331 = vsel %vm1670, %v3299, %v2686
      %v3332 = vsel %vm1670, %v3300, %v2688
      %v3333 = vsel %vm1670, %v3301, %v2690
      %v3334 = vsel %vm1670, %v3302, %v2692
      %v3335 = vsel %vm1670, %v3303, %v2694
      %v3336 = vsel %vm1670, %v3304, %v2696
      %v3337 = vsel %vm1670, %v3305, %v2698
      %v3338 = vsel %vm1670, %v3306, %v2700
      %v3339 = vsel %vm1670, %v3307, %v2702
      %v3340 = vsel %vm1670, %v3308, %v2704
      %v3341 = vsel %vm1670, %v3309, %v2706
      %v3342 = vsel %vm1670, %v3310, %v2708
      %v3343 = vsel %vm1670, %v3311, %v2710
      %v3344 = vsel %vm1670, %v3312, %v2712
      %v3345 = vsel %vm1670, %v3313, %v2714
      %v3346 = vsel %vm1670, %v3314, %v2716
      %v3347 = vsel %vm1670, %v3315, %v2718
      %v3348 = vsel %vm1670, %v3316, %v2720
      %v3349 = vsel %vm1670, %v3317, %v2722
      %v3350 = vsel %vm1670, %v3318, %v2724
      %v3351 = vsel %vm1670, %v3319, %v2726
      %v3352 = vsel %vm1670, %v3320, %v2728
      %v3353 = vsel %vm1670, %v3321, %v2730
      %v3354 = vsel %vm1670, %v3322, %v2732
      %v3355 = vsel %vm1670, %v3323, %v2734
      %v3356 = vsel %vm1670, %v3324, %v2736
      %v3357 = vsel %vm1670, %v3325, %v2738
      %v3358 = vsel %vm1736, %v3326, %v2778
      %v3359 = vsel %vm1736, %v3327, %v2780
      %v3360 = vsel %vm1736, %v3328, %v2782
      %v3361 = vsel %vm1736, %v3329, %v2784
      %v3362 = vsel %vm1736, %v3330, %v2786
      %v3363 = vsel %vm1736, %v3331, %v2788
      %v3364 = vsel %vm1736, %v3332, %v2790
      %v3365 = vsel %vm1736, %v3333, %v2792
      %v3366 = vsel %vm1736, %v3334, %v2794
      %v3367 = vsel %vm1736, %v3335, %v2796
      %v3368 = vsel %vm1736, %v3336, %v2798
      %v3369 = vsel %vm1736, %v3337, %v2800
      %v3370 = vsel %vm1736, %v3338, %v2802
      %v3371 = vsel %vm1736, %v3339, %v2804
      %v3372 = vsel %vm1736, %v3340, %v2806
      %v3373 = vsel %vm1736, %v3341, %v2808
      %v3374 = vsel %vm1736, %v3342, %v2810
      %v3375 = vsel %vm1736, %v3343, %v2812
      %v3376 = vsel %vm1736, %v3344, %v2814
      %v3377 = vsel %vm1736, %v3345, %v2816
      %v3378 = vsel %vm1736, %v3346, %v2818
      %v3379 = vsel %vm1736, %v3347, %v2820
      %v3380 = vsel %vm1736, %v3348, %v2822
      %v3381 = vsel %vm1736, %v3349, %v2824
      %v3382 = vsel %vm1736, %v3350, %v2826
      %v3383 = vsel %vm1736, %v3351, %v2828
      %v3384 = vsel %vm1736, %v3352, %v2830
      %v3385 = vsel %vm1736, %v3353, %v2832
      %v3386 = vsel %vm1736, %v3354, %v2834
      %v3387 = vsel %vm1736, %v3355, %v2836
      %v3388 = vsel %vm1736, %v3356, %v2838
      %v3389 = vsel %vm1736, %v3357, %v2840
      %vm3390 = vcmask 326656
      %v3391 = vsel %vm3390, %v3358, %v2879
      %v3392 = vsel %vm3390, %v3359, %v2881
      %v3393 = vsel %vm3390, %v3360, %v2883
      %v3394 = vsel %vm3390, %v3361, %v2885
      %v3395 = vsel %vm3390, %v3362, %v2887
      %v3396 = vsel %vm3390, %v3363, %v2889
      %v3397 = vsel %vm3390, %v3364, %v2891
      %v3398 = vsel %vm3390, %v3365, %v2893
      %v3399 = vsel %vm3390, %v3366, %v2895
      %v3400 = vsel %vm3390, %v3367, %v2897
      %v3401 = vsel %vm3390, %v3368, %v2899
      %v3402 = vsel %vm3390, %v3369, %v2901
      %v3403 = vsel %vm3390, %v3370, %v2903
      %v3404 = vsel %vm3390, %v3371, %v2905
      %v3405 = vsel %vm3390, %v3372, %v2907
      %v3406 = vsel %vm3390, %v3373, %v2909
      %v3407 = vsel %vm3390, %v3374, %v2911
      %v3408 = vsel %vm3390, %v3375, %v2913
      %v3409 = vsel %vm3390, %v3376, %v2915
      %v3410 = vsel %vm3390, %v3377, %v2917
      %v3411 = vsel %vm3390, %v3378, %v2919
      %v3412 = vsel %vm3390, %v3379, %v2921
      %v3413 = vsel %vm3390, %v3380, %v2923
      %v3414 = vsel %vm3390, %v3381, %v2925
      %v3415 = vsel %vm3390, %v3382, %v2927
      %v3416 = vsel %vm3390, %v3383, %v2929
      %v3417 = vsel %vm3390, %v3384, %v2931
      %v3418 = vsel %vm3390, %v3385, %v2933
      %v3419 = vsel %vm3390, %v3386, %v2935
      %v3420 = vsel %vm3390, %v3387, %v2937
      %v3421 = vsel %vm3390, %v3388, %v2939
      %v3422 = vsel %vm3390, %v3389, %v2941
      %vm3423 = vcmask 392192
      %v3424 = vsel %vm3423, %v3391, %v2975
      %v3425 = vsel %vm3423, %v3392, %v2977
      %v3426 = vsel %vm3423, %v3393, %v2979
      %v3427 = vsel %vm3423, %v3394, %v2981
      %v3428 = vsel %vm3423, %v3395, %v2983
      %v3429 = vsel %vm3423, %v3396, %v2985
      %v3430 = vsel %vm3423, %v3397, %v2987
      %v3431 = vsel %vm3423, %v3398, %v2989
      %v3432 = vsel %vm3423, %v3399, %v2991
      %v3433 = vsel %vm3423, %v3400, %v2993
      %v3434 = vsel %vm3423, %v3401, %v2995
      %v3435 = vsel %vm3423, %v3402, %v2997
      %v3436 = vsel %vm3423, %v3403, %v2999
      %v3437 = vsel %vm3423, %v3404, %v3001
      %v3438 = vsel %vm3423, %v3405, %v3003
      %v3439 = vsel %vm3423, %v3406, %v3005
      %v3440 = vsel %vm3423, %v3407, %v3007
      %v3441 = vsel %vm3423, %v3408, %v3009
      %v3442 = vsel %vm3423, %v3409, %v3011
      %v3443 = vsel %vm3423, %v3410, %v3013
      %v3444 = vsel %vm3423, %v3411, %v3015
      %v3445 = vsel %vm3423, %v3412, %v3017
      %v3446 = vsel %vm3423, %v3413, %v3019
      %v3447 = vsel %vm3423, %v3414, %v3021
      %v3448 = vsel %vm3423, %v3415, %v3023
      %v3449 = vsel %vm3423, %v3416, %v3025
      %v3450 = vsel %vm3423, %v3417, %v3027
      %v3451 = vsel %vm3423, %v3418, %v3029
      %v3452 = vsel %vm3423, %v3419, %v3031
      %v3453 = vsel %vm3423, %v3420, %v3033
      %v3454 = vsel %vm3423, %v3421, %v3035
      %v3455 = vsel %vm3423, %v3422, %v3037
      %vm3456 = vcmask 457728
      %v3457 = vsel %vm3456, %v3424, %v3071
      %v3458 = vsel %vm3456, %v3425, %v3073
      %v3459 = vsel %vm3456, %v3426, %v3075
      %v3460 = vsel %vm3456, %v3427, %v3077
      %v3461 = vsel %vm3456, %v3428, %v3079
      %v3462 = vsel %vm3456, %v3429, %v3081
      %v3463 = vsel %vm3456, %v3430, %v3083
      %v3464 = vsel %vm3456, %v3431, %v3085
      %v3465 = vsel %vm3456, %v3432, %v3087
      %v3466 = vsel %vm3456, %v3433, %v3089
      %v3467 = vsel %vm3456, %v3434, %v3091
      %v3468 = vsel %vm3456, %v3435, %v3093
      %v3469 = vsel %vm3456, %v3436, %v3095
      %v3470 = vsel %vm3456, %v3437, %v3097
      %v3471 = vsel %vm3456, %v3438, %v3099
      %v3472 = vsel %vm3456, %v3439, %v3101
      %v3473 = vsel %vm3456, %v3440, %v3103
      %v3474 = vsel %vm3456, %v3441, %v3105
      %v3475 = vsel %vm3456, %v3442, %v3107
      %v3476 = vsel %vm3456, %v3443, %v3109
      %v3477 = vsel %vm3456, %v3444, %v3111
      %v3478 = vsel %vm3456, %v3445, %v3113
      %v3479 = vsel %vm3456, %v3446, %v3115
      %v3480 = vsel %vm3456, %v3447, %v3117
      %v3481 = vsel %vm3456, %v3448, %v3119
      %v3482 = vsel %vm3456, %v3449, %v3121
      %v3483 = vsel %vm3456, %v3450, %v3123
      %v3484 = vsel %vm3456, %v3451, %v3125
      %v3485 = vsel %vm3456, %v3452, %v3127
      %v3486 = vsel %vm3456, %v3453, %v3129
      %v3487 = vsel %vm3456, %v3454, %v3131
      %v3488 = vsel %vm3456, %v3455, %v3133
      %vm3489 = vcmask 523264
      %v3490 = vsel %vm3489, %v3457, %v3167
      %v3491 = vsel %vm3489, %v3458, %v3169
      %v3492 = vsel %vm3489, %v3459, %v3171
      %v3493 = vsel %vm3489, %v3460, %v3173
      %v3494 = vsel %vm3489, %v3461, %v3175
      %v3495 = vsel %vm3489, %v3462, %v3177
      %v3496 = vsel %vm3489, %v3463, %v3179
      %v3497 = vsel %vm3489, %v3464, %v3181
      %v3498 = vsel %vm3489, %v3465, %v3183
      %v3499 = vsel %vm3489, %v3466, %v3185
      %v3500 = vsel %vm3489, %v3467, %v3187
      %v3501 = vsel %vm3489, %v3468, %v3189
      %v3502 = vsel %vm3489, %v3469, %v3191
      %v3503 = vsel %vm3489, %v3470, %v3193
      %v3504 = vsel %vm3489, %v3471, %v3195
      %v3505 = vsel %vm3489, %v3472, %v3197
      %v3506 = vsel %vm3489, %v3473, %v3199
      %v3507 = vsel %vm3489, %v3474, %v3201
      %v3508 = vsel %vm3489, %v3475, %v3203
      %v3509 = vsel %vm3489, %v3476, %v3205
      %v3510 = vsel %vm3489, %v3477, %v3207
      %v3511 = vsel %vm3489, %v3478, %v3209
      %v3512 = vsel %vm3489, %v3479, %v3211
      %v3513 = vsel %vm3489, %v3480, %v3213
      %v3514 = vsel %vm3489, %v3481, %v3215
      %v3515 = vsel %vm3489, %v3482, %v3217
      %v3516 = vsel %vm3489, %v3483, %v3219
      %v3517 = vsel %vm3489, %v3484, %v3221
      %v3518 = vsel %vm3489, %v3485, %v3223
      %v3519 = vsel %vm3489, %v3486, %v3225
      %v3520 = vsel %vm3489, %v3487, %v3227
      %v3521 = vsel %vm3489, %v3488, %v3229
      %v3523 = vlaneseq
      %v3524 = vshrl.u32 %v3523, 7
      %v3525 = vsub.s32 0, %v3524
      %v3526 = vrot.slane %v2142, %v3525
      %vm3528 = vcmask 588800
      %v3530 = vsel %vm3528, %v3490, 0
      %v3533 = vsel %vm3528, %v3491, 0
      %v3536 = vsel %vm3528, %v3492, 0
      %v3539 = vsel %vm3528, %v3493, 0
      %v3542 = vsel %vm3528, %v3494, 0
      %v3545 = vsel %vm3528, %v3495, 0
      %v3548 = vsel %vm3528, %v3496, 0
      %v3551 = vsel %vm3528, %v3497, 0
      %v3554 = vsel %vm3528, %v3498, 0
      %v3557 = vsel %vm3528, %v3499, 0
      %v3560 = vsel %vm3528, %v3500, 0
      %v3563 = vsel %vm3528, %v3501, 0
      %v3566 = vsel %vm3528, %v3502, 0
      %v3569 = vsel %vm3528, %v3503, 0
      %v3572 = vsel %vm3528, %v3504, 0
      %v3575 = vsel %vm3528, %v3505, 0
      %v3578 = vsel %vm3528, %v3506, 0
      %v3581 = vsel %vm3528, %v3507, 0
      %v3584 = vsel %vm3528, %v3508, 0
      %v3587 = vsel %vm3528, %v3509, 0
      %v3590 = vsel %vm3528, %v3510, 0
      %v3593 = vsel %vm3528, %v3511, 0
      %v3596 = vsel %vm3528, %v3512, 0
      %v3599 = vsel %vm3528, %v3513, 0
      %v3602 = vsel %vm3528, %v3514, 0
      %v3605 = vsel %vm3528, %v3515, 0
      %v3608 = vsel %vm3528, %v3516, 0
      %v3611 = vsel %vm3528, %v3517, 0
      %v3614 = vsel %vm3528, %v3518, 0
      %v3617 = vsel %vm3528, %v3519, 0
      %v3620 = vsel %vm3528, %v3520, 0
      %v3623 = vsel %vm3528, %v3521, 0
      %3625 = vmatprep.subr.mxu0 0.0
      %3626 = vmatpush1.msra.mxu0 0.0
      %3627 = vmatprep.subr.mxu0 0.0
      %3628 = vmatpush1.msra.mxu0 0.0
      %3629 = vmatprep.subr.mxu0 0.0
      %3630 = vmatpush1.msra.mxu0 0.0
      %3631 = vmatprep.subr.mxu0 0.0
      %3632 = vmatpush1.msra.mxu0 0.0
      %3633 = vmatprep.subr.mxu0 0.0
      %3634 = vmatpush1.msra.mxu0 0.0
      %3635 = vmatprep.subr.mxu0 0.0
      %3636 = vmatpush1.msra.mxu0 0.0
      %3637 = vmatprep.subr.mxu0 0.0
      %3638 = vmatpush1.msra.mxu0 0.0
      %3639 = vmatprep.subr.mxu0 0.0
      %3640 = vmatpush1.msra.mxu0 %v2141
      %3641 = vmatprep.subr.mxu0 0.0
      %3642 = vmatpush1.msra.mxu0 %v2140
      %3643 = vmatprep.subr.mxu0 0.0
      %3644 = vmatpush1.msra.mxu0 %v2139
      %3645 = vmatprep.subr.mxu0 0.0
      %3646 = vmatpush1.msra.mxu0 %v2138
      %3647 = vmatprep.subr.mxu0 0.0
      %3648 = vmatpush1.msra.mxu0 %v2137
      %3649 = vmatprep.subr.mxu0 0.0
      %3650 = vmatpush1.msra.mxu0 %v2136
      %3651 = vmatprep.subr.mxu0 0.0
      %3652 = vmatpush1.msra.mxu0 %v2135
      %3653 = vmatprep.subr.mxu0 0.0
      %3654 = vmatpush1.msra.mxu0 %v2134
      %3655 = vmatprep.subr.mxu0 0.0
      %3656 = vmatpush1.msra.mxu0 %v2133
      %3657 = vmatprep.subr.mxu0 0.0
      %3658 = vmatpush2.msra.mxu0 0.0
      %3659 = vmatprep.subr.mxu0 0.0
      %3660 = vmatpush2.msra.mxu0 0.0
      %3661 = vmatprep.subr.mxu0 0.0
      %3662 = vmatpush2.msra.mxu0 0.0
      %3663 = vmatprep.subr.mxu0 0.0
      %3664 = vmatpush2.msra.mxu0 0.0
      %3665 = vmatprep.subr.mxu0 0.0
      %3666 = vmatpush2.msra.mxu0 0.0
      %3667 = vmatprep.subr.mxu0 0.0
      %3668 = vmatpush2.msra.mxu0 0.0
      %3669 = vmatprep.subr.mxu0 0.0
      %3670 = vmatpush2.msra.mxu0 0.0
      %3671 = vmatprep.subr.mxu0 0.0
      %3672 = vmatpush2.msra.mxu0 0.0
      %3673 = vmatprep.subr.mxu0 0.0
      %3674 = vmatpush2.msra.mxu0 0.0
      %3675 = vmatprep.subr.mxu0 0.0
      %3676 = vmatpush2.msra.mxu0 0.0
      %3677 = vmatprep.subr.mxu0 0.0
      %3678 = vmatpush2.msra.mxu0 0.0
      %3679 = vmatprep.subr.mxu0 0.0
      %3680 = vmatpush2.msra.mxu0 0.0
      %3681 = vmatprep.subr.mxu0 0.0
      %3682 = vmatpush2.msra.mxu0 0.0
      %3683 = vmatprep.subr.mxu0 0.0
      %3684 = vmatpush2.msra.mxu0 0.0
      %3685 = vmatprep.subr.mxu0 0.0
      %3686 = vmatpush2.msra.mxu0 0.0
      %3687 = vmatprep.subr.mxu0 0.0
      %3688 = vmatpush2.msra.mxu0 0.0
      %3689 = vmatprep.mubr.f32.mxu0 0.0
      %3690 = vmatmul.mubr.f32.gmra.mxu0 %v3530
      %v3691 = vpop.f32.mrf.mxu0
      %v3692 = vadd.f32 %v3526, %v3691
      %v3693 = vpop.f32.mrf.mxu0
      %3694 = vmatprep.mubr.f32.mxu0 0.0
      %3695 = vmatmul.mubr.f32.gmra.mxu0 %v3533
      %v3696 = vpop.f32.mrf.mxu0
      %v3697 = vadd.f32 %v3526, %v3696
      %v3698 = vpop.f32.mrf.mxu0
      %3699 = vmatprep.mubr.f32.mxu0 0.0
      %3700 = vmatmul.mubr.f32.gmra.mxu0 %v3536
      %v3701 = vpop.f32.mrf.mxu0
      %v3702 = vadd.f32 %v3526, %v3701
      %v3703 = vpop.f32.mrf.mxu0
      %3704 = vmatprep.mubr.f32.mxu0 0.0
      %3705 = vmatmul.mubr.f32.gmra.mxu0 %v3539
      %v3706 = vpop.f32.mrf.mxu0
      %v3707 = vadd.f32 %v3526, %v3706
      %v3708 = vpop.f32.mrf.mxu0
      %3709 = vmatprep.mubr.f32.mxu0 0.0
      %3710 = vmatmul.mubr.f32.gmra.mxu0 %v3542
      %v3711 = vpop.f32.mrf.mxu0
      %v3712 = vadd.f32 %v3526, %v3711
      %v3713 = vpop.f32.mrf.mxu0
      %3714 = vmatprep.mubr.f32.mxu0 0.0
      %3715 = vmatmul.mubr.f32.gmra.mxu0 %v3545
      %v3716 = vpop.f32.mrf.mxu0
      %v3717 = vadd.f32 %v3526, %v3716
      %v3718 = vpop.f32.mrf.mxu0
      %3719 = vmatprep.mubr.f32.mxu0 0.0
      %3720 = vmatmul.mubr.f32.gmra.mxu0 %v3548
      %v3721 = vpop.f32.mrf.mxu0
      %v3722 = vadd.f32 %v3526, %v3721
      %v3723 = vpop.f32.mrf.mxu0
      %3724 = vmatprep.mubr.f32.mxu0 0.0
      %3725 = vmatmul.mubr.f32.gmra.mxu0 %v3551
      %v3726 = vpop.f32.mrf.mxu0
      %v3727 = vadd.f32 %v3526, %v3726
      %v3728 = vpop.f32.mrf.mxu0
      %3729 = vmatprep.mubr.f32.mxu0 0.0
      %3730 = vmatmul.mubr.f32.gmra.mxu0 %v3554
      %v3731 = vpop.f32.mrf.mxu0
      %v3732 = vadd.f32 %v3526, %v3731
      %v3733 = vpop.f32.mrf.mxu0
      %3734 = vmatprep.mubr.f32.mxu0 0.0
      %3735 = vmatmul.mubr.f32.gmra.mxu0 %v3557
      %v3736 = vpop.f32.mrf.mxu0
      %v3737 = vadd.f32 %v3526, %v3736
      %v3738 = vpop.f32.mrf.mxu0
      %3739 = vmatprep.mubr.f32.mxu0 0.0
      %3740 = vmatmul.mubr.f32.gmra.mxu0 %v3560
      %v3741 = vpop.f32.mrf.mxu0
      %v3742 = vadd.f32 %v3526, %v3741
      %v3743 = vpop.f32.mrf.mxu0
      %3744 = vmatprep.mubr.f32.mxu0 0.0
      %3745 = vmatmul.mubr.f32.gmra.mxu0 %v3563
      %v3746 = vpop.f32.mrf.mxu0
      %v3747 = vadd.f32 %v3526, %v3746
      %v3748 = vpop.f32.mrf.mxu0
      %3749 = vmatprep.mubr.f32.mxu0 0.0
      %3750 = vmatmul.mubr.f32.gmra.mxu0 %v3566
      %v3751 = vpop.f32.mrf.mxu0
      %v3752 = vadd.f32 %v3526, %v3751
      %v3753 = vpop.f32.mrf.mxu0
      %3754 = vmatprep.mubr.f32.mxu0 0.0
      %3755 = vmatmul.mubr.f32.gmra.mxu0 %v3569
      %v3756 = vpop.f32.mrf.mxu0
      %v3757 = vadd.f32 %v3526, %v3756
      %v3758 = vpop.f32.mrf.mxu0
      %3759 = vmatprep.mubr.f32.mxu0 0.0
      %3760 = vmatmul.mubr.f32.gmra.mxu0 %v3572
      %v3761 = vpop.f32.mrf.mxu0
      %v3762 = vadd.f32 %v3526, %v3761
      %v3763 = vpop.f32.mrf.mxu0
      %3764 = vmatprep.mubr.f32.mxu0 0.0
      %3765 = vmatmul.mubr.f32.gmra.mxu0 %v3575
      %v3766 = vpop.f32.mrf.mxu0
      %v3767 = vadd.f32 %v3526, %v3766
      %v3768 = vpop.f32.mrf.mxu0
      %3769 = vmatprep.mubr.f32.mxu0 0.0
      %3770 = vmatmul.mubr.f32.gmra.mxu0 %v3578
      %v3771 = vpop.f32.mrf.mxu0
      %v3772 = vadd.f32 %v3526, %v3771
      %v3773 = vpop.f32.mrf.mxu0
      %3774 = vmatprep.mubr.f32.mxu0 0.0
      %3775 = vmatmul.mubr.f32.gmra.mxu0 %v3581
      %v3776 = vpop.f32.mrf.mxu0
      %v3777 = vadd.f32 %v3526, %v3776
      %v3778 = vpop.f32.mrf.mxu0
      %3779 = vmatprep.mubr.f32.mxu0 0.0
      %3780 = vmatmul.mubr.f32.gmra.mxu0 %v3584
      %v3781 = vpop.f32.mrf.mxu0
      %v3782 = vadd.f32 %v3526, %v3781
      %v3783 = vpop.f32.mrf.mxu0
      %3784 = vmatprep.mubr.f32.mxu0 0.0
      %3785 = vmatmul.mubr.f32.gmra.mxu0 %v3587
      %v3786 = vpop.f32.mrf.mxu0
      %v3787 = vadd.f32 %v3526, %v3786
      %v3788 = vpop.f32.mrf.mxu0
      %3789 = vmatprep.mubr.f32.mxu0 0.0
      %3790 = vmatmul.mubr.f32.gmra.mxu0 %v3590
      %v3791 = vpop.f32.mrf.mxu0
      %v3792 = vadd.f32 %v3526, %v3791
      %v3793 = vpop.f32.mrf.mxu0
      %3794 = vmatprep.mubr.f32.mxu0 0.0
      %3795 = vmatmul.mubr.f32.gmra.mxu0 %v3593
      %v3796 = vpop.f32.mrf.mxu0
      %v3797 = vadd.f32 %v3526, %v3796
      %v3798 = vpop.f32.mrf.mxu0
      %3799 = vmatprep.mubr.f32.mxu0 0.0
      %3800 = vmatmul.mubr.f32.gmra.mxu0 %v3596
      %v3801 = vpop.f32.mrf.mxu0
      %v3802 = vadd.f32 %v3526, %v3801
      %v3803 = vpop.f32.mrf.mxu0
      %3804 = vmatprep.mubr.f32.mxu0 0.0
      %3805 = vmatmul.mubr.f32.gmra.mxu0 %v3599
      %v3806 = vpop.f32.mrf.mxu0
      %v3807 = vadd.f32 %v3526, %v3806
      %v3808 = vpop.f32.mrf.mxu0
      %3809 = vmatprep.mubr.f32.mxu0 0.0
      %3810 = vmatmul.mubr.f32.gmra.mxu0 %v3602
      %v3811 = vpop.f32.mrf.mxu0
      %v3812 = vadd.f32 %v3526, %v3811
      %v3813 = vpop.f32.mrf.mxu0
      %3814 = vmatprep.mubr.f32.mxu0 0.0
      %3815 = vmatmul.mubr.f32.gmra.mxu0 %v3605
      %v3816 = vpop.f32.mrf.mxu0
      %v3817 = vadd.f32 %v3526, %v3816
      %v3818 = vpop.f32.mrf.mxu0
      %3819 = vmatprep.mubr.f32.mxu0 0.0
      %3820 = vmatmul.mubr.f32.gmra.mxu0 %v3608
      %v3821 = vpop.f32.mrf.mxu0
      %v3822 = vadd.f32 %v3526, %v3821
      %v3823 = vpop.f32.mrf.mxu0
      %3824 = vmatprep.mubr.f32.mxu0 0.0
      %3825 = vmatmul.mubr.f32.gmra.mxu0 %v3611
      %v3826 = vpop.f32.mrf.mxu0
      %v3827 = vadd.f32 %v3526, %v3826
      %v3828 = vpop.f32.mrf.mxu0
      %3829 = vmatprep.mubr.f32.mxu0 0.0
      %3830 = vmatmul.mubr.f32.gmra.mxu0 %v3614
      %v3831 = vpop.f32.mrf.mxu0
      %v3832 = vadd.f32 %v3526, %v3831
      %v3833 = vpop.f32.mrf.mxu0
      %3834 = vmatprep.mubr.f32.mxu0 0.0
      %3835 = vmatmul.mubr.f32.gmra.mxu0 %v3617
      %v3836 = vpop.f32.mrf.mxu0
      %v3837 = vadd.f32 %v3526, %v3836
      %v3838 = vpop.f32.mrf.mxu0
      %3839 = vmatprep.mubr.f32.mxu0 0.0
      %3840 = vmatmul.mubr.f32.gmra.mxu0 %v3620
      %v3841 = vpop.f32.mrf.mxu0
      %v3842 = vadd.f32 %v3526, %v3841
      %v3843 = vpop.f32.mrf.mxu0
      %3844 = vmatprep.mubr.f32.mxu0 0.0
      %3845 = vmatmul.mubr.f32.gmra.mxu0 %v3623
      %v3846 = vpop.f32.mrf.mxu0
      %v3847 = vadd.f32 %v3526, %v3846
      %v3848 = vpop.f32.mrf.mxu0
      %3849 = vdwg.mxu0
      %v3850 = vmax.f32 %v3692, 0.0
      %v3851 = vmax.f32 %v3697, 0.0
      %v3852 = vmax.f32 %v3702, 0.0
      %v3853 = vmax.f32 %v3707, 0.0
      %v3854 = vmax.f32 %v3712, 0.0
      %v3855 = vmax.f32 %v3717, 0.0
      %v3856 = vmax.f32 %v3722, 0.0
      %v3857 = vmax.f32 %v3727, 0.0
      %v3858 = vmax.f32 %v3732, 0.0
      %v3859 = vmax.f32 %v3737, 0.0
      %v3860 = vmax.f32 %v3742, 0.0
      %v3861 = vmax.f32 %v3747, 0.0
      %v3862 = vmax.f32 %v3752, 0.0
      %v3863 = vmax.f32 %v3757, 0.0
      %v3864 = vmax.f32 %v3762, 0.0
      %v3865 = vmax.f32 %v3767, 0.0
      %v3866 = vmax.f32 %v3772, 0.0
      %v3867 = vmax.f32 %v3777, 0.0
      %v3868 = vmax.f32 %v3782, 0.0
      %v3869 = vmax.f32 %v3787, 0.0
      %v3870 = vmax.f32 %v3792, 0.0
      %v3871 = vmax.f32 %v3797, 0.0
      %v3872 = vmax.f32 %v3802, 0.0
      %v3873 = vmax.f32 %v3807, 0.0
      %v3874 = vmax.f32 %v3812, 0.0
      %v3875 = vmax.f32 %v3817, 0.0
      %v3876 = vmax.f32 %v3822, 0.0
      %v3877 = vmax.f32 %v3827, 0.0
      %v3878 = vmax.f32 %v3832, 0.0
      %v3879 = vmax.f32 %v3837, 0.0
      %v3880 = vmax.f32 %v3842, 0.0
      %v3881 = vmax.f32 %v3847, 0.0
      %v3882 = vld [vmem:[%s6] sm:$0xff]
      %v3883 = vld [vmem:[%s6 + $0x8] sm:$0xff]
      %v3884 = vld [vmem:[%s6 + $0x10] sm:$0xff]
      %v3885 = vld [vmem:[%s6 + $0x18] sm:$0xff]
      %v3886 = vld [vmem:[%s7] sm:$0x1]
      %v3919 = vrot.slane %v3850, 1
      %v3920 = vrot.slane %v3851, 1
      %v3921 = vsel %vm563, %v3919, %v3920
      %v3922 = vrot.slane 0.0, 1
      %v3923 = vsel %vm563, %v3920, %v3922
      %v3924 = vrot.slane %v3852, 1
      %v3925 = vrot.slane %v3853, 1
      %v3926 = vsel %vm563, %v3924, %v3925
      %v3927 = vsel %vm563, %v3925, %v3922
      %v3928 = vrot.slane %v3854, 1
      %v3929 = vrot.slane %v3855, 1
      %v3930 = vsel %vm563, %v3928, %v3929
      %v3931 = vsel %vm563, %v3929, %v3922
      %v3932 = vrot.slane %v3856, 1
      %v3933 = vrot.slane %v3857, 1
      %v3934 = vsel %vm563, %v3932, %v3933
      %v3935 = vsel %vm563, %v3933, %v3922
      %v3936 = vrot.slane %v3858, 1
      %v3937 = vrot.slane %v3859, 1
      %v3938 = vsel %vm563, %v3936, %v3937
      %v3939 = vsel %vm563, %v3937, %v3922
      %v3940 = vrot.slane %v3860, 1
      %v3941 = vrot.slane %v3861, 1
      %v3942 = vsel %vm563, %v3940, %v3941
      %v3943 = vsel %vm563, %v3941, %v3922
      %v3944 = vrot.slane %v3862, 1
      %v3945 = vrot.slane %v3863, 1
      %v3946 = vsel %vm563, %v3944, %v3945
      %v3947 = vsel %vm563, %v3945, %v3922
      %v3948 = vrot.slane %v3864, 1
      %v3949 = vrot.slane %v3865, 1
      %v3950 = vsel %vm563, %v3948, %v3949
      %v3951 = vsel %vm563, %v3949, %v3922
      %v3952 = vrot.slane %v3866, 1
      %v3953 = vrot.slane %v3867, 1
      %v3954 = vsel %vm563, %v3952, %v3953
      %v3955 = vsel %vm563, %v3953, %v3922
      %v3956 = vrot.slane %v3868, 1
      %v3957 = vrot.slane %v3869, 1
      %v3958 = vsel %vm563, %v3956, %v3957
      %v3959 = vsel %vm563, %v3957, %v3922
      %v3960 = vrot.slane %v3870, 1
      %v3961 = vrot.slane %v3871, 1
      %v3962 = vsel %vm563, %v3960, %v3961
      %v3963 = vsel %vm563, %v3961, %v3922
      %v3964 = vrot.slane %v3872, 1
      %v3965 = vrot.slane %v3873, 1
      %v3966 = vsel %vm563, %v3964, %v3965
      %v3967 = vsel %vm563, %v3965, %v3922
      %v3968 = vrot.slane %v3874, 1
      %v3969 = vrot.slane %v3875, 1
      %v3970 = vsel %vm563, %v3968, %v3969
      %v3971 = vsel %vm563, %v3969, %v3922
      %v3972 = vrot.slane %v3876, 1
      %v3973 = vrot.slane %v3877, 1
      %v3974 = vsel %vm563, %v3972, %v3973
      %v3975 = vsel %vm563, %v3973, %v3922
      %v3976 = vrot.slane %v3878, 1
      %v3977 = vrot.slane %v3879, 1
      %v3978 = vsel %vm563, %v3976, %v3977
      %v3979 = vsel %vm563, %v3977, %v3922
      %v3980 = vrot.slane %v3880, 1
      %v3981 = vrot.slane %v3881, 1
      %v3982 = vsel %vm563, %v3980, %v3981
      %v3983 = vsel %vm563, %v3981, %v3922
      %3984 = vrot.lane.b32.xlu0 %v3921, 8
      %v3985 = vpop.permute.xlu0 %3984
      %3986 = vrot.lane.b32.xlu0 %v3923, 8
      %v3987 = vpop.permute.xlu0 %3986
      %3988 = vrot.lane.b32.xlu0 %v3926, 8
      %v3989 = vpop.permute.xlu0 %3988
      %3990 = vrot.lane.b32.xlu0 %v3927, 8
      %v3991 = vpop.permute.xlu0 %3990
      %3992 = vrot.lane.b32.xlu0 %v3930, 8
      %v3993 = vpop.permute.xlu0 %3992
      %3994 = vrot.lane.b32.xlu0 %v3931, 8
      %v3995 = vpop.permute.xlu0 %3994
      %3996 = vrot.lane.b32.xlu0 %v3934, 8
      %v3997 = vpop.permute.xlu0 %3996
      %3998 = vrot.lane.b32.xlu0 %v3935, 8
      %v3999 = vpop.permute.xlu0 %3998
      %4000 = vrot.lane.b32.xlu0 %v3938, 8
      %v4001 = vpop.permute.xlu0 %4000
      %4002 = vrot.lane.b32.xlu0 %v3939, 8
      %v4003 = vpop.permute.xlu0 %4002
      %4004 = vrot.lane.b32.xlu0 %v3942, 8
      %v4005 = vpop.permute.xlu0 %4004
      %4006 = vrot.lane.b32.xlu0 %v3943, 8
      %v4007 = vpop.permute.xlu0 %4006
      %4008 = vrot.lane.b32.xlu0 %v3946, 8
      %v4009 = vpop.permute.xlu0 %4008
      %4010 = vrot.lane.b32.xlu0 %v3947, 8
      %v4011 = vpop.permute.xlu0 %4010
      %4012 = vrot.lane.b32.xlu0 %v3950, 8
      %v4013 = vpop.permute.xlu0 %4012
      %4014 = vrot.lane.b32.xlu0 %v3951, 8
      %v4015 = vpop.permute.xlu0 %4014
      %4016 = vrot.lane.b32.xlu0 %v3954, 8
      %v4017 = vpop.permute.xlu0 %4016
      %4018 = vrot.lane.b32.xlu0 %v3955, 8
      %v4019 = vpop.permute.xlu0 %4018
      %4020 = vrot.lane.b32.xlu0 %v3958, 8
      %v4021 = vpop.permute.xlu0 %4020
      %4022 = vrot.lane.b32.xlu0 %v3959, 8
      %v4023 = vpop.permute.xlu0 %4022
      %4024 = vrot.lane.b32.xlu0 %v3962, 8
      %v4025 = vpop.permute.xlu0 %4024
      %4026 = vrot.lane.b32.xlu0 %v3963, 8
      %v4027 = vpop.permute.xlu0 %4026
      %4028 = vrot.lane.b32.xlu0 %v3966, 8
      %v4029 = vpop.permute.xlu0 %4028
      %4030 = vrot.lane.b32.xlu0 %v3967, 8
      %v4031 = vpop.permute.xlu0 %4030
      %4032 = vrot.lane.b32.xlu0 %v3970, 8
      %v4033 = vpop.permute.xlu0 %4032
      %4034 = vrot.lane.b32.xlu0 %v3971, 8
      %v4035 = vpop.permute.xlu0 %4034
      %4036 = vrot.lane.b32.xlu0 %v3974, 8
      %v4037 = vpop.permute.xlu0 %4036
      %4038 = vrot.lane.b32.xlu0 %v3975, 8
      %v4039 = vpop.permute.xlu0 %4038
      %4040 = vrot.lane.b32.xlu0 %v3978, 8
      %v4041 = vpop.permute.xlu0 %4040
      %4042 = vrot.lane.b32.xlu0 %v3979, 8
      %v4043 = vpop.permute.xlu0 %4042
      %4044 = vrot.lane.b32.xlu0 %v3982, 8
      %v4045 = vpop.permute.xlu0 %4044
      %4046 = vrot.lane.b32.xlu0 %v3983, 8
      %v4047 = vpop.permute.xlu0 %4046
      %4080 = vrot.lane.b32.xlu0 %v3852, 16
      %v4081 = vpop.permute.xlu0 %4080
      %4082 = vrot.lane.b32.xlu0 %v3853, 16
      %v4083 = vpop.permute.xlu0 %4082
      %4084 = vrot.lane.b32.xlu0 %v3854, 16
      %v4085 = vpop.permute.xlu0 %4084
      %4086 = vrot.lane.b32.xlu0 %v3855, 16
      %v4087 = vpop.permute.xlu0 %4086
      %4088 = vrot.lane.b32.xlu0 %v3856, 16
      %v4089 = vpop.permute.xlu0 %4088
      %4090 = vrot.lane.b32.xlu0 %v3857, 16
      %v4091 = vpop.permute.xlu0 %4090
      %4092 = vrot.lane.b32.xlu0 %v3858, 16
      %v4093 = vpop.permute.xlu0 %4092
      %4094 = vrot.lane.b32.xlu0 %v3859, 16
      %v4095 = vpop.permute.xlu0 %4094
      %4096 = vrot.lane.b32.xlu0 %v3860, 16
      %v4097 = vpop.permute.xlu0 %4096
      %4098 = vrot.lane.b32.xlu0 %v3861, 16
      %v4099 = vpop.permute.xlu0 %4098
      %4100 = vrot.lane.b32.xlu0 %v3862, 16
      %v4101 = vpop.permute.xlu0 %4100
      %4102 = vrot.lane.b32.xlu0 %v3863, 16
      %v4103 = vpop.permute.xlu0 %4102
      %4104 = vrot.lane.b32.xlu0 %v3864, 16
      %v4105 = vpop.permute.xlu0 %4104
      %4106 = vrot.lane.b32.xlu0 %v3865, 16
      %v4107 = vpop.permute.xlu0 %4106
      %4108 = vrot.lane.b32.xlu0 %v3866, 16
      %v4109 = vpop.permute.xlu0 %4108
      %4110 = vrot.lane.b32.xlu0 %v3867, 16
      %v4111 = vpop.permute.xlu0 %4110
      %4112 = vrot.lane.b32.xlu0 %v3868, 16
      %v4113 = vpop.permute.xlu0 %4112
      %4114 = vrot.lane.b32.xlu0 %v3869, 16
      %v4115 = vpop.permute.xlu0 %4114
      %4116 = vrot.lane.b32.xlu0 %v3870, 16
      %v4117 = vpop.permute.xlu0 %4116
      %4118 = vrot.lane.b32.xlu0 %v3871, 16
      %v4119 = vpop.permute.xlu0 %4118
      %4120 = vrot.lane.b32.xlu0 %v3872, 16
      %v4121 = vpop.permute.xlu0 %4120
      %4122 = vrot.lane.b32.xlu0 %v3873, 16
      %v4123 = vpop.permute.xlu0 %4122
      %4124 = vrot.lane.b32.xlu0 %v3874, 16
      %v4125 = vpop.permute.xlu0 %4124
      %4126 = vrot.lane.b32.xlu0 %v3875, 16
      %v4127 = vpop.permute.xlu0 %4126
      %4128 = vrot.lane.b32.xlu0 %v3876, 16
      %v4129 = vpop.permute.xlu0 %4128
      %4130 = vrot.lane.b32.xlu0 %v3877, 16
      %v4131 = vpop.permute.xlu0 %4130
      %4132 = vrot.lane.b32.xlu0 %v3878, 16
      %v4133 = vpop.permute.xlu0 %4132
      %4134 = vrot.lane.b32.xlu0 %v3879, 16
      %v4135 = vpop.permute.xlu0 %4134
      %4136 = vrot.lane.b32.xlu0 %v3880, 16
      %v4137 = vpop.permute.xlu0 %4136
      %4138 = vrot.lane.b32.xlu0 %v3881, 16
      %v4139 = vpop.permute.xlu0 %4138
      %4140 = vrot.lane.b32.xlu0 0.0, 16
      %v4141 = vpop.permute.xlu0 %4140
      %v4173 = vsel %vm563, %v3922, %v3922
      %4174 = vrot.lane.b32.xlu0 %v3926, 24
      %v4175 = vpop.permute.xlu0 %4174
      %4176 = vrot.lane.b32.xlu0 %v3927, 24
      %v4177 = vpop.permute.xlu0 %4176
      %4178 = vrot.lane.b32.xlu0 %v3930, 24
      %v4179 = vpop.permute.xlu0 %4178
      %4180 = vrot.lane.b32.xlu0 %v3931, 24
      %v4181 = vpop.permute.xlu0 %4180
      %4182 = vrot.lane.b32.xlu0 %v3934, 24
      %v4183 = vpop.permute.xlu0 %4182
      %4184 = vrot.lane.b32.xlu0 %v3935, 24
      %v4185 = vpop.permute.xlu0 %4184
      %4186 = vrot.lane.b32.xlu0 %v3938, 24
      %v4187 = vpop.permute.xlu0 %4186
      %4188 = vrot.lane.b32.xlu0 %v3939, 24
      %v4189 = vpop.permute.xlu0 %4188
      %4190 = vrot.lane.b32.xlu0 %v3942, 24
      %v4191 = vpop.permute.xlu0 %4190
      %4192 = vrot.lane.b32.xlu0 %v3943, 24
      %v4193 = vpop.permute.xlu0 %4192
      %4194 = vrot.lane.b32.xlu0 %v3946, 24
      %v4195 = vpop.permute.xlu0 %4194
      %4196 = vrot.lane.b32.xlu0 %v3947, 24
      %v4197 = vpop.permute.xlu0 %4196
      %4198 = vrot.lane.b32.xlu0 %v3950, 24
      %v4199 = vpop.permute.xlu0 %4198
      %4200 = vrot.lane.b32.xlu0 %v3951, 24
      %v4201 = vpop.permute.xlu0 %4200
      %4202 = vrot.lane.b32.xlu0 %v3954, 24
      %v4203 = vpop.permute.xlu0 %4202
      %4204 = vrot.lane.b32.xlu0 %v3955, 24
      %v4205 = vpop.permute.xlu0 %4204
      %4206 = vrot.lane.b32.xlu0 %v3958, 24
      %v4207 = vpop.permute.xlu0 %4206
      %4208 = vrot.lane.b32.xlu0 %v3959, 24
      %v4209 = vpop.permute.xlu0 %4208
      %4210 = vrot.lane.b32.xlu0 %v3962, 24
      %v4211 = vpop.permute.xlu0 %4210
      %4212 = vrot.lane.b32.xlu0 %v3963, 24
      %v4213 = vpop.permute.xlu0 %4212
      %4214 = vrot.lane.b32.xlu0 %v3966, 24
      %v4215 = vpop.permute.xlu0 %4214
      %4216 = vrot.lane.b32.xlu0 %v3967, 24
      %v4217 = vpop.permute.xlu0 %4216
      %4218 = vrot.lane.b32.xlu0 %v3970, 24
      %v4219 = vpop.permute.xlu0 %4218
      %4220 = vrot.lane.b32.xlu0 %v3971, 24
      %v4221 = vpop.permute.xlu0 %4220
      %4222 = vrot.lane.b32.xlu0 %v3974, 24
      %v4223 = vpop.permute.xlu0 %4222
      %4224 = vrot.lane.b32.xlu0 %v3975, 24
      %v4225 = vpop.permute.xlu0 %4224
      %4226 = vrot.lane.b32.xlu0 %v3978, 24
      %v4227 = vpop.permute.xlu0 %4226
      %4228 = vrot.lane.b32.xlu0 %v3979, 24
      %v4229 = vpop.permute.xlu0 %4228
      %4230 = vrot.lane.b32.xlu0 %v3982, 24
      %v4231 = vpop.permute.xlu0 %4230
      %4232 = vrot.lane.b32.xlu0 %v3983, 24
      %v4233 = vpop.permute.xlu0 %4232
      %4234 = vrot.lane.b32.xlu0 %v4173, 24
      %v4235 = vpop.permute.xlu0 %4234
      %v4267 = vsel %vm1538, %v3850, %v3985
      %v4268 = vsel %vm1538, %v3851, %v3987
      %v4269 = vsel %vm1538, %v3852, %v3989
      %v4270 = vsel %vm1538, %v3853, %v3991
      %v4271 = vsel %vm1538, %v3854, %v3993
      %v4272 = vsel %vm1538, %v3855, %v3995
      %v4273 = vsel %vm1538, %v3856, %v3997
      %v4274 = vsel %vm1538, %v3857, %v3999
      %v4275 = vsel %vm1538, %v3858, %v4001
      %v4276 = vsel %vm1538, %v3859, %v4003
      %v4277 = vsel %vm1538, %v3860, %v4005
      %v4278 = vsel %vm1538, %v3861, %v4007
      %v4279 = vsel %vm1538, %v3862, %v4009
      %v4280 = vsel %vm1538, %v3863, %v4011
      %v4281 = vsel %vm1538, %v3864, %v4013
      %v4282 = vsel %vm1538, %v3865, %v4015
      %v4283 = vsel %vm1538, %v3866, %v4017
      %v4284 = vsel %vm1538, %v3867, %v4019
      %v4285 = vsel %vm1538, %v3868, %v4021
      %v4286 = vsel %vm1538, %v3869, %v4023
      %v4287 = vsel %vm1538, %v3870, %v4025
      %v4288 = vsel %vm1538, %v3871, %v4027
      %v4289 = vsel %vm1538, %v3872, %v4029
      %v4290 = vsel %vm1538, %v3873, %v4031
      %v4291 = vsel %vm1538, %v3874, %v4033
      %v4292 = vsel %vm1538, %v3875, %v4035
      %v4293 = vsel %vm1538, %v3876, %v4037
      %v4294 = vsel %vm1538, %v3877, %v4039
      %v4295 = vsel %vm1538, %v3878, %v4041
      %v4296 = vsel %vm1538, %v3879, %v4043
      %v4297 = vsel %vm1538, %v3880, %v4045
      %v4298 = vsel %vm1538, %v3881, %v4047
      %v4299 = vsel %vm1604, %v4267, %v4081
      %v4300 = vsel %vm1604, %v4268, %v4083
      %v4301 = vsel %vm1604, %v4269, %v4085
      %v4302 = vsel %vm1604, %v4270, %v4087
      %v4303 = vsel %vm1604, %v4271, %v4089
      %v4304 = vsel %vm1604, %v4272, %v4091
      %v4305 = vsel %vm1604, %v4273, %v4093
      %v4306 = vsel %vm1604, %v4274, %v4095
      %v4307 = vsel %vm1604, %v4275, %v4097
      %v4308 = vsel %vm1604, %v4276, %v4099
      %v4309 = vsel %vm1604, %v4277, %v4101
      %v4310 = vsel %vm1604, %v4278, %v4103
      %v4311 = vsel %vm1604, %v4279, %v4105
      %v4312 = vsel %vm1604, %v4280, %v4107
      %v4313 = vsel %vm1604, %v4281, %v4109
      %v4314 = vsel %vm1604, %v4282, %v4111
      %v4315 = vsel %vm1604, %v4283, %v4113
      %v4316 = vsel %vm1604, %v4284, %v4115
      %v4317 = vsel %vm1604, %v4285, %v4117
      %v4318 = vsel %vm1604, %v4286, %v4119
      %v4319 = vsel %vm1604, %v4287, %v4121
      %v4320 = vsel %vm1604, %v4288, %v4123
      %v4321 = vsel %vm1604, %v4289, %v4125
      %v4322 = vsel %vm1604, %v4290, %v4127
      %v4323 = vsel %vm1604, %v4291, %v4129
      %v4324 = vsel %vm1604, %v4292, %v4131
      %v4325 = vsel %vm1604, %v4293, %v4133
      %v4326 = vsel %vm1604, %v4294, %v4135
      %v4327 = vsel %vm1604, %v4295, %v4137
      %v4328 = vsel %vm1604, %v4296, %v4139
      %v4329 = vsel %vm1604, %v4297, %v4141
      %v4330 = vsel %vm1604, %v4298, %v4141
      %v4331 = vsel %vm1670, %v4299, %v4175
      %v4332 = vsel %vm1670, %v4300, %v4177
      %v4333 = vsel %vm1670, %v4301, %v4179
      %v4334 = vsel %vm1670, %v4302, %v4181
      %v4335 = vsel %vm1670, %v4303, %v4183
      %v4336 = vsel %vm1670, %v4304, %v4185
      %v4337 = vsel %vm1670, %v4305, %v4187
      %v4338 = vsel %vm1670, %v4306, %v4189
      %v4339 = vsel %vm1670, %v4307, %v4191
      %v4340 = vsel %vm1670, %v4308, %v4193
      %v4341 = vsel %vm1670, %v4309, %v4195
      %v4342 = vsel %vm1670, %v4310, %v4197
      %v4343 = vsel %vm1670, %v4311, %v4199
      %v4344 = vsel %vm1670, %v4312, %v4201
      %v4345 = vsel %vm1670, %v4313, %v4203
      %v4346 = vsel %vm1670, %v4314, %v4205
      %v4347 = vsel %vm1670, %v4315, %v4207
      %v4348 = vsel %vm1670, %v4316, %v4209
      %v4349 = vsel %vm1670, %v4317, %v4211
      %v4350 = vsel %vm1670, %v4318, %v4213
      %v4351 = vsel %vm1670, %v4319, %v4215
      %v4352 = vsel %vm1670, %v4320, %v4217
      %v4353 = vsel %vm1670, %v4321, %v4219
      %v4354 = vsel %vm1670, %v4322, %v4221
      %v4355 = vsel %vm1670, %v4323, %v4223
      %v4356 = vsel %vm1670, %v4324, %v4225
      %v4357 = vsel %vm1670, %v4325, %v4227
      %v4358 = vsel %vm1670, %v4326, %v4229
      %v4359 = vsel %vm1670, %v4327, %v4231
      %v4360 = vsel %vm1670, %v4328, %v4233
      %v4361 = vsel %vm1670, %v4329, %v4235
      %v4362 = vsel %vm1670, %v4330, %v4235
      %v4364 = vlaneseq
      %v4365 = vshrl.u32 %v4364, 7
      %v4366 = vsub.s32 0, %v4365
      %v4367 = vrot.slane %v3886, %v4366
      %v4370 = vsel %vm1736, %v4331, 0
      %v4373 = vsel %vm1736, %v4332, 0
      %v4376 = vsel %vm1736, %v4333, 0
      %v4379 = vsel %vm1736, %v4334, 0
      %v4382 = vsel %vm1736, %v4335, 0
      %v4385 = vsel %vm1736, %v4336, 0
      %v4388 = vsel %vm1736, %v4337, 0
      %v4391 = vsel %vm1736, %v4338, 0
      %v4394 = vsel %vm1736, %v4339, 0
      %v4397 = vsel %vm1736, %v4340, 0
      %v4400 = vsel %vm1736, %v4341, 0
      %v4403 = vsel %vm1736, %v4342, 0
      %v4406 = vsel %vm1736, %v4343, 0
      %v4409 = vsel %vm1736, %v4344, 0
      %v4412 = vsel %vm1736, %v4345, 0
      %v4415 = vsel %vm1736, %v4346, 0
      %v4418 = vsel %vm1736, %v4347, 0
      %v4421 = vsel %vm1736, %v4348, 0
      %v4424 = vsel %vm1736, %v4349, 0
      %v4427 = vsel %vm1736, %v4350, 0
      %v4430 = vsel %vm1736, %v4351, 0
      %v4433 = vsel %vm1736, %v4352, 0
      %v4436 = vsel %vm1736, %v4353, 0
      %v4439 = vsel %vm1736, %v4354, 0
      %v4442 = vsel %vm1736, %v4355, 0
      %v4445 = vsel %vm1736, %v4356, 0
      %v4448 = vsel %vm1736, %v4357, 0
      %v4451 = vsel %vm1736, %v4358, 0
      %v4454 = vsel %vm1736, %v4359, 0
      %v4457 = vsel %vm1736, %v4360, 0
      %v4460 = vsel %vm1736, %v4361, 0
      %v4463 = vsel %vm1736, %v4362, 0
      %4465 = vmatprep.subr.mxu0 0.0
      %4466 = vmatpush1.msra.mxu0 0.0
      %4467 = vmatprep.subr.mxu0 0.0
      %4468 = vmatpush1.msra.mxu0 0.0
      %4469 = vmatprep.subr.mxu0 0.0
      %4470 = vmatpush1.msra.mxu0 0.0
      %4471 = vmatprep.subr.mxu0 0.0
      %4472 = vmatpush1.msra.mxu0 0.0
      %4473 = vmatprep.subr.mxu0 0.0
      %4474 = vmatpush1.msra.mxu0 0.0
      %4475 = vmatprep.subr.mxu0 0.0
      %4476 = vmatpush1.msra.mxu0 0.0
      %4477 = vmatprep.subr.mxu0 0.0
      %4478 = vmatpush1.msra.mxu0 0.0
      %4479 = vmatprep.subr.mxu0 0.0
      %4480 = vmatpush1.msra.mxu0 0.0
      %4481 = vmatprep.subr.mxu0 0.0
      %4482 = vmatpush1.msra.mxu0 0.0
      %4483 = vmatprep.subr.mxu0 0.0
      %4484 = vmatpush1.msra.mxu0 0.0
      %4485 = vmatprep.subr.mxu0 0.0
      %4486 = vmatpush1.msra.mxu0 0.0
      %4487 = vmatprep.subr.mxu0 0.0
      %4488 = vmatpush1.msra.mxu0 0.0
      %4489 = vmatprep.subr.mxu0 0.0
      %4490 = vmatpush1.msra.mxu0 %v3885
      %4491 = vmatprep.subr.mxu0 0.0
      %4492 = vmatpush1.msra.mxu0 %v3884
      %4493 = vmatprep.subr.mxu0 0.0
      %4494 = vmatpush1.msra.mxu0 %v3883
      %4495 = vmatprep.subr.mxu0 0.0
      %4496 = vmatpush1.msra.mxu0 %v3882
      %4497 = vmatprep.subr.mxu0 0.0
      %4498 = vmatpush2.msra.mxu0 0.0
      %4499 = vmatprep.subr.mxu0 0.0
      %4500 = vmatpush2.msra.mxu0 0.0
      %4501 = vmatprep.subr.mxu0 0.0
      %4502 = vmatpush2.msra.mxu0 0.0
      %4503 = vmatprep.subr.mxu0 0.0
      %4504 = vmatpush2.msra.mxu0 0.0
      %4505 = vmatprep.subr.mxu0 0.0
      %4506 = vmatpush2.msra.mxu0 0.0
      %4507 = vmatprep.subr.mxu0 0.0
      %4508 = vmatpush2.msra.mxu0 0.0
      %4509 = vmatprep.subr.mxu0 0.0
      %4510 = vmatpush2.msra.mxu0 0.0
      %4511 = vmatprep.subr.mxu0 0.0
      %4512 = vmatpush2.msra.mxu0 0.0
      %4513 = vmatprep.subr.mxu0 0.0
      %4514 = vmatpush2.msra.mxu0 0.0
      %4515 = vmatprep.subr.mxu0 0.0
      %4516 = vmatpush2.msra.mxu0 0.0
      %4517 = vmatprep.subr.mxu0 0.0
      %4518 = vmatpush2.msra.mxu0 0.0
      %4519 = vmatprep.subr.mxu0 0.0
      %4520 = vmatpush2.msra.mxu0 0.0
      %4521 = vmatprep.subr.mxu0 0.0
      %4522 = vmatpush2.msra.mxu0 0.0
      %4523 = vmatprep.subr.mxu0 0.0
      %4524 = vmatpush2.msra.mxu0 0.0
      %4525 = vmatprep.subr.mxu0 0.0
      %4526 = vmatpush2.msra.mxu0 0.0
      %4527 = vmatprep.subr.mxu0 0.0
      %4528 = vmatpush2.msra.mxu0 0.0
      %4529 = vmatprep.mubr.f32.mxu0 0.0
      %4530 = vmatmul.mubr.f32.gmra.mxu0 %v4370
      %v4531 = vpop.f32.mrf.mxu0
      %v4532 = vadd.f32 %v4367, %v4531
      %v4533 = vpop.f32.mrf.mxu0
      %4534 = vmatprep.mubr.f32.mxu0 0.0
      %4535 = vmatmul.mubr.f32.gmra.mxu0 %v4373
      %v4536 = vpop.f32.mrf.mxu0
      %v4537 = vadd.f32 %v4367, %v4536
      %v4538 = vpop.f32.mrf.mxu0
      %4539 = vmatprep.mubr.f32.mxu0 0.0
      %4540 = vmatmul.mubr.f32.gmra.mxu0 %v4376
      %v4541 = vpop.f32.mrf.mxu0
      %v4542 = vadd.f32 %v4367, %v4541
      %v4543 = vpop.f32.mrf.mxu0
      %4544 = vmatprep.mubr.f32.mxu0 0.0
      %4545 = vmatmul.mubr.f32.gmra.mxu0 %v4379
      %v4546 = vpop.f32.mrf.mxu0
      %v4547 = vadd.f32 %v4367, %v4546
      %v4548 = vpop.f32.mrf.mxu0
      %4549 = vmatprep.mubr.f32.mxu0 0.0
      %4550 = vmatmul.mubr.f32.gmra.mxu0 %v4382
      %v4551 = vpop.f32.mrf.mxu0
      %v4552 = vadd.f32 %v4367, %v4551
      %v4553 = vpop.f32.mrf.mxu0
      %4554 = vmatprep.mubr.f32.mxu0 0.0
      %4555 = vmatmul.mubr.f32.gmra.mxu0 %v4385
      %v4556 = vpop.f32.mrf.mxu0
      %v4557 = vadd.f32 %v4367, %v4556
      %v4558 = vpop.f32.mrf.mxu0
      %4559 = vmatprep.mubr.f32.mxu0 0.0
      %4560 = vmatmul.mubr.f32.gmra.mxu0 %v4388
      %v4561 = vpop.f32.mrf.mxu0
      %v4562 = vadd.f32 %v4367, %v4561
      %v4563 = vpop.f32.mrf.mxu0
      %4564 = vmatprep.mubr.f32.mxu0 0.0
      %4565 = vmatmul.mubr.f32.gmra.mxu0 %v4391
      %v4566 = vpop.f32.mrf.mxu0
      %v4567 = vadd.f32 %v4367, %v4566
      %v4568 = vpop.f32.mrf.mxu0
      %4569 = vmatprep.mubr.f32.mxu0 0.0
      %4570 = vmatmul.mubr.f32.gmra.mxu0 %v4394
      %v4571 = vpop.f32.mrf.mxu0
      %v4572 = vadd.f32 %v4367, %v4571
      %v4573 = vpop.f32.mrf.mxu0
      %4574 = vmatprep.mubr.f32.mxu0 0.0
      %4575 = vmatmul.mubr.f32.gmra.mxu0 %v4397
      %v4576 = vpop.f32.mrf.mxu0
      %v4577 = vadd.f32 %v4367, %v4576
      %v4578 = vpop.f32.mrf.mxu0
      %4579 = vmatprep.mubr.f32.mxu0 0.0
      %4580 = vmatmul.mubr.f32.gmra.mxu0 %v4400
      %v4581 = vpop.f32.mrf.mxu0
      %v4582 = vadd.f32 %v4367, %v4581
      %v4583 = vpop.f32.mrf.mxu0
      %4584 = vmatprep.mubr.f32.mxu0 0.0
      %4585 = vmatmul.mubr.f32.gmra.mxu0 %v4403
      %v4586 = vpop.f32.mrf.mxu0
      %v4587 = vadd.f32 %v4367, %v4586
      %v4588 = vpop.f32.mrf.mxu0
      %4589 = vmatprep.mubr.f32.mxu0 0.0
      %4590 = vmatmul.mubr.f32.gmra.mxu0 %v4406
      %v4591 = vpop.f32.mrf.mxu0
      %v4592 = vadd.f32 %v4367, %v4591
      %v4593 = vpop.f32.mrf.mxu0
      %4594 = vmatprep.mubr.f32.mxu0 0.0
      %4595 = vmatmul.mubr.f32.gmra.mxu0 %v4409
      %v4596 = vpop.f32.mrf.mxu0
      %v4597 = vadd.f32 %v4367, %v4596
      %v4598 = vpop.f32.mrf.mxu0
      %4599 = vmatprep.mubr.f32.mxu0 0.0
      %4600 = vmatmul.mubr.f32.gmra.mxu0 %v4412
      %v4601 = vpop.f32.mrf.mxu0
      %v4602 = vadd.f32 %v4367, %v4601
      %v4603 = vpop.f32.mrf.mxu0
      %4604 = vmatprep.mubr.f32.mxu0 0.0
      %4605 = vmatmul.mubr.f32.gmra.mxu0 %v4415
      %v4606 = vpop.f32.mrf.mxu0
      %v4607 = vadd.f32 %v4367, %v4606
      %v4608 = vpop.f32.mrf.mxu0
      %4609 = vmatprep.mubr.f32.mxu0 0.0
      %4610 = vmatmul.mubr.f32.gmra.mxu0 %v4418
      %v4611 = vpop.f32.mrf.mxu0
      %v4612 = vadd.f32 %v4367, %v4611
      %v4613 = vpop.f32.mrf.mxu0
      %4614 = vmatprep.mubr.f32.mxu0 0.0
      %4615 = vmatmul.mubr.f32.gmra.mxu0 %v4421
      %v4616 = vpop.f32.mrf.mxu0
      %v4617 = vadd.f32 %v4367, %v4616
      %v4618 = vpop.f32.mrf.mxu0
      %4619 = vmatprep.mubr.f32.mxu0 0.0
      %4620 = vmatmul.mubr.f32.gmra.mxu0 %v4424
      %v4621 = vpop.f32.mrf.mxu0
      %v4622 = vadd.f32 %v4367, %v4621
      %v4623 = vpop.f32.mrf.mxu0
      %4624 = vmatprep.mubr.f32.mxu0 0.0
      %4625 = vmatmul.mubr.f32.gmra.mxu0 %v4427
      %v4626 = vpop.f32.mrf.mxu0
      %v4627 = vadd.f32 %v4367, %v4626
      %v4628 = vpop.f32.mrf.mxu0
      %4629 = vmatprep.mubr.f32.mxu0 0.0
      %4630 = vmatmul.mubr.f32.gmra.mxu0 %v4430
      %v4631 = vpop.f32.mrf.mxu0
      %v4632 = vadd.f32 %v4367, %v4631
      %v4633 = vpop.f32.mrf.mxu0
      %4634 = vmatprep.mubr.f32.mxu0 0.0
      %4635 = vmatmul.mubr.f32.gmra.mxu0 %v4433
      %v4636 = vpop.f32.mrf.mxu0
      %v4637 = vadd.f32 %v4367, %v4636
      %v4638 = vpop.f32.mrf.mxu0
      %4639 = vmatprep.mubr.f32.mxu0 0.0
      %4640 = vmatmul.mubr.f32.gmra.mxu0 %v4436
      %v4641 = vpop.f32.mrf.mxu0
      %v4642 = vadd.f32 %v4367, %v4641
      %v4643 = vpop.f32.mrf.mxu0
      %4644 = vmatprep.mubr.f32.mxu0 0.0
      %4645 = vmatmul.mubr.f32.gmra.mxu0 %v4439
      %v4646 = vpop.f32.mrf.mxu0
      %v4647 = vadd.f32 %v4367, %v4646
      %v4648 = vpop.f32.mrf.mxu0
      %4649 = vmatprep.mubr.f32.mxu0 0.0
      %4650 = vmatmul.mubr.f32.gmra.mxu0 %v4442
      %v4651 = vpop.f32.mrf.mxu0
      %v4652 = vadd.f32 %v4367, %v4651
      %v4653 = vpop.f32.mrf.mxu0
      %4654 = vmatprep.mubr.f32.mxu0 0.0
      %4655 = vmatmul.mubr.f32.gmra.mxu0 %v4445
      %v4656 = vpop.f32.mrf.mxu0
      %v4657 = vadd.f32 %v4367, %v4656
      %v4658 = vpop.f32.mrf.mxu0
      %4659 = vmatprep.mubr.f32.mxu0 0.0
      %4660 = vmatmul.mubr.f32.gmra.mxu0 %v4448
      %v4661 = vpop.f32.mrf.mxu0
      %v4662 = vadd.f32 %v4367, %v4661
      %v4663 = vpop.f32.mrf.mxu0
      %4664 = vmatprep.mubr.f32.mxu0 0.0
      %4665 = vmatmul.mubr.f32.gmra.mxu0 %v4451
      %v4666 = vpop.f32.mrf.mxu0
      %v4667 = vadd.f32 %v4367, %v4666
      %v4668 = vpop.f32.mrf.mxu0
      %4669 = vmatprep.mubr.f32.mxu0 0.0
      %4670 = vmatmul.mubr.f32.gmra.mxu0 %v4454
      %v4671 = vpop.f32.mrf.mxu0
      %v4672 = vadd.f32 %v4367, %v4671
      %v4673 = vpop.f32.mrf.mxu0
      %4674 = vmatprep.mubr.f32.mxu0 0.0
      %4675 = vmatmul.mubr.f32.gmra.mxu0 %v4457
      %v4676 = vpop.f32.mrf.mxu0
      %v4677 = vadd.f32 %v4367, %v4676
      %v4678 = vpop.f32.mrf.mxu0
      %4679 = vmatprep.mubr.f32.mxu0 0.0
      %4680 = vmatmul.mubr.f32.gmra.mxu0 %v4460
      %v4681 = vpop.f32.mrf.mxu0
      %v4682 = vadd.f32 %v4367, %v4681
      %v4683 = vpop.f32.mrf.mxu0
      %4684 = vmatprep.mubr.f32.mxu0 0.0
      %4685 = vmatmul.mubr.f32.gmra.mxu0 %v4463
      %v4686 = vpop.f32.mrf.mxu0
      %v4687 = vadd.f32 %v4367, %v4686
      %v4688 = vpop.f32.mrf.mxu0
      %4689 = vdwg.mxu0
      %v4690 = vmax.f32 %v4532, 0.0
      %v4691 = vmax.f32 %v4537, 0.0
      %v4692 = vmax.f32 %v4542, 0.0
      %v4693 = vmax.f32 %v4547, 0.0
      %v4694 = vmax.f32 %v4552, 0.0
      %v4695 = vmax.f32 %v4557, 0.0
      %v4696 = vmax.f32 %v4562, 0.0
      %v4697 = vmax.f32 %v4567, 0.0
      %v4698 = vmax.f32 %v4572, 0.0
      %v4699 = vmax.f32 %v4577, 0.0
      %v4700 = vmax.f32 %v4582, 0.0
      %v4701 = vmax.f32 %v4587, 0.0
      %v4702 = vmax.f32 %v4592, 0.0
      %v4703 = vmax.f32 %v4597, 0.0
      %v4704 = vmax.f32 %v4602, 0.0
      %v4705 = vmax.f32 %v4607, 0.0
      %v4706 = vmax.f32 %v4612, 0.0
      %v4707 = vmax.f32 %v4617, 0.0
      %v4708 = vmax.f32 %v4622, 0.0
      %v4709 = vmax.f32 %v4627, 0.0
      %v4710 = vmax.f32 %v4632, 0.0
      %v4711 = vmax.f32 %v4637, 0.0
      %v4712 = vmax.f32 %v4642, 0.0
      %v4713 = vmax.f32 %v4647, 0.0
      %v4714 = vmax.f32 %v4652, 0.0
      %v4715 = vmax.f32 %v4657, 0.0
      %v4716 = vmax.f32 %v4662, 0.0
      %v4717 = vmax.f32 %v4667, 0.0
      %v4718 = vmax.f32 %v4672, 0.0
      %v4719 = vmax.f32 %v4677, 0.0
      %v4720 = vmax.f32 %v4682, 0.0
      %v4721 = vmax.f32 %v4687, 0.0
      %4754 = vrot.lane.b32.xlu0 %v4690, 120
      %v4755 = vpop.permute.xlu0 %4754
      %4756 = vrot.lane.b32.xlu0 %v4691, 120
      %v4757 = vpop.permute.xlu0 %4756
      %4758 = vrot.lane.b32.xlu0 %v4692, 120
      %v4759 = vpop.permute.xlu0 %4758
      %4760 = vrot.lane.b32.xlu0 %v4693, 120
      %v4761 = vpop.permute.xlu0 %4760
      %4762 = vrot.lane.b32.xlu0 %v4694, 120
      %v4763 = vpop.permute.xlu0 %4762
      %4764 = vrot.lane.b32.xlu0 %v4695, 120
      %v4765 = vpop.permute.xlu0 %4764
      %4766 = vrot.lane.b32.xlu0 %v4696, 120
      %v4767 = vpop.permute.xlu0 %4766
      %4768 = vrot.lane.b32.xlu0 %v4697, 120
      %v4769 = vpop.permute.xlu0 %4768
      %4770 = vrot.lane.b32.xlu0 %v4698, 120
      %v4771 = vpop.permute.xlu0 %4770
      %4772 = vrot.lane.b32.xlu0 %v4699, 120
      %v4773 = vpop.permute.xlu0 %4772
      %4774 = vrot.lane.b32.xlu0 %v4700, 120
      %v4775 = vpop.permute.xlu0 %4774
      %4776 = vrot.lane.b32.xlu0 %v4701, 120
      %v4777 = vpop.permute.xlu0 %4776
      %4778 = vrot.lane.b32.xlu0 %v4702, 120
      %v4779 = vpop.permute.xlu0 %4778
      %4780 = vrot.lane.b32.xlu0 %v4703, 120
      %v4781 = vpop.permute.xlu0 %4780
      %4782 = vrot.lane.b32.xlu0 %v4704, 120
      %v4783 = vpop.permute.xlu0 %4782
      %4784 = vrot.lane.b32.xlu0 %v4705, 120
      %v4785 = vpop.permute.xlu0 %4784
      %4786 = vrot.lane.b32.xlu0 %v4706, 120
      %v4787 = vpop.permute.xlu0 %4786
      %4788 = vrot.lane.b32.xlu0 %v4707, 120
      %v4789 = vpop.permute.xlu0 %4788
      %4790 = vrot.lane.b32.xlu0 %v4708, 120
      %v4791 = vpop.permute.xlu0 %4790
      %4792 = vrot.lane.b32.xlu0 %v4709, 120
      %v4793 = vpop.permute.xlu0 %4792
      %4794 = vrot.lane.b32.xlu0 %v4710, 120
      %v4795 = vpop.permute.xlu0 %4794
      %4796 = vrot.lane.b32.xlu0 %v4711, 120
      %v4797 = vpop.permute.xlu0 %4796
      %4798 = vrot.lane.b32.xlu0 %v4712, 120
      %v4799 = vpop.permute.xlu0 %4798
      %4800 = vrot.lane.b32.xlu0 %v4713, 120
      %v4801 = vpop.permute.xlu0 %4800
      %4802 = vrot.lane.b32.xlu0 %v4714, 120
      %v4803 = vpop.permute.xlu0 %4802
      %4804 = vrot.lane.b32.xlu0 %v4715, 120
      %v4805 = vpop.permute.xlu0 %4804
      %4806 = vrot.lane.b32.xlu0 %v4716, 120
      %v4807 = vpop.permute.xlu0 %4806
      %4808 = vrot.lane.b32.xlu0 %v4717, 120
      %v4809 = vpop.permute.xlu0 %4808
      %4810 = vrot.lane.b32.xlu0 %v4718, 120
      %v4811 = vpop.permute.xlu0 %4810
      %4812 = vrot.lane.b32.xlu0 %v4719, 120
      %v4813 = vpop.permute.xlu0 %4812
      %4814 = vrot.lane.b32.xlu0 %v4720, 120
      %v4815 = vpop.permute.xlu0 %4814
      %4816 = vrot.lane.b32.xlu0 %v4721, 120
      %v4817 = vpop.permute.xlu0 %4816
      %v4850 = vld [vmem:[%s320] sm:$0xff]
      %v4851 = vld [vmem:[%s320 + $0x8] sm:$0xff]
      %v4852 = vld [vmem:[%s320 + $0x10] sm:$0xff]
      %v4853 = vld [vmem:[%s320 + $0x18] sm:$0xff]
      %v4854 = vld [vmem:[%s320 + $0x20] sm:$0xff]
      %v4855 = vld [vmem:[%s320 + $0x28] sm:$0xff]
      %v4856 = vld [vmem:[%s320 + $0x30] sm:$0xff]
      %v4857 = vld [vmem:[%s320 + $0x38] sm:$0xff]
      %v4858 = vld [vmem:[%s320 + $0x40] sm:$0xff]
      %v4859 = vld [vmem:[%s320 + $0x48] sm:$0xff]
      %v4860 = vld [vmem:[%s320 + $0x50] sm:$0xff]
      %v4861 = vld [vmem:[%s320 + $0x58] sm:$0xff]
      %v4862 = vld [vmem:[%s320 + $0x60] sm:$0xff]
      %v4863 = vld [vmem:[%s320 + $0x68] sm:$0xff]
      %v4864 = vld [vmem:[%s320 + $0x70] sm:$0xff]
      %v4865 = vld [vmem:[%s320 + $0x78] sm:$0xff]
      %v4866 = vld [vmem:[%s320 + $0x80] sm:$0xff]
      %v4867 = vld [vmem:[%s320 + $0x88] sm:$0xff]
      %v4868 = vld [vmem:[%s320 + $0x90] sm:$0xff]
      %v4869 = vld [vmem:[%s320 + $0x98] sm:$0xff]
      %v4870 = vld [vmem:[%s320 + $0xa0] sm:$0xff]
      %v4871 = vld [vmem:[%s320 + $0xa8] sm:$0xff]
      %v4872 = vld [vmem:[%s320 + $0xb0] sm:$0xff]
      %v4873 = vld [vmem:[%s320 + $0xb8] sm:$0xff]
      %v4874 = vld [vmem:[%s320 + $0xc0] sm:$0xff]
      %v4875 = vld [vmem:[%s320 + $0xc8] sm:$0xff]
      %v4876 = vld [vmem:[%s320 + $0xd0] sm:$0xff]
      %v4877 = vld [vmem:[%s320 + $0xd8] sm:$0xff]
      %v4878 = vld [vmem:[%s320 + $0xe0] sm:$0xff]
      %v4879 = vld [vmem:[%s320 + $0xe8] sm:$0xff]
      %v4880 = vld [vmem:[%s320 + $0xf0] sm:$0xff]
      %v4881 = vld [vmem:[%s320 + $0xf8] sm:$0xff]
      %v4882 = vld [vmem:[%s320 + $0x100] sm:$0xff]
      %v4883 = vld [vmem:[%s320 + $0x108] sm:$0xff]
      %v4884 = vld [vmem:[%s320 + $0x110] sm:$0xff]
      %v4885 = vld [vmem:[%s320 + $0x118] sm:$0xff]
      %v4886 = vld [vmem:[%s320 + $0x120] sm:$0xff]
      %v4887 = vld [vmem:[%s320 + $0x128] sm:$0xff]
      %v4888 = vld [vmem:[%s320 + $0x130] sm:$0xff]
      %v4889 = vld [vmem:[%s320 + $0x138] sm:$0xff]
      %v4890 = vld [vmem:[%s320 + $0x140] sm:$0xff]
      %v4891 = vld [vmem:[%s320 + $0x148] sm:$0xff]
      %v4892 = vld [vmem:[%s320 + $0x150] sm:$0xff]
      %v4893 = vld [vmem:[%s320 + $0x158] sm:$0xff]
      %v4894 = vld [vmem:[%s320 + $0x160] sm:$0xff]
      %v4895 = vld [vmem:[%s320 + $0x168] sm:$0xff]
      %v4896 = vld [vmem:[%s320 + $0x170] sm:$0xff]
      %v4897 = vld [vmem:[%s320 + $0x178] sm:$0xff]
      %v4898 = vld [vmem:[%s320 + $0x180] sm:$0xff]
      %v4899 = vld [vmem:[%s320 + $0x188] sm:$0xff]
      %v4900 = vld [vmem:[%s320 + $0x190] sm:$0xff]
      %v4901 = vld [vmem:[%s320 + $0x198] sm:$0xff]
      %v4902 = vld [vmem:[%s320 + $0x1a0] sm:$0xff]
      %v4903 = vld [vmem:[%s320 + $0x1a8] sm:$0xff]
      %v4904 = vld [vmem:[%s320 + $0x1b0] sm:$0xff]
      %v4905 = vld [vmem:[%s320 + $0x1b8] sm:$0xff]
      %v4906 = vld [vmem:[%s320 + $0x1c0] sm:$0xff]
      %v4907 = vld [vmem:[%s320 + $0x1c8] sm:$0xff]
      %v4908 = vld [vmem:[%s320 + $0x1d0] sm:$0xff]
      %v4909 = vld [vmem:[%s320 + $0x1d8] sm:$0xff]
      %v4910 = vld [vmem:[%s320 + $0x1e0] sm:$0xff]
      %v4911 = vld [vmem:[%s320 + $0x1e8] sm:$0xff]
      %v4912 = vld [vmem:[%s320 + $0x1f0] sm:$0xff]
      %v4913 = vld [vmem:[%s320 + $0x1f8] sm:$0xff]
      %4978 = vrot.lane.b32.xlu0 %v4850, 4
      %v4979 = vpop.permute.xlu0 %4978
      %4980 = vrot.lane.b32.xlu0 %v4851, 4
      %v4981 = vpop.permute.xlu0 %4980
      %4982 = vrot.lane.b32.xlu0 %v4852, 4
      %v4983 = vpop.permute.xlu0 %4982
      %4984 = vrot.lane.b32.xlu0 %v4853, 4
      %v4985 = vpop.permute.xlu0 %4984
      %4986 = vrot.lane.b32.xlu0 %v4854, 4
      %v4987 = vpop.permute.xlu0 %4986
      %4988 = vrot.lane.b32.xlu0 %v4855, 4
      %v4989 = vpop.permute.xlu0 %4988
      %4990 = vrot.lane.b32.xlu0 %v4856, 4
      %v4991 = vpop.permute.xlu0 %4990
      %4992 = vrot.lane.b32.xlu0 %v4857, 4
      %v4993 = vpop.permute.xlu0 %4992
      %4994 = vrot.lane.b32.xlu0 %v4858, 4
      %v4995 = vpop.permute.xlu0 %4994
      %4996 = vrot.lane.b32.xlu0 %v4859, 4
      %v4997 = vpop.permute.xlu0 %4996
      %4998 = vrot.lane.b32.xlu0 %v4860, 4
      %v4999 = vpop.permute.xlu0 %4998
      %5000 = vrot.lane.b32.xlu0 %v4861, 4
      %v5001 = vpop.permute.xlu0 %5000
      %5002 = vrot.lane.b32.xlu0 %v4862, 4
      %v5003 = vpop.permute.xlu0 %5002
      %5004 = vrot.lane.b32.xlu0 %v4863, 4
      %v5005 = vpop.permute.xlu0 %5004
      %5006 = vrot.lane.b32.xlu0 %v4864, 4
      %v5007 = vpop.permute.xlu0 %5006
      %5008 = vrot.lane.b32.xlu0 %v4865, 4
      %v5009 = vpop.permute.xlu0 %5008
      %5010 = vrot.lane.b32.xlu0 %v4866, 4
      %v5011 = vpop.permute.xlu0 %5010
      %5012 = vrot.lane.b32.xlu0 %v4867, 4
      %v5013 = vpop.permute.xlu0 %5012
      %5014 = vrot.lane.b32.xlu0 %v4868, 4
      %v5015 = vpop.permute.xlu0 %5014
      %5016 = vrot.lane.b32.xlu0 %v4869, 4
      %v5017 = vpop.permute.xlu0 %5016
      %5018 = vrot.lane.b32.xlu0 %v4870, 4
      %v5019 = vpop.permute.xlu0 %5018
      %5020 = vrot.lane.b32.xlu0 %v4871, 4
      %v5021 = vpop.permute.xlu0 %5020
      %5022 = vrot.lane.b32.xlu0 %v4872, 4
      %v5023 = vpop.permute.xlu0 %5022
      %5024 = vrot.lane.b32.xlu0 %v4873, 4
      %v5025 = vpop.permute.xlu0 %5024
      %5026 = vrot.lane.b32.xlu0 %v4874, 4
      %v5027 = vpop.permute.xlu0 %5026
      %5028 = vrot.lane.b32.xlu0 %v4875, 4
      %v5029 = vpop.permute.xlu0 %5028
      %5030 = vrot.lane.b32.xlu0 %v4876, 4
      %v5031 = vpop.permute.xlu0 %5030
      %5032 = vrot.lane.b32.xlu0 %v4877, 4
      %v5033 = vpop.permute.xlu0 %5032
      %5034 = vrot.lane.b32.xlu0 %v4878, 4
      %v5035 = vpop.permute.xlu0 %5034
      %5036 = vrot.lane.b32.xlu0 %v4879, 4
      %v5037 = vpop.permute.xlu0 %5036
      %5038 = vrot.lane.b32.xlu0 %v4880, 4
      %v5039 = vpop.permute.xlu0 %5038
      %5040 = vrot.lane.b32.xlu0 %v4881, 4
      %v5041 = vpop.permute.xlu0 %5040
      %5042 = vrot.lane.b32.xlu0 %v4882, 4
      %v5043 = vpop.permute.xlu0 %5042
      %5044 = vrot.lane.b32.xlu0 %v4883, 4
      %v5045 = vpop.permute.xlu0 %5044
      %5046 = vrot.lane.b32.xlu0 %v4884, 4
      %v5047 = vpop.permute.xlu0 %5046
      %5048 = vrot.lane.b32.xlu0 %v4885, 4
      %v5049 = vpop.permute.xlu0 %5048
      %5050 = vrot.lane.b32.xlu0 %v4886, 4
      %v5051 = vpop.permute.xlu0 %5050
      %5052 = vrot.lane.b32.xlu0 %v4887, 4
      %v5053 = vpop.permute.xlu0 %5052
      %5054 = vrot.lane.b32.xlu0 %v4888, 4
      %v5055 = vpop.permute.xlu0 %5054
      %5056 = vrot.lane.b32.xlu0 %v4889, 4
      %v5057 = vpop.permute.xlu0 %5056
      %5058 = vrot.lane.b32.xlu0 %v4890, 4
      %v5059 = vpop.permute.xlu0 %5058
      %5060 = vrot.lane.b32.xlu0 %v4891, 4
      %v5061 = vpop.permute.xlu0 %5060
      %5062 = vrot.lane.b32.xlu0 %v4892, 4
      %v5063 = vpop.permute.xlu0 %5062
      %5064 = vrot.lane.b32.xlu0 %v4893, 4
      %v5065 = vpop.permute.xlu0 %5064
      %5066 = vrot.lane.b32.xlu0 %v4894, 4
      %v5067 = vpop.permute.xlu0 %5066
      %5068 = vrot.lane.b32.xlu0 %v4895, 4
      %v5069 = vpop.permute.xlu0 %5068
      %5070 = vrot.lane.b32.xlu0 %v4896, 4
      %v5071 = vpop.permute.xlu0 %5070
      %5072 = vrot.lane.b32.xlu0 %v4897, 4
      %v5073 = vpop.permute.xlu0 %5072
      %5074 = vrot.lane.b32.xlu0 %v4898, 4
      %v5075 = vpop.permute.xlu0 %5074
      %5076 = vrot.lane.b32.xlu0 %v4899, 4
      %v5077 = vpop.permute.xlu0 %5076
      %5078 = vrot.lane.b32.xlu0 %v4900, 4
      %v5079 = vpop.permute.xlu0 %5078
      %5080 = vrot.lane.b32.xlu0 %v4901, 4
      %v5081 = vpop.permute.xlu0 %5080
      %5082 = vrot.lane.b32.xlu0 %v4902, 4
      %v5083 = vpop.permute.xlu0 %5082
      %5084 = vrot.lane.b32.xlu0 %v4903, 4
      %v5085 = vpop.permute.xlu0 %5084
      %5086 = vrot.lane.b32.xlu0 %v4904, 4
      %v5087 = vpop.permute.xlu0 %5086
      %5088 = vrot.lane.b32.xlu0 %v4905, 4
      %v5089 = vpop.permute.xlu0 %5088
      %5090 = vrot.lane.b32.xlu0 %v4906, 4
      %v5091 = vpop.permute.xlu0 %5090
      %5092 = vrot.lane.b32.xlu0 %v4907, 4
      %v5093 = vpop.permute.xlu0 %5092
      %5094 = vrot.lane.b32.xlu0 %v4908, 4
      %v5095 = vpop.permute.xlu0 %5094
      %5096 = vrot.lane.b32.xlu0 %v4909, 4
      %v5097 = vpop.permute.xlu0 %5096
      %5098 = vrot.lane.b32.xlu0 %v4910, 4
      %v5099 = vpop.permute.xlu0 %5098
      %5100 = vrot.lane.b32.xlu0 %v4911, 4
      %v5101 = vpop.permute.xlu0 %5100
      %5102 = vrot.lane.b32.xlu0 %v4912, 4
      %v5103 = vpop.permute.xlu0 %5102
      %5104 = vrot.lane.b32.xlu0 %v4913, 4
      %v5105 = vpop.permute.xlu0 %5104
      %5170 = vrot.lane.b32.xlu0 %v4690, 4
      %v5171 = vpop.permute.xlu0 %5170
      %5172 = vrot.lane.b32.xlu0 %v4691, 4
      %v5173 = vpop.permute.xlu0 %5172
      %5174 = vrot.lane.b32.xlu0 %v4755, 4
      %v5175 = vpop.permute.xlu0 %5174
      %5176 = vrot.lane.b32.xlu0 %v4757, 4
      %v5177 = vpop.permute.xlu0 %5176
      %5178 = vrot.lane.b32.xlu0 %v4692, 4
      %v5179 = vpop.permute.xlu0 %5178
      %5180 = vrot.lane.b32.xlu0 %v4693, 4
      %v5181 = vpop.permute.xlu0 %5180
      %5182 = vrot.lane.b32.xlu0 %v4759, 4
      %v5183 = vpop.permute.xlu0 %5182
      %5184 = vrot.lane.b32.xlu0 %v4761, 4
      %v5185 = vpop.permute.xlu0 %5184
      %5186 = vrot.lane.b32.xlu0 %v4694, 4
      %v5187 = vpop.permute.xlu0 %5186
      %5188 = vrot.lane.b32.xlu0 %v4695, 4
      %v5189 = vpop.permute.xlu0 %5188
      %5190 = vrot.lane.b32.xlu0 %v4763, 4
      %v5191 = vpop.permute.xlu0 %5190
      %5192 = vrot.lane.b32.xlu0 %v4765, 4
      %v5193 = vpop.permute.xlu0 %5192
      %5194 = vrot.lane.b32.xlu0 %v4696, 4
      %v5195 = vpop.permute.xlu0 %5194
      %5196 = vrot.lane.b32.xlu0 %v4697, 4
      %v5197 = vpop.permute.xlu0 %5196
      %5198 = vrot.lane.b32.xlu0 %v4767, 4
      %v5199 = vpop.permute.xlu0 %5198
      %5200 = vrot.lane.b32.xlu0 %v4769, 4
      %v5201 = vpop.permute.xlu0 %5200
      %5202 = vrot.lane.b32.xlu0 %v4698, 4
      %v5203 = vpop.permute.xlu0 %5202
      %5204 = vrot.lane.b32.xlu0 %v4699, 4
      %v5205 = vpop.permute.xlu0 %5204
      %5206 = vrot.lane.b32.xlu0 %v4771, 4
      %v5207 = vpop.permute.xlu0 %5206
      %5208 = vrot.lane.b32.xlu0 %v4773, 4
      %v5209 = vpop.permute.xlu0 %5208
      %5210 = vrot.lane.b32.xlu0 %v4700, 4
      %v5211 = vpop.permute.xlu0 %5210
      %5212 = vrot.lane.b32.xlu0 %v4701, 4
      %v5213 = vpop.permute.xlu0 %5212
      %5214 = vrot.lane.b32.xlu0 %v4775, 4
      %v5215 = vpop.permute.xlu0 %5214
      %5216 = vrot.lane.b32.xlu0 %v4777, 4
      %v5217 = vpop.permute.xlu0 %5216
      %5218 = vrot.lane.b32.xlu0 %v4702, 4
      %v5219 = vpop.permute.xlu0 %5218
      %5220 = vrot.lane.b32.xlu0 %v4703, 4
      %v5221 = vpop.permute.xlu0 %5220
      %5222 = vrot.lane.b32.xlu0 %v4779, 4
      %v5223 = vpop.permute.xlu0 %5222
      %5224 = vrot.lane.b32.xlu0 %v4781, 4
      %v5225 = vpop.permute.xlu0 %5224
      %5226 = vrot.lane.b32.xlu0 %v4704, 4
      %v5227 = vpop.permute.xlu0 %5226
      %5228 = vrot.lane.b32.xlu0 %v4705, 4
      %v5229 = vpop.permute.xlu0 %5228
      %5230 = vrot.lane.b32.xlu0 %v4783, 4
      %v5231 = vpop.permute.xlu0 %5230
      %5232 = vrot.lane.b32.xlu0 %v4785, 4
      %v5233 = vpop.permute.xlu0 %5232
      %5234 = vrot.lane.b32.xlu0 %v4706, 4
      %v5235 = vpop.permute.xlu0 %5234
      %5236 = vrot.lane.b32.xlu0 %v4707, 4
      %v5237 = vpop.permute.xlu0 %5236
      %5238 = vrot.lane.b32.xlu0 %v4787, 4
      %v5239 = vpop.permute.xlu0 %5238
      %5240 = vrot.lane.b32.xlu0 %v4789, 4
      %v5241 = vpop.permute.xlu0 %5240
      %5242 = vrot.lane.b32.xlu0 %v4708, 4
      %v5243 = vpop.permute.xlu0 %5242
      %5244 = vrot.lane.b32.xlu0 %v4709, 4
      %v5245 = vpop.permute.xlu0 %5244
      %5246 = vrot.lane.b32.xlu0 %v4791, 4
      %v5247 = vpop.permute.xlu0 %5246
      %5248 = vrot.lane.b32.xlu0 %v4793, 4
      %v5249 = vpop.permute.xlu0 %5248
      %5250 = vrot.lane.b32.xlu0 %v4710, 4
      %v5251 = vpop.permute.xlu0 %5250
      %5252 = vrot.lane.b32.xlu0 %v4711, 4
      %v5253 = vpop.permute.xlu0 %5252
      %5254 = vrot.lane.b32.xlu0 %v4795, 4
      %v5255 = vpop.permute.xlu0 %5254
      %5256 = vrot.lane.b32.xlu0 %v4797, 4
      %v5257 = vpop.permute.xlu0 %5256
      %5258 = vrot.lane.b32.xlu0 %v4712, 4
      %v5259 = vpop.permute.xlu0 %5258
      %5260 = vrot.lane.b32.xlu0 %v4713, 4
      %v5261 = vpop.permute.xlu0 %5260
      %5262 = vrot.lane.b32.xlu0 %v4799, 4
      %v5263 = vpop.permute.xlu0 %5262
      %5264 = vrot.lane.b32.xlu0 %v4801, 4
      %v5265 = vpop.permute.xlu0 %5264
      %5266 = vrot.lane.b32.xlu0 %v4714, 4
      %v5267 = vpop.permute.xlu0 %5266
      %5268 = vrot.lane.b32.xlu0 %v4715, 4
      %v5269 = vpop.permute.xlu0 %5268
      %5270 = vrot.lane.b32.xlu0 %v4803, 4
      %v5271 = vpop.permute.xlu0 %5270
      %5272 = vrot.lane.b32.xlu0 %v4805, 4
      %v5273 = vpop.permute.xlu0 %5272
      %5274 = vrot.lane.b32.xlu0 %v4716, 4
      %v5275 = vpop.permute.xlu0 %5274
      %5276 = vrot.lane.b32.xlu0 %v4717, 4
      %v5277 = vpop.permute.xlu0 %5276
      %5278 = vrot.lane.b32.xlu0 %v4807, 4
      %v5279 = vpop.permute.xlu0 %5278
      %5280 = vrot.lane.b32.xlu0 %v4809, 4
      %v5281 = vpop.permute.xlu0 %5280
      %5282 = vrot.lane.b32.xlu0 %v4718, 4
      %v5283 = vpop.permute.xlu0 %5282
      %5284 = vrot.lane.b32.xlu0 %v4719, 4
      %v5285 = vpop.permute.xlu0 %5284
      %5286 = vrot.lane.b32.xlu0 %v4811, 4
      %v5287 = vpop.permute.xlu0 %5286
      %5288 = vrot.lane.b32.xlu0 %v4813, 4
      %v5289 = vpop.permute.xlu0 %5288
      %5290 = vrot.lane.b32.xlu0 %v4720, 4
      %v5291 = vpop.permute.xlu0 %5290
      %5292 = vrot.lane.b32.xlu0 %v4721, 4
      %v5293 = vpop.permute.xlu0 %5292
      %5294 = vrot.lane.b32.xlu0 %v4815, 4
      %v5295 = vpop.permute.xlu0 %5294
      %5296 = vrot.lane.b32.xlu0 %v4817, 4
      %v5297 = vpop.permute.xlu0 %5296
      %5362 = vrot.lane.b32.xlu0 %v4850, 8
      %v5363 = vpop.permute.xlu0 %5362
      %5364 = vrot.lane.b32.xlu0 %v4851, 8
      %v5365 = vpop.permute.xlu0 %5364
      %5366 = vrot.lane.b32.xlu0 %v4852, 8
      %v5367 = vpop.permute.xlu0 %5366
      %5368 = vrot.lane.b32.xlu0 %v4853, 8
      %v5369 = vpop.permute.xlu0 %5368
      %5370 = vrot.lane.b32.xlu0 %v4854, 8
      %v5371 = vpop.permute.xlu0 %5370
      %5372 = vrot.lane.b32.xlu0 %v4855, 8
      %v5373 = vpop.permute.xlu0 %5372
      %5374 = vrot.lane.b32.xlu0 %v4856, 8
      %v5375 = vpop.permute.xlu0 %5374
      %5376 = vrot.lane.b32.xlu0 %v4857, 8
      %v5377 = vpop.permute.xlu0 %5376
      %5378 = vrot.lane.b32.xlu0 %v4858, 8
      %v5379 = vpop.permute.xlu0 %5378
      %5380 = vrot.lane.b32.xlu0 %v4859, 8
      %v5381 = vpop.permute.xlu0 %5380
      %5382 = vrot.lane.b32.xlu0 %v4860, 8
      %v5383 = vpop.permute.xlu0 %5382
      %5384 = vrot.lane.b32.xlu0 %v4861, 8
      %v5385 = vpop.permute.xlu0 %5384
      %5386 = vrot.lane.b32.xlu0 %v4862, 8
      %v5387 = vpop.permute.xlu0 %5386
      %5388 = vrot.lane.b32.xlu0 %v4863, 8
      %v5389 = vpop.permute.xlu0 %5388
      %5390 = vrot.lane.b32.xlu0 %v4864, 8
      %v5391 = vpop.permute.xlu0 %5390
      %5392 = vrot.lane.b32.xlu0 %v4865, 8
      %v5393 = vpop.permute.xlu0 %5392
      %5394 = vrot.lane.b32.xlu0 %v4866, 8
      %v5395 = vpop.permute.xlu0 %5394
      %5396 = vrot.lane.b32.xlu0 %v4867, 8
      %v5397 = vpop.permute.xlu0 %5396
      %5398 = vrot.lane.b32.xlu0 %v4868, 8
      %v5399 = vpop.permute.xlu0 %5398
      %5400 = vrot.lane.b32.xlu0 %v4869, 8
      %v5401 = vpop.permute.xlu0 %5400
      %5402 = vrot.lane.b32.xlu0 %v4870, 8
      %v5403 = vpop.permute.xlu0 %5402
      %5404 = vrot.lane.b32.xlu0 %v4871, 8
      %v5405 = vpop.permute.xlu0 %5404
      %5406 = vrot.lane.b32.xlu0 %v4872, 8
      %v5407 = vpop.permute.xlu0 %5406
      %5408 = vrot.lane.b32.xlu0 %v4873, 8
      %v5409 = vpop.permute.xlu0 %5408
      %5410 = vrot.lane.b32.xlu0 %v4874, 8
      %v5411 = vpop.permute.xlu0 %5410
      %5412 = vrot.lane.b32.xlu0 %v4875, 8
      %v5413 = vpop.permute.xlu0 %5412
      %5414 = vrot.lane.b32.xlu0 %v4876, 8
      %v5415 = vpop.permute.xlu0 %5414
      %5416 = vrot.lane.b32.xlu0 %v4877, 8
      %v5417 = vpop.permute.xlu0 %5416
      %5418 = vrot.lane.b32.xlu0 %v4878, 8
      %v5419 = vpop.permute.xlu0 %5418
      %5420 = vrot.lane.b32.xlu0 %v4879, 8
      %v5421 = vpop.permute.xlu0 %5420
      %5422 = vrot.lane.b32.xlu0 %v4880, 8
      %v5423 = vpop.permute.xlu0 %5422
      %5424 = vrot.lane.b32.xlu0 %v4881, 8
      %v5425 = vpop.permute.xlu0 %5424
      %5426 = vrot.lane.b32.xlu0 %v4882, 8
      %v5427 = vpop.permute.xlu0 %5426
      %5428 = vrot.lane.b32.xlu0 %v4883, 8
      %v5429 = vpop.permute.xlu0 %5428
      %5430 = vrot.lane.b32.xlu0 %v4884, 8
      %v5431 = vpop.permute.xlu0 %5430
      %5432 = vrot.lane.b32.xlu0 %v4885, 8
      %v5433 = vpop.permute.xlu0 %5432
      %5434 = vrot.lane.b32.xlu0 %v4886, 8
      %v5435 = vpop.permute.xlu0 %5434
      %5436 = vrot.lane.b32.xlu0 %v4887, 8
      %v5437 = vpop.permute.xlu0 %5436
      %5438 = vrot.lane.b32.xlu0 %v4888, 8
      %v5439 = vpop.permute.xlu0 %5438
      %5440 = vrot.lane.b32.xlu0 %v4889, 8
      %v5441 = vpop.permute.xlu0 %5440
      %5442 = vrot.lane.b32.xlu0 %v4890, 8
      %v5443 = vpop.permute.xlu0 %5442
      %5444 = vrot.lane.b32.xlu0 %v4891, 8
      %v5445 = vpop.permute.xlu0 %5444
      %5446 = vrot.lane.b32.xlu0 %v4892, 8
      %v5447 = vpop.permute.xlu0 %5446
      %5448 = vrot.lane.b32.xlu0 %v4893, 8
      %v5449 = vpop.permute.xlu0 %5448
      %5450 = vrot.lane.b32.xlu0 %v4894, 8
      %v5451 = vpop.permute.xlu0 %5450
      %5452 = vrot.lane.b32.xlu0 %v4895, 8
      %v5453 = vpop.permute.xlu0 %5452
      %5454 = vrot.lane.b32.xlu0 %v4896, 8
      %v5455 = vpop.permute.xlu0 %5454
      %5456 = vrot.lane.b32.xlu0 %v4897, 8
      %v5457 = vpop.permute.xlu0 %5456
      %5458 = vrot.lane.b32.xlu0 %v4898, 8
      %v5459 = vpop.permute.xlu0 %5458
      %5460 = vrot.lane.b32.xlu0 %v4899, 8
      %v5461 = vpop.permute.xlu0 %5460
      %5462 = vrot.lane.b32.xlu0 %v4900, 8
      %v5463 = vpop.permute.xlu0 %5462
      %5464 = vrot.lane.b32.xlu0 %v4901, 8
      %v5465 = vpop.permute.xlu0 %5464
      %5466 = vrot.lane.b32.xlu0 %v4902, 8
      %v5467 = vpop.permute.xlu0 %5466
      %5468 = vrot.lane.b32.xlu0 %v4903, 8
      %v5469 = vpop.permute.xlu0 %5468
      %5470 = vrot.lane.b32.xlu0 %v4904, 8
      %v5471 = vpop.permute.xlu0 %5470
      %5472 = vrot.lane.b32.xlu0 %v4905, 8
      %v5473 = vpop.permute.xlu0 %5472
      %5474 = vrot.lane.b32.xlu0 %v4906, 8
      %v5475 = vpop.permute.xlu0 %5474
      %5476 = vrot.lane.b32.xlu0 %v4907, 8
      %v5477 = vpop.permute.xlu0 %5476
      %5478 = vrot.lane.b32.xlu0 %v4908, 8
      %v5479 = vpop.permute.xlu0 %5478
      %5480 = vrot.lane.b32.xlu0 %v4909, 8
      %v5481 = vpop.permute.xlu0 %5480
      %5482 = vrot.lane.b32.xlu0 %v4910, 8
      %v5483 = vpop.permute.xlu0 %5482
      %5484 = vrot.lane.b32.xlu0 %v4911, 8
      %v5485 = vpop.permute.xlu0 %5484
      %5486 = vrot.lane.b32.xlu0 %v4912, 8
      %v5487 = vpop.permute.xlu0 %5486
      %5488 = vrot.lane.b32.xlu0 %v4913, 8
      %v5489 = vpop.permute.xlu0 %5488
      %v5554 = vsel %vm1505, %v4690, %v4979
      %v5555 = vsel %vm1505, %v4691, %v4981
      %v5556 = vsel %vm1505, %v4755, %v4983
      %v5557 = vsel %vm1505, %v4757, %v4985
      %v5558 = vsel %vm1505, %v4692, %v4987
      %v5559 = vsel %vm1505, %v4693, %v4989
      %v5560 = vsel %vm1505, %v4759, %v4991
      %v5561 = vsel %vm1505, %v4761, %v4993
      %v5562 = vsel %vm1505, %v4694, %v4995
      %v5563 = vsel %vm1505, %v4695, %v4997
      %v5564 = vsel %vm1505, %v4763, %v4999
      %v5565 = vsel %vm1505, %v4765, %v5001
      %v5566 = vsel %vm1505, %v4696, %v5003
      %v5567 = vsel %vm1505, %v4697, %v5005
      %v5568 = vsel %vm1505, %v4767, %v5007
      %v5569 = vsel %vm1505, %v4769, %v5009
      %v5570 = vsel %vm1505, %v4698, %v5011
      %v5571 = vsel %vm1505, %v4699, %v5013
      %v5572 = vsel %vm1505, %v4771, %v5015
      %v5573 = vsel %vm1505, %v4773, %v5017
      %v5574 = vsel %vm1505, %v4700, %v5019
      %v5575 = vsel %vm1505, %v4701, %v5021
      %v5576 = vsel %vm1505, %v4775, %v5023
      %v5577 = vsel %vm1505, %v4777, %v5025
      %v5578 = vsel %vm1505, %v4702, %v5027
      %v5579 = vsel %vm1505, %v4703, %v5029
      %v5580 = vsel %vm1505, %v4779, %v5031
      %v5581 = vsel %vm1505, %v4781, %v5033
      %v5582 = vsel %vm1505, %v4704, %v5035
      %v5583 = vsel %vm1505, %v4705, %v5037
      %v5584 = vsel %vm1505, %v4783, %v5039
      %v5585 = vsel %vm1505, %v4785, %v5041
      %v5586 = vsel %vm1505, %v4706, %v5043
      %v5587 = vsel %vm1505, %v4707, %v5045
      %v5588 = vsel %vm1505, %v4787, %v5047
      %v5589 = vsel %vm1505, %v4789, %v5049
      %v5590 = vsel %vm1505, %v4708, %v5051
      %v5591 = vsel %vm1505, %v4709, %v5053
      %v5592 = vsel %vm1505, %v4791, %v5055
      %v5593 = vsel %vm1505, %v4793, %v5057
      %v5594 = vsel %vm1505, %v4710, %v5059
      %v5595 = vsel %vm1505, %v4711, %v5061
      %v5596 = vsel %vm1505, %v4795, %v5063
      %v5597 = vsel %vm1505, %v4797, %v5065
      %v5598 = vsel %vm1505, %v4712, %v5067
      %v5599 = vsel %vm1505, %v4713, %v5069
      %v5600 = vsel %vm1505, %v4799, %v5071
      %v5601 = vsel %vm1505, %v4801, %v5073
      %v5602 = vsel %vm1505, %v4714, %v5075
      %v5603 = vsel %vm1505, %v4715, %v5077
      %v5604 = vsel %vm1505, %v4803, %v5079
      %v5605 = vsel %vm1505, %v4805, %v5081
      %v5606 = vsel %vm1505, %v4716, %v5083
      %v5607 = vsel %vm1505, %v4717, %v5085
      %v5608 = vsel %vm1505, %v4807, %v5087
      %v5609 = vsel %vm1505, %v4809, %v5089
      %v5610 = vsel %vm1505, %v4718, %v5091
      %v5611 = vsel %vm1505, %v4719, %v5093
      %v5612 = vsel %vm1505, %v4811, %v5095
      %v5613 = vsel %vm1505, %v4813, %v5097
      %v5614 = vsel %vm1505, %v4720, %v5099
      %v5615 = vsel %vm1505, %v4721, %v5101
      %v5616 = vsel %vm1505, %v4815, %v5103
      %v5617 = vsel %vm1505, %v4817, %v5105
      %v5618 = vsel %vm1538, %v5554, %v5171
      %v5619 = vsel %vm1538, %v5555, %v5173
      %v5620 = vsel %vm1538, %v5556, %v5175
      %v5621 = vsel %vm1538, %v5557, %v5177
      %v5622 = vsel %vm1538, %v5558, %v5179
      %v5623 = vsel %vm1538, %v5559, %v5181
      %v5624 = vsel %vm1538, %v5560, %v5183
      %v5625 = vsel %vm1538, %v5561, %v5185
      %v5626 = vsel %vm1538, %v5562, %v5187
      %v5627 = vsel %vm1538, %v5563, %v5189
      %v5628 = vsel %vm1538, %v5564, %v5191
      %v5629 = vsel %vm1538, %v5565, %v5193
      %v5630 = vsel %vm1538, %v5566, %v5195
      %v5631 = vsel %vm1538, %v5567, %v5197
      %v5632 = vsel %vm1538, %v5568, %v5199
      %v5633 = vsel %vm1538, %v5569, %v5201
      %v5634 = vsel %vm1538, %v5570, %v5203
      %v5635 = vsel %vm1538, %v5571, %v5205
      %v5636 = vsel %vm1538, %v5572, %v5207
      %v5637 = vsel %vm1538, %v5573, %v5209
      %v5638 = vsel %vm1538, %v5574, %v5211
      %v5639 = vsel %vm1538, %v5575, %v5213
      %v5640 = vsel %vm1538, %v5576, %v5215
      %v5641 = vsel %vm1538, %v5577, %v5217
      %v5642 = vsel %vm1538, %v5578, %v5219
      %v5643 = vsel %vm1538, %v5579, %v5221
      %v5644 = vsel %vm1538, %v5580, %v5223
      %v5645 = vsel %vm1538, %v5581, %v5225
      %v5646 = vsel %vm1538, %v5582, %v5227
      %v5647 = vsel %vm1538, %v5583, %v5229
      %v5648 = vsel %vm1538, %v5584, %v5231
      %v5649 = vsel %vm1538, %v5585, %v5233
      %v5650 = vsel %vm1538, %v5586, %v5235
      %v5651 = vsel %vm1538, %v5587, %v5237
      %v5652 = vsel %vm1538, %v5588, %v5239
      %v5653 = vsel %vm1538, %v5589, %v5241
      %v5654 = vsel %vm1538, %v5590, %v5243
      %v5655 = vsel %vm1538, %v5591, %v5245
      %v5656 = vsel %vm1538, %v5592, %v5247
      %v5657 = vsel %vm1538, %v5593, %v5249
      %v5658 = vsel %vm1538, %v5594, %v5251
      %v5659 = vsel %vm1538, %v5595, %v5253
      %v5660 = vsel %vm1538, %v5596, %v5255
      %v5661 = vsel %vm1538, %v5597, %v5257
      %v5662 = vsel %vm1538, %v5598, %v5259
      %v5663 = vsel %vm1538, %v5599, %v5261
      %v5664 = vsel %vm1538, %v5600, %v5263
      %v5665 = vsel %vm1538, %v5601, %v5265
      %v5666 = vsel %vm1538, %v5602, %v5267
      %v5667 = vsel %vm1538, %v5603, %v5269
      %v5668 = vsel %vm1538, %v5604, %v5271
      %v5669 = vsel %vm1538, %v5605, %v5273
      %v5670 = vsel %vm1538, %v5606, %v5275
      %v5671 = vsel %vm1538, %v5607, %v5277
      %v5672 = vsel %vm1538, %v5608, %v5279
      %v5673 = vsel %vm1538, %v5609, %v5281
      %v5674 = vsel %vm1538, %v5610, %v5283
      %v5675 = vsel %vm1538, %v5611, %v5285
      %v5676 = vsel %vm1538, %v5612, %v5287
      %v5677 = vsel %vm1538, %v5613, %v5289
      %v5678 = vsel %vm1538, %v5614, %v5291
      %v5679 = vsel %vm1538, %v5615, %v5293
      %v5680 = vsel %vm1538, %v5616, %v5295
      %v5681 = vsel %vm1538, %v5617, %v5297
      %v5682 = vsel %vm1571, %v5618, %v5363
      %v5683 = vsel %vm1571, %v5619, %v5365
      %v5684 = vsel %vm1571, %v5620, %v5367
      %v5685 = vsel %vm1571, %v5621, %v5369
      %v5686 = vsel %vm1571, %v5622, %v5371
      %v5687 = vsel %vm1571, %v5623, %v5373
      %v5688 = vsel %vm1571, %v5624, %v5375
      %v5689 = vsel %vm1571, %v5625, %v5377
      %v5690 = vsel %vm1571, %v5626, %v5379
      %v5691 = vsel %vm1571, %v5627, %v5381
      %v5692 = vsel %vm1571, %v5628, %v5383
      %v5693 = vsel %vm1571, %v5629, %v5385
      %v5694 = vsel %vm1571, %v5630, %v5387
      %v5695 = vsel %vm1571, %v5631, %v5389
      %v5696 = vsel %vm1571, %v5632, %v5391
      %v5697 = vsel %vm1571, %v5633, %v5393
      %v5698 = vsel %vm1571, %v5634, %v5395
      %v5699 = vsel %vm1571, %v5635, %v5397
      %v5700 = vsel %vm1571, %v5636, %v5399
      %v5701 = vsel %vm1571, %v5637, %v5401
      %v5702 = vsel %vm1571, %v5638, %v5403
      %v5703 = vsel %vm1571, %v5639, %v5405
      %v5704 = vsel %vm1571, %v5640, %v5407
      %v5705 = vsel %vm1571, %v5641, %v5409
      %v5706 = vsel %vm1571, %v5642, %v5411
      %v5707 = vsel %vm1571, %v5643, %v5413
      %v5708 = vsel %vm1571, %v5644, %v5415
      %v5709 = vsel %vm1571, %v5645, %v5417
      %v5710 = vsel %vm1571, %v5646, %v5419
      %v5711 = vsel %vm1571, %v5647, %v5421
      %v5712 = vsel %vm1571, %v5648, %v5423
      %v5713 = vsel %vm1571, %v5649, %v5425
      %v5714 = vsel %vm1571, %v5650, %v5427
      %v5715 = vsel %vm1571, %v5651, %v5429
      %v5716 = vsel %vm1571, %v5652, %v5431
      %v5717 = vsel %vm1571, %v5653, %v5433
      %v5718 = vsel %vm1571, %v5654, %v5435
      %v5719 = vsel %vm1571, %v5655, %v5437
      %v5720 = vsel %vm1571, %v5656, %v5439
      %v5721 = vsel %vm1571, %v5657, %v5441
      %v5722 = vsel %vm1571, %v5658, %v5443
      %v5723 = vsel %vm1571, %v5659, %v5445
      %v5724 = vsel %vm1571, %v5660, %v5447
      %v5725 = vsel %vm1571, %v5661, %v5449
      %v5726 = vsel %vm1571, %v5662, %v5451
      %v5727 = vsel %vm1571, %v5663, %v5453
      %v5728 = vsel %vm1571, %v5664, %v5455
      %v5729 = vsel %vm1571, %v5665, %v5457
      %v5730 = vsel %vm1571, %v5666, %v5459
      %v5731 = vsel %vm1571, %v5667, %v5461
      %v5732 = vsel %vm1571, %v5668, %v5463
      %v5733 = vsel %vm1571, %v5669, %v5465
      %v5734 = vsel %vm1571, %v5670, %v5467
      %v5735 = vsel %vm1571, %v5671, %v5469
      %v5736 = vsel %vm1571, %v5672, %v5471
      %v5737 = vsel %vm1571, %v5673, %v5473
      %v5738 = vsel %vm1571, %v5674, %v5475
      %v5739 = vsel %vm1571, %v5675, %v5477
      %v5740 = vsel %vm1571, %v5676, %v5479
      %v5741 = vsel %vm1571, %v5677, %v5481
      %v5742 = vsel %vm1571, %v5678, %v5483
      %v5743 = vsel %vm1571, %v5679, %v5485
      %v5744 = vsel %vm1571, %v5680, %v5487
      %v5745 = vsel %vm1571, %v5681, %v5489
      %5746 = vst.msk [vmem:[%s325] sm:$0xff] %vm1604, %v5682
      %5747 = vst.msk [vmem:[%s325 + $0x8] sm:$0xff] %vm1604, %v5683
      %5748 = vst.msk [vmem:[%s325 + $0x10] sm:$0xff] %vm1604, %v5684
      %5749 = vst.msk [vmem:[%s325 + $0x18] sm:$0xff] %vm1604, %v5685
      %5750 = vst.msk [vmem:[%s325 + $0x20] sm:$0xff] %vm1604, %v5686
      %5751 = vst.msk [vmem:[%s325 + $0x28] sm:$0xff] %vm1604, %v5687
      %5752 = vst.msk [vmem:[%s325 + $0x30] sm:$0xff] %vm1604, %v5688
      %5753 = vst.msk [vmem:[%s325 + $0x38] sm:$0xff] %vm1604, %v5689
      %5754 = vst.msk [vmem:[%s325 + $0x40] sm:$0xff] %vm1604, %v5690
      %5755 = vst.msk [vmem:[%s325 + $0x48] sm:$0xff] %vm1604, %v5691
      %5756 = vst.msk [vmem:[%s325 + $0x50] sm:$0xff] %vm1604, %v5692
      %5757 = vst.msk [vmem:[%s325 + $0x58] sm:$0xff] %vm1604, %v5693
      %5758 = vst.msk [vmem:[%s325 + $0x60] sm:$0xff] %vm1604, %v5694
      %5759 = vst.msk [vmem:[%s325 + $0x68] sm:$0xff] %vm1604, %v5695
      %5760 = vst.msk [vmem:[%s325 + $0x70] sm:$0xff] %vm1604, %v5696
      %5761 = vst.msk [vmem:[%s325 + $0x78] sm:$0xff] %vm1604, %v5697
      %5762 = vst.msk [vmem:[%s325 + $0x80] sm:$0xff] %vm1604, %v5698
      %5763 = vst.msk [vmem:[%s325 + $0x88] sm:$0xff] %vm1604, %v5699
      %5764 = vst.msk [vmem:[%s325 + $0x90] sm:$0xff] %vm1604, %v5700
      %5765 = vst.msk [vmem:[%s325 + $0x98] sm:$0xff] %vm1604, %v5701
      %5766 = vst.msk [vmem:[%s325 + $0xa0] sm:$0xff] %vm1604, %v5702
      %5767 = vst.msk [vmem:[%s325 + $0xa8] sm:$0xff] %vm1604, %v5703
      %5768 = vst.msk [vmem:[%s325 + $0xb0] sm:$0xff] %vm1604, %v5704
      %5769 = vst.msk [vmem:[%s325 + $0xb8] sm:$0xff] %vm1604, %v5705
      %5770 = vst.msk [vmem:[%s325 + $0xc0] sm:$0xff] %vm1604, %v5706
      %5771 = vst.msk [vmem:[%s325 + $0xc8] sm:$0xff] %vm1604, %v5707
      %5772 = vst.msk [vmem:[%s325 + $0xd0] sm:$0xff] %vm1604, %v5708
      %5773 = vst.msk [vmem:[%s325 + $0xd8] sm:$0xff] %vm1604, %v5709
      %5774 = vst.msk [vmem:[%s325 + $0xe0] sm:$0xff] %vm1604, %v5710
      %5775 = vst.msk [vmem:[%s325 + $0xe8] sm:$0xff] %vm1604, %v5711
      %5776 = vst.msk [vmem:[%s325 + $0xf0] sm:$0xff] %vm1604, %v5712
      %5777 = vst.msk [vmem:[%s325 + $0xf8] sm:$0xff] %vm1604, %v5713
      %5778 = vst.msk [vmem:[%s325 + $0x100] sm:$0xff] %vm1604, %v5714
      %5779 = vst.msk [vmem:[%s325 + $0x108] sm:$0xff] %vm1604, %v5715
      %5780 = vst.msk [vmem:[%s325 + $0x110] sm:$0xff] %vm1604, %v5716
      %5781 = vst.msk [vmem:[%s325 + $0x118] sm:$0xff] %vm1604, %v5717
      %5782 = vst.msk [vmem:[%s325 + $0x120] sm:$0xff] %vm1604, %v5718
      %5783 = vst.msk [vmem:[%s325 + $0x128] sm:$0xff] %vm1604, %v5719
      %5784 = vst.msk [vmem:[%s325 + $0x130] sm:$0xff] %vm1604, %v5720
      %5785 = vst.msk [vmem:[%s325 + $0x138] sm:$0xff] %vm1604, %v5721
      %5786 = vst.msk [vmem:[%s325 + $0x140] sm:$0xff] %vm1604, %v5722
      %5787 = vst.msk [vmem:[%s325 + $0x148] sm:$0xff] %vm1604, %v5723
      %5788 = vst.msk [vmem:[%s325 + $0x150] sm:$0xff] %vm1604, %v5724
      %5789 = vst.msk [vmem:[%s325 + $0x158] sm:$0xff] %vm1604, %v5725
      %5790 = vst.msk [vmem:[%s325 + $0x160] sm:$0xff] %vm1604, %v5726
      %5791 = vst.msk [vmem:[%s325 + $0x168] sm:$0xff] %vm1604, %v5727
      %5792 = vst.msk [vmem:[%s325 + $0x170] sm:$0xff] %vm1604, %v5728
      %5793 = vst.msk [vmem:[%s325 + $0x178] sm:$0xff] %vm1604, %v5729
      %5794 = vst.msk [vmem:[%s325 + $0x180] sm:$0xff] %vm1604, %v5730
      %5795 = vst.msk [vmem:[%s325 + $0x188] sm:$0xff] %vm1604, %v5731
      %5796 = vst.msk [vmem:[%s325 + $0x190] sm:$0xff] %vm1604, %v5732
      %5797 = vst.msk [vmem:[%s325 + $0x198] sm:$0xff] %vm1604, %v5733
      %5798 = vst.msk [vmem:[%s325 + $0x1a0] sm:$0xff] %vm1604, %v5734
      %5799 = vst.msk [vmem:[%s325 + $0x1a8] sm:$0xff] %vm1604, %v5735
      %5800 = vst.msk [vmem:[%s325 + $0x1b0] sm:$0xff] %vm1604, %v5736
      %5801 = vst.msk [vmem:[%s325 + $0x1b8] sm:$0xff] %vm1604, %v5737
      %5802 = vst.msk [vmem:[%s325 + $0x1c0] sm:$0xff] %vm1604, %v5738
      %5803 = vst.msk [vmem:[%s325 + $0x1c8] sm:$0xff] %vm1604, %v5739
      %5804 = vst.msk [vmem:[%s325 + $0x1d0] sm:$0xff] %vm1604, %v5740
      %5805 = vst.msk [vmem:[%s325 + $0x1d8] sm:$0xff] %vm1604, %v5741
      %5806 = vst.msk [vmem:[%s325 + $0x1e0] sm:$0xff] %vm1604, %v5742
      %5807 = vst.msk [vmem:[%s325 + $0x1e8] sm:$0xff] %vm1604, %v5743
      %5808 = vst.msk [vmem:[%s325 + $0x1f0] sm:$0xff] %vm1604, %v5744
      %5809 = vst.msk [vmem:[%s325 + $0x1f8] sm:$0xff] %vm1604, %v5745
      %p5810 = scmp.lt.s32.totalorder %s19, 1
      %s5811 = scalar_select %p5810, %s19, 1
      %s5812 = smul.addr %s5811, 64
      %s5813 = smul.addr %s5812, 8
      %s5814 = scalar_lea.vmem %s8, %s5813
      // Predicated region
      $region53: #{upsample_layer_forward.1} parent=51 // pred_check
        %p5815 = pneg %p215
      $region54: #{upsample_layer_forward.1} parent=51 // pred_check_branch
        %5817 = sbr.rel (%p5815) target = $region56
      $region55: #{upsample_layer_forward.1} parent=51 // pred_region
        _
      $region56: #{upsample_layer_forward.1} parent=51 // pred_fallthru
        _
    $region52: #{upsample_layer_forward.1} parent=5 // pred_fallthru
      _
    %p5818 = scmp.le.s32.totalorder 2, %s14
    // Predicated region
    $region57: #{upsample_layer_forward.1} parent=5 // pred_check
      %p5819 = pneg %p5818
    $region58: #{upsample_layer_forward.1} parent=5 // pred_check_branch
      %5821 = sbr.rel (%p5819) target = $region60
    $region59: #{upsample_layer_forward.1} parent=5 // pred_region
      %s5822 = ssub.s32 %s14, 2
      // Predicated region
      $region61: #{upsample_layer_forward.1} parent=59 // pred_check
        %p5823 = pneg %p221
      $region62: #{upsample_layer_forward.1} parent=59 // pred_check_branch
        %5825 = sbr.rel (%p5823) target = $region64
      $region63: #{upsample_layer_forward.1} parent=59 // pred_region
        %p5826 = scmp.lt.s32.totalorder %s20, 1
        %s5827 = scalar_select %p5826, %s20, 1
        %s5828 = smul.addr %s5827, 64
        %s5829 = smul.addr %s5828, 8
        %s5830 = scalar_lea.vmem %s8, %s5829
      $region64: #{upsample_layer_forward.1} parent=59 // pred_fallthru
        _
    $region60: #{upsample_layer_forward.1} parent=5 // pred_fallthru
      _
  $region6: #{upsample_layer_forward.1} parent=0 // loop_footer
    %s18 = sadd.s32 1, %s14
  $region7: #{upsample_layer_forward.1} parent=0 // loop_footer_branch
    %13 = sbr.rel target = $region3
  $region8: #{upsample_layer_forward.1} parent=0 // loop_exit
    _

</llo_original>
